<compile_context>
chip_gen: v7x
topology: tpu7x:2x2x1
jax: 0.10.0
libtpu: 0.0.40
codegen_flags: <defaults>
</compile_context>

<pallas_src>
import math

import numpy as np

import jax
import jax.numpy as jnp
from jax.experimental import pallas as pl
from jax.experimental.pallas import tpu as pltpu

_BN_EPS = 1e-10
_LANE = 128
_SUBLANE = 8


def _round_up(x, m):
    return ((x + m - 1) // m) * m


def _cdiv(a, b):
    return -(-a // b)


def _single_ae_kernel(x_ref,
                      w1, b1, w2, b2, w3, b3, w4, b4, w5, b5,
                      w6, b6, w7, b7, w8, b8, w9, b9, w10, b10,
                      recon_ref, latent_ref):
    """One batch tile of the full singleAE forward pass.

    Weights arrive pre-transposed to (in, out) in bf16; biases as (1, out)
    f32.  Matmuls run on the MXU in bf16 with f32 accumulation.  The
    BatchNorm eval-mode scale is folded into w5/b5 by the wrapper, and
    nn.Dropout is identity in eval mode.
    """
    def lin_f32(t_bf16, w_ref, b_ref):
        return (jnp.dot(t_bf16, w_ref[...], preferred_element_type=jnp.float32)
                + b_ref[...])

    def relu_bf16(t_f32):
        return jnp.maximum(t_f32, 0.0).astype(jnp.bfloat16)

    # ---- encoder ----
    # TODO(synk): training-mode stochastic dropout / batch-stat BatchNorm not
    # implemented (inference semantics only).
    h = x_ref[...].astype(jnp.bfloat16)
    h = relu_bf16(lin_f32(h, w1, b1))
    h = relu_bf16(lin_f32(h, w2, b2))
    h = relu_bf16(lin_f32(h, w3, b3))
    h = relu_bf16(lin_f32(h, w4, b4))
    z = lin_f32(h, w5, b5)              # BN eval scale already folded -> latent
    latent_ref[...] = z.astype(latent_ref.dtype)

    # ---- decoder ----
    h = relu_bf16(lin_f32(z.astype(jnp.bfloat16), w6, b6))
    h = relu_bf16(lin_f32(h, w7, b7))
    h = relu_bf16(lin_f32(h, w8, b8))
    h = relu_bf16(lin_f32(h, w9, b9))
    recon = jnp.maximum(lin_f32(h, w10, b10), 0.0)
    recon_ref[...] = recon.astype(recon_ref.dtype)


def _vmem_ceiling_bytes():
    """Usable per-core VMEM, leaving headroom for compiler scratch/spills."""
    cap = 64 << 20                      # conservative default (v7x per-TC)
    try:
        info = pltpu.get_tpu_info()
        cap = int(getattr(info, "vmem_capacity_bytes", cap))
    except Exception:
        pass
    # Keep ~1/8 of physical VMEM free: ~56 MiB usable on v7x (64 MiB parts),
    # ~112 MiB on v5e/v6e (128 MiB parts).
    return max((cap * 7) // 8, 16 << 20)


def _prepare_params(params, in_pad, latent_pad):
    """bf16 (in,out) weights, f32 (1,out) biases, BN folded, lane-padded."""
    input_dim = params["w1"].shape[0]
    latent_dim = params["w5"].shape[1]
    bn_scale = 1.0 / math.sqrt(1.0 + _BN_EPS)
    ws, bs = [], []
    for i in range(1, 11):
        wi = params[f"w{i}"].astype(jnp.float32)
        bi = params[f"b{i}"].reshape(1, -1).astype(jnp.float32)
        if i == 1:                                     # pad gene (K) axis
            wi = jnp.pad(wi, ((0, in_pad - input_dim), (0, 0)))
        if i == 5:                                     # fold BN, pad latent N
            wi = wi * bn_scale
            bi = bi * bn_scale
            wi = jnp.pad(wi, ((0, 0), (0, latent_pad - latent_dim)))
            bi = jnp.pad(bi, ((0, 0), (0, latent_pad - latent_dim)))
        if i == 6:                                     # pad latent (K) axis
            wi = jnp.pad(wi, ((0, latent_pad - latent_dim), (0, 0)))
        if i == 10:                                    # pad gene (N) axis
            wi = jnp.pad(wi, ((0, 0), (0, in_pad - input_dim)))
            bi = jnp.pad(bi, ((0, 0), (0, in_pad - input_dim)))
        ws.append(wi.astype(jnp.bfloat16))
        bs.append(bi)
    return ws, bs


def _choose_batch_tiling(B, tile_b):
    """Pick (TILE_B, B_pad): 8-aligned tile, >=2 grid steps when possible."""
    B8 = _round_up(B, _SUBLANE)
    n_steps = max(1, _cdiv(B8, tile_b))
    # v7x has two TensorCores; the "parallel" batch axis only shards across
    # them if the grid has at least two steps.
    if n_steps < 2 and B8 >= 2 * _SUBLANE:
        n_steps = 2
    tile = _round_up(_cdiv(B8, n_steps), _SUBLANE)
    return tile, n_steps * tile


def single_ae_forward(x, params, *, tile_b=256, io_dtype=jnp.bfloat16):
    """Run the singleAE forward pass with a batch-tiled Pallas kernel.

    x: (B, input_dim) array (any float dtype; read as io_dtype).
    params: dict with w1..w10 pre-transposed to (in, out) and b1..b10.
    io_dtype: dtype of the x read and reconstruction write (bf16 halves the
        dominant HBM traffic; use jnp.float32 if accuracy on raw counts
        matters).
    Returns (reconstruction (B, input_dim), latent (B, latent_dim)).
    """
    B, input_dim = x.shape
    latent_dim = params["w5"].shape[1]
    in_pad = _round_up(input_dim, _LANE)       # lane-dense x / recon columns
    latent_pad = _round_up(latent_dim, _LANE)  # lane-dense latent columns

    ws, bs = _prepare_params(params, in_pad, latent_pad)
    param_bytes = (sum(int(w.size) * w.dtype.itemsize for w in ws)
                   + sum(int(b.size) * b.dtype.itemsize for b in bs))
    max_dim = max(in_pad, latent_pad, *(w.shape[1] for w in ws))
    io_itemsize = np.dtype(io_dtype).itemsize

    def vmem_demand(tile, weight_bufs):
        # weights/biases x buffer count + double-buffered IO tiles
        # (x + recon in io_dtype, latent f32) + in-kernel activations + slack.
        io_bytes = 2 * tile * (2 * in_pad * io_itemsize + latent_pad * 4)
        act_bytes = 6 * tile * max_dim * 4
        return weight_bufs * param_bytes + io_bytes + act_bytes + (4 << 20)

    vmem_ceiling = _vmem_ceiling_bytes()
    TILE_B, B_pad = _choose_batch_tiling(B, tile_b)
    B8 = _round_up(B, _SUBLANE)
    while vmem_demand(TILE_B, 1) > vmem_ceiling and TILE_B > _SUBLANE:
        TILE_B = max(_SUBLANE, _round_up(TILE_B // 2, _SUBLANE))
        B_pad = _round_up(B8, TILE_B)
    # TODO(synk): for very large gene counts where bf16 w1+w10 alone overflow
    # a 64 MiB v7x core, stream w1/w10 (pltpu.emit_pipeline over K/N tiles)
    # instead of shrinking TILE_B; fc2-fc9 stay VMEM-resident.

    x_pad = x.astype(io_dtype)
    if in_pad != input_dim:
        x_pad = jnp.pad(x_pad, ((0, 0), (0, in_pad - input_dim)))
    if B_pad != B:
        x_pad = jnp.pad(x_pad, ((0, B_pad - B), (0, 0)))

    flat_args = [x_pad]
    for wi, bi in zip(ws, bs):
        flat_args += [wi, bi]

    out_shape = (jax.ShapeDtypeStruct((B_pad, in_pad), io_dtype),
                 jax.ShapeDtypeStruct((B_pad, latent_pad), jnp.float32))
    out_specs = (pl.BlockSpec((TILE_B, in_pad), lambda g: (g, 0)),
                 pl.BlockSpec((TILE_B, latent_pad), lambda g: (g, 0)))

    def make_call(single_buffer_weights):
        # Weights/biases are grid-invariant (index_map -> (0, 0)); single
        # buffering them halves their VMEM footprint vs. the default double
        # buffering, which the vmem budget above assumes.
        wb_kwargs = (dict(pipeline_mode=pl.Buffered(1))
                     if single_buffer_weights else {})
        in_specs = [pl.BlockSpec((TILE_B, in_pad), lambda g: (g, 0))]
        for wi, bi in zip(ws, bs):
            in_specs += [pl.BlockSpec(wi.shape, lambda g: (0, 0), **wb_kwargs),
                         pl.BlockSpec(bi.shape, lambda g: (0, 0), **wb_kwargs)]
        weight_bufs = 1 if single_buffer_weights else 2
        vmem_limit = int(min(max(vmem_demand(TILE_B, weight_bufs), 16 << 20),
                             vmem_ceiling))
        return pl.pallas_call(
            _single_ae_kernel,
            grid=(B_pad // TILE_B,),
            in_specs=in_specs,
            out_specs=out_specs,
            out_shape=out_shape,
            compiler_params=pltpu.CompilerParams(
                dimension_semantics=("parallel",),
                vmem_limit_bytes=vmem_limit),
        )

    try:
        recon, latent = jax.block_until_ready(make_call(True)(*flat_args))
    except Exception:
        # Fallback for toolchains that reject Buffered(1) on a grid-invariant
        # input: default double buffering (correct, slightly more VMEM).
        recon, latent = make_call(False)(*flat_args)

    # Only pay the slice passes when padding was actually added.
    if B_pad != B or in_pad != input_dim:
        recon = recon[:B, :input_dim]
    if B_pad != B or latent_pad != latent_dim:
        latent = latent[:B, :latent_dim]
    return recon, latent


def init_params(key, input_dim, fc_dim, latent_dim):
    """PyTorch-style init: U(-1/sqrt(fan_in), 1/sqrt(fan_in)).

    Weights stored pre-transposed as (in_features, out_features).
    """
    dims = [
        (input_dim, fc_dim),   # fc1
        (fc_dim, fc_dim),      # fc2
        (fc_dim, fc_dim),      # fc3
        (fc_dim, fc_dim),      # fc4
        (fc_dim, latent_dim),  # fc5
        (latent_dim, fc_dim),  # fc6
        (fc_dim, fc_dim),      # fc7
        (fc_dim, fc_dim),      # fc8
        (fc_dim, fc_dim),      # fc9
        (fc_dim, input_dim),   # fc10
    ]
    params = {}
    for i, (fan_in, fan_out) in enumerate(dims, start=1):
        key, kw, kb = jax.random.split(key, 3)
        bound = 1.0 / math.sqrt(fan_in)
        params[f"w{i}"] = jax.random.uniform(
            kw, (fan_in, fan_out), jnp.float32, -bound, bound)
        params[f"b{i}"] = jax.random.uniform(
            kb, (fan_out,), jnp.float32, -bound, bound)
    return params


def reference_forward(x, params):
    """Pure-JAX f32 reference of the same forward pass."""
    relu = lambda t: jnp.maximum(t, 0.0)
    lin = lambda t, i: t @ params[f"w{i}"] + params[f"b{i}"]
    h = relu(lin(x, 1))
    h = relu(lin(h, 2))
    h = relu(lin(h, 3))
    h = relu(lin(h, 4))
    z = lin(h, 5) * jax.lax.rsqrt(jnp.float32(1.0 + _BN_EPS))
    h = relu(lin(z, 6))
    h = relu(lin(h, 7))
    h = relu(lin(h, 8))
    h = relu(lin(h, 9))
    return relu(lin(h, 10)), z


if __name__ == "__main__":
    def run_case(key, B, input_dim, fc_dim, latent_dim):
        key, kx = jax.random.split(key)
        x = jax.random.normal(kx, (B, input_dim), jnp.float32)
        params = init_params(key, input_dim, fc_dim, latent_dim)

        recon, latent = single_ae_forward(x, params)
        jax.block_until_ready((recon, latent))

        recon_ref, latent_ref = reference_forward(x, params)
        assert recon.shape == (B, input_dim) and latent.shape == (B, latent_dim)
        assert jnp.allclose(recon.astype(jnp.float32), recon_ref,
                            rtol=3e-2, atol=3e-2)
        assert jnp.allclose(latent, latent_ref, rtol=3e-2, atol=3e-2)

    key = jax.random.PRNGKey(0)
    k1, k2 = jax.random.split(key)
    # Lane-aligned shapes (no padding path, single grid step for tiny B).
    run_case(k1, B=8, input_dim=256, fc_dim=128, latent_dim=32)
    # Unaligned shapes: exercises input/latent lane padding, batch padding,
    # and a 2-step grid.
    run_case(k2, B=10, input_dim=200, fc_dim=96, latent_dim=20)

    print("KERNEL_OK")
</pallas_src>

<mosaic_0001>
module attributes {stable_mosaic.version = 11 : i64} {
  func.func @_single_ae_kernel(%arg0: i32, %arg1: memref<8x256xbf16, #tpu.memory_space<vmem>>, %arg2: memref<256x128xbf16, #tpu.memory_space<vmem>>, %arg3: memref<1x128xf32, #tpu.memory_space<vmem>>, %arg4: memref<128x128xbf16, #tpu.memory_space<vmem>>, %arg5: memref<1x128xf32, #tpu.memory_space<vmem>>, %arg6: memref<128x128xbf16, #tpu.memory_space<vmem>>, %arg7: memref<1x128xf32, #tpu.memory_space<vmem>>, %arg8: memref<128x128xbf16, #tpu.memory_space<vmem>>, %arg9: memref<1x128xf32, #tpu.memory_space<vmem>>, %arg10: memref<128x128xbf16, #tpu.memory_space<vmem>>, %arg11: memref<1x128xf32, #tpu.memory_space<vmem>>, %arg12: memref<128x128xbf16, #tpu.memory_space<vmem>>, %arg13: memref<1x128xf32, #tpu.memory_space<vmem>>, %arg14: memref<128x128xbf16, #tpu.memory_space<vmem>>, %arg15: memref<1x128xf32, #tpu.memory_space<vmem>>, %arg16: memref<128x128xbf16, #tpu.memory_space<vmem>>, %arg17: memref<1x128xf32, #tpu.memory_space<vmem>>, %arg18: memref<128x128xbf16, #tpu.memory_space<vmem>>, %arg19: memref<1x128xf32, #tpu.memory_space<vmem>>, %arg20: memref<128x256xbf16, #tpu.memory_space<vmem>>, %arg21: memref<1x256xf32, #tpu.memory_space<vmem>>, %arg22: memref<8x256xbf16, #tpu.memory_space<vmem>>, %arg23: memref<8x128xf32, #tpu.memory_space<vmem>>) attributes {dimension_semantics = [#tpu.dimension_semantics<parallel>], iteration_bounds = array<i64: 1>, scalar_prefetch = 0 : i64, scratch_operands = 0 : i64, tpu.core_type = #tpu.core_type<tc>, window_params = [{transform_indices = @transform_0, window_bounds = array<i64: 8, 256>}, {pipeline_mode = #tpu.pipeline_mode<synchronous>, transform_indices = @transform_1, window_bounds = array<i64: 256, 128>}, {pipeline_mode = #tpu.pipeline_mode<synchronous>, transform_indices = @transform_2, window_bounds = array<i64: 1, 128>}, {pipeline_mode = #tpu.pipeline_mode<synchronous>, transform_indices = @transform_3, window_bounds = array<i64: 128, 128>}, {pipeline_mode = #tpu.pipeline_mode<synchronous>, transform_indices = @transform_4, window_bounds = array<i64: 1, 128>}, {pipeline_mode = #tpu.pipeline_mode<synchronous>, transform_indices = @transform_5, window_bounds = array<i64: 128, 128>}, {pipeline_mode = #tpu.pipeline_mode<synchronous>, transform_indices = @transform_6, window_bounds = array<i64: 1, 128>}, {pipeline_mode = #tpu.pipeline_mode<synchronous>, transform_indices = @transform_7, window_bounds = array<i64: 128, 128>}, {pipeline_mode = #tpu.pipeline_mode<synchronous>, transform_indices = @transform_8, window_bounds = array<i64: 1, 128>}, {pipeline_mode = #tpu.pipeline_mode<synchronous>, transform_indices = @transform_9, window_bounds = array<i64: 128, 128>}, {pipeline_mode = #tpu.pipeline_mode<synchronous>, transform_indices = @transform_10, window_bounds = array<i64: 1, 128>}, {pipeline_mode = #tpu.pipeline_mode<synchronous>, transform_indices = @transform_11, window_bounds = array<i64: 128, 128>}, {pipeline_mode = #tpu.pipeline_mode<synchronous>, transform_indices = @transform_12, window_bounds = array<i64: 1, 128>}, {pipeline_mode = #tpu.pipeline_mode<synchronous>, transform_indices = @transform_13, window_bounds = array<i64: 128, 128>}, {pipeline_mode = #tpu.pipeline_mode<synchronous>, transform_indices = @transform_14, window_bounds = array<i64: 1, 128>}, {pipeline_mode = #tpu.pipeline_mode<synchronous>, transform_indices = @transform_15, window_bounds = array<i64: 128, 128>}, {pipeline_mode = #tpu.pipeline_mode<synchronous>, transform_indices = @transform_16, window_bounds = array<i64: 1, 128>}, {pipeline_mode = #tpu.pipeline_mode<synchronous>, transform_indices = @transform_17, window_bounds = array<i64: 128, 128>}, {pipeline_mode = #tpu.pipeline_mode<synchronous>, transform_indices = @transform_18, window_bounds = array<i64: 1, 128>}, {pipeline_mode = #tpu.pipeline_mode<synchronous>, transform_indices = @transform_19, window_bounds = array<i64: 128, 256>}, {pipeline_mode = #tpu.pipeline_mode<synchronous>, transform_indices = @transform_20, window_bounds = array<i64: 1, 256>}, {transform_indices = @transform_21, window_bounds = array<i64: 8, 256>}, {transform_indices = @transform_22, window_bounds = array<i64: 8, 128>}]} {
    %c0 = arith.constant 0 : index
    %c0_0 = arith.constant 0 : index
    %0 = vector.load %arg1[%c0, %c0_0] : memref<8x256xbf16, #tpu.memory_space<vmem>>, vector<8x256xbf16>
    %c0_1 = arith.constant 0 : index
    %c0_2 = arith.constant 0 : index
    %1 = vector.load %arg2[%c0_1, %c0_2] : memref<256x128xbf16, #tpu.memory_space<vmem>>, vector<256x128xbf16>
    %cst = arith.constant dense<0.000000e+00> : vector<8x128xf32>
    %2 = tpu.matmul %0, %1, %cst {dimension_numbers = #tpu.dot_dimension_numbers<[1], [0], [0], [1], [0, 0, 1, 1], [], []>} : vector<8x256xbf16>, vector<256x128xbf16>, vector<8x128xf32> -> vector<8x128xf32>
    %c0_3 = arith.constant 0 : index
    %c0_4 = arith.constant 0 : index
    %3 = vector.load %arg3[%c0_3, %c0_4] : memref<1x128xf32, #tpu.memory_space<vmem>>, vector<1x128xf32>
    %4 = vector.broadcast %3 : vector<1x128xf32> to vector<8x128xf32>
    %5 = arith.addf %2, %4 : vector<8x128xf32>
    %cst_5 = arith.constant 0.000000e+00 : f32
    %6 = vector.broadcast %cst_5 : f32 to vector<8x128xf32>
    %7 = arith.maximumf %5, %6 : vector<8x128xf32>
    %8 = arith.truncf %7 : vector<8x128xf32> to vector<8x128xbf16>
    %c0_6 = arith.constant 0 : index
    %c0_7 = arith.constant 0 : index
    %9 = vector.load %arg4[%c0_6, %c0_7] : memref<128x128xbf16, #tpu.memory_space<vmem>>, vector<128x128xbf16>
    %cst_8 = arith.constant dense<0.000000e+00> : vector<8x128xf32>
    %10 = tpu.matmul %8, %9, %cst_8 {dimension_numbers = #tpu.dot_dimension_numbers<[1], [0], [0], [1], [0, 0, 1, 1], [], []>} : vector<8x128xbf16>, vector<128x128xbf16>, vector<8x128xf32> -> vector<8x128xf32>
    %c0_9 = arith.constant 0 : index
    %c0_10 = arith.constant 0 : index
    %11 = vector.load %arg5[%c0_9, %c0_10] : memref<1x128xf32, #tpu.memory_space<vmem>>, vector<1x128xf32>
    %12 = vector.broadcast %11 : vector<1x128xf32> to vector<8x128xf32>
    %13 = arith.addf %10, %12 : vector<8x128xf32>
    %cst_11 = arith.constant 0.000000e+00 : f32
    %14 = vector.broadcast %cst_11 : f32 to vector<8x128xf32>
    %15 = arith.maximumf %13, %14 : vector<8x128xf32>
    %16 = arith.truncf %15 : vector<8x128xf32> to vector<8x128xbf16>
    %c0_12 = arith.constant 0 : index
    %c0_13 = arith.constant 0 : index
    %17 = vector.load %arg6[%c0_12, %c0_13] : memref<128x128xbf16, #tpu.memory_space<vmem>>, vector<128x128xbf16>
    %cst_14 = arith.constant dense<0.000000e+00> : vector<8x128xf32>
    %18 = tpu.matmul %16, %17, %cst_14 {dimension_numbers = #tpu.dot_dimension_numbers<[1], [0], [0], [1], [0, 0, 1, 1], [], []>} : vector<8x128xbf16>, vector<128x128xbf16>, vector<8x128xf32> -> vector<8x128xf32>
    %c0_15 = arith.constant 0 : index
    %c0_16 = arith.constant 0 : index
    %19 = vector.load %arg7[%c0_15, %c0_16] : memref<1x128xf32, #tpu.memory_space<vmem>>, vector<1x128xf32>
    %20 = vector.broadcast %19 : vector<1x128xf32> to vector<8x128xf32>
    %21 = arith.addf %18, %20 : vector<8x128xf32>
    %cst_17 = arith.constant 0.000000e+00 : f32
    %22 = vector.broadcast %cst_17 : f32 to vector<8x128xf32>
    %23 = arith.maximumf %21, %22 : vector<8x128xf32>
    %24 = arith.truncf %23 : vector<8x128xf32> to vector<8x128xbf16>
    %c0_18 = arith.constant 0 : index
    %c0_19 = arith.constant 0 : index
    %25 = vector.load %arg8[%c0_18, %c0_19] : memref<128x128xbf16, #tpu.memory_space<vmem>>, vector<128x128xbf16>
    %cst_20 = arith.constant dense<0.000000e+00> : vector<8x128xf32>
    %26 = tpu.matmul %24, %25, %cst_20 {dimension_numbers = #tpu.dot_dimension_numbers<[1], [0], [0], [1], [0, 0, 1, 1], [], []>} : vector<8x128xbf16>, vector<128x128xbf16>, vector<8x128xf32> -> vector<8x128xf32>
    %c0_21 = arith.constant 0 : index
    %c0_22 = arith.constant 0 : index
    %27 = vector.load %arg9[%c0_21, %c0_22] : memref<1x128xf32, #tpu.memory_space<vmem>>, vector<1x128xf32>
    %28 = vector.broadcast %27 : vector<1x128xf32> to vector<8x128xf32>
    %29 = arith.addf %26, %28 : vector<8x128xf32>
    %cst_23 = arith.constant 0.000000e+00 : f32
    %30 = vector.broadcast %cst_23 : f32 to vector<8x128xf32>
    %31 = arith.maximumf %29, %30 : vector<8x128xf32>
    %32 = arith.truncf %31 : vector<8x128xf32> to vector<8x128xbf16>
    %c0_24 = arith.constant 0 : index
    %c0_25 = arith.constant 0 : index
    %33 = vector.load %arg10[%c0_24, %c0_25] : memref<128x128xbf16, #tpu.memory_space<vmem>>, vector<128x128xbf16>
    %cst_26 = arith.constant dense<0.000000e+00> : vector<8x128xf32>
    %34 = tpu.matmul %32, %33, %cst_26 {dimension_numbers = #tpu.dot_dimension_numbers<[1], [0], [0], [1], [0, 0, 1, 1], [], []>} : vector<8x128xbf16>, vector<128x128xbf16>, vector<8x128xf32> -> vector<8x128xf32>
    %c0_27 = arith.constant 0 : index
    %c0_28 = arith.constant 0 : index
    %35 = vector.load %arg11[%c0_27, %c0_28] : memref<1x128xf32, #tpu.memory_space<vmem>>, vector<1x128xf32>
    %36 = vector.broadcast %35 : vector<1x128xf32> to vector<8x128xf32>
    %37 = arith.addf %34, %36 : vector<8x128xf32>
    %c0_29 = arith.constant 0 : index
    %c0_30 = arith.constant 0 : index
    %38 = vector.load %arg23[%c0_29, %c0_30] : memref<8x128xf32, #tpu.memory_space<vmem>>, vector<8x128xf32>
    tpu.vector_store %arg23[%c0_29, %c0_30], %37 {strides = array<i32>} : memref<8x128xf32, #tpu.memory_space<vmem>>, vector<8x128xf32>,
    %39 = arith.truncf %37 : vector<8x128xf32> to vector<8x128xbf16>
    %c0_31 = arith.constant 0 : index
    %c0_32 = arith.constant 0 : index
    %40 = vector.load %arg12[%c0_31, %c0_32] : memref<128x128xbf16, #tpu.memory_space<vmem>>, vector<128x128xbf16>
    %cst_33 = arith.constant dense<0.000000e+00> : vector<8x128xf32>
    %41 = tpu.matmul %39, %40, %cst_33 {dimension_numbers = #tpu.dot_dimension_numbers<[1], [0], [0], [1], [0, 0, 1, 1], [], []>} : vector<8x128xbf16>, vector<128x128xbf16>, vector<8x128xf32> -> vector<8x128xf32>
    %c0_34 = arith.constant 0 : index
    %c0_35 = arith.constant 0 : index
    %42 = vector.load %arg13[%c0_34, %c0_35] : memref<1x128xf32, #tpu.memory_space<vmem>>, vector<1x128xf32>
    %43 = vector.broadcast %42 : vector<1x128xf32> to vector<8x128xf32>
    %44 = arith.addf %41, %43 : vector<8x128xf32>
    %cst_36 = arith.constant 0.000000e+00 : f32
    %45 = vector.broadcast %cst_36 : f32 to vector<8x128xf32>
    %46 = arith.maximumf %44, %45 : vector<8x128xf32>
    %47 = arith.truncf %46 : vector<8x128xf32> to vector<8x128xbf16>
    %c0_37 = arith.constant 0 : index
    %c0_38 = arith.constant 0 : index
    %48 = vector.load %arg14[%c0_37, %c0_38] : memref<128x128xbf16, #tpu.memory_space<vmem>>, vector<128x128xbf16>
    %cst_39 = arith.constant dense<0.000000e+00> : vector<8x128xf32>
    %49 = tpu.matmul %47, %48, %cst_39 {dimension_numbers = #tpu.dot_dimension_numbers<[1], [0], [0], [1], [0, 0, 1, 1], [], []>} : vector<8x128xbf16>, vector<128x128xbf16>, vector<8x128xf32> -> vector<8x128xf32>
    %c0_40 = arith.constant 0 : index
    %c0_41 = arith.constant 0 : index
    %50 = vector.load %arg15[%c0_40, %c0_41] : memref<1x128xf32, #tpu.memory_space<vmem>>, vector<1x128xf32>
    %51 = vector.broadcast %50 : vector<1x128xf32> to vector<8x128xf32>
    %52 = arith.addf %49, %51 : vector<8x128xf32>
    %cst_42 = arith.constant 0.000000e+00 : f32
    %53 = vector.broadcast %cst_42 : f32 to vector<8x128xf32>
    %54 = arith.maximumf %52, %53 : vector<8x128xf32>
    %55 = arith.truncf %54 : vector<8x128xf32> to vector<8x128xbf16>
    %c0_43 = arith.constant 0 : index
    %c0_44 = arith.constant 0 : index
    %56 = vector.load %arg16[%c0_43, %c0_44] : memref<128x128xbf16, #tpu.memory_space<vmem>>, vector<128x128xbf16>
    %cst_45 = arith.constant dense<0.000000e+00> : vector<8x128xf32>
    %57 = tpu.matmul %55, %56, %cst_45 {dimension_numbers = #tpu.dot_dimension_numbers<[1], [0], [0], [1], [0, 0, 1, 1], [], []>} : vector<8x128xbf16>, vector<128x128xbf16>, vector<8x128xf32> -> vector<8x128xf32>
    %c0_46 = arith.constant 0 : index
    %c0_47 = arith.constant 0 : index
    %58 = vector.load %arg17[%c0_46, %c0_47] : memref<1x128xf32, #tpu.memory_space<vmem>>, vector<1x128xf32>
    %59 = vector.broadcast %58 : vector<1x128xf32> to vector<8x128xf32>
    %60 = arith.addf %57, %59 : vector<8x128xf32>
    %cst_48 = arith.constant 0.000000e+00 : f32
    %61 = vector.broadcast %cst_48 : f32 to vector<8x128xf32>
    %62 = arith.maximumf %60, %61 : vector<8x128xf32>
    %63 = arith.truncf %62 : vector<8x128xf32> to vector<8x128xbf16>
    %c0_49 = arith.constant 0 : index
    %c0_50 = arith.constant 0 : index
    %64 = vector.load %arg18[%c0_49, %c0_50] : memref<128x128xbf16, #tpu.memory_space<vmem>>, vector<128x128xbf16>
    %cst_51 = arith.constant dense<0.000000e+00> : vector<8x128xf32>
    %65 = tpu.matmul %63, %64, %cst_51 {dimension_numbers = #tpu.dot_dimension_numbers<[1], [0], [0], [1], [0, 0, 1, 1], [], []>} : vector<8x128xbf16>, vector<128x128xbf16>, vector<8x128xf32> -> vector<8x128xf32>
    %c0_52 = arith.constant 0 : index
    %c0_53 = arith.constant 0 : index
    %66 = vector.load %arg19[%c0_52, %c0_53] : memref<1x128xf32, #tpu.memory_space<vmem>>, vector<1x128xf32>
    %67 = vector.broadcast %66 : vector<1x128xf32> to vector<8x128xf32>
    %68 = arith.addf %65, %67 : vector<8x128xf32>
    %cst_54 = arith.constant 0.000000e+00 : f32
    %69 = vector.broadcast %cst_54 : f32 to vector<8x128xf32>
    %70 = arith.maximumf %68, %69 : vector<8x128xf32>
    %71 = arith.truncf %70 : vector<8x128xf32> to vector<8x128xbf16>
    %c0_55 = arith.constant 0 : index
    %c0_56 = arith.constant 0 : index
    %72 = vector.load %arg20[%c0_55, %c0_56] : memref<128x256xbf16, #tpu.memory_space<vmem>>, vector<128x256xbf16>
    %cst_57 = arith.constant dense<0.000000e+00> : vector<8x256xf32>
    %73 = tpu.matmul %71, %72, %cst_57 {dimension_numbers = #tpu.dot_dimension_numbers<[1], [0], [0], [1], [0, 0, 1, 1], [], []>} : vector<8x128xbf16>, vector<128x256xbf16>, vector<8x256xf32> -> vector<8x256xf32>
    %c0_58 = arith.constant 0 : index
    %c0_59 = arith.constant 0 : index
    %74 = vector.load %arg21[%c0_58, %c0_59] : memref<1x256xf32, #tpu.memory_space<vmem>>, vector<1x256xf32>
    %75 = vector.broadcast %74 : vector<1x256xf32> to vector<8x256xf32>
    %76 = arith.addf %73, %75 : vector<8x256xf32>
    %cst_60 = arith.constant 0.000000e+00 : f32
    %77 = vector.broadcast %cst_60 : f32 to vector<8x256xf32>
    %78 = arith.maximumf %76, %77 : vector<8x256xf32>
    %79 = arith.truncf %78 : vector<8x256xf32> to vector<8x256xbf16>
    %c0_61 = arith.constant 0 : index
    %c0_62 = arith.constant 0 : index
    %80 = vector.load %arg22[%c0_61, %c0_62] : memref<8x256xbf16, #tpu.memory_space<vmem>>, vector<8x256xbf16>
    tpu.vector_store %arg22[%c0_61, %c0_62], %79 {strides = array<i32>} : memref<8x256xbf16, #tpu.memory_space<vmem>>, vector<8x256xbf16>,
    return
  }
  func.func @transform_0(%arg0: i32) -> (i32, i32) {
    %c0_i32 = arith.constant 0 : i32
    %c0_i32_0 = arith.constant 0 : i32
    return %arg0, %c0_i32 : i32, i32
  }
  func.func @transform_1(%arg0: i32) -> (i32, i32) {
    %c0_i32 = arith.constant 0 : i32
    %c0_i32_0 = arith.constant 0 : i32
    %c0_i32_1 = arith.constant 0 : i32
    return %c0_i32, %c0_i32_0 : i32, i32
  }
  func.func @transform_2(%arg0: i32) -> (i32, i32) {
    %c0_i32 = arith.constant 0 : i32
    %c0_i32_0 = arith.constant 0 : i32
    %c0_i32_1 = arith.constant 0 : i32
    return %c0_i32, %c0_i32_0 : i32, i32
  }
  func.func @transform_3(%arg0: i32) -> (i32, i32) {
    %c0_i32 = arith.constant 0 : i32
    %c0_i32_0 = arith.constant 0 : i32
    %c0_i32_1 = arith.constant 0 : i32
    return %c0_i32, %c0_i32_0 : i32, i32
  }
  func.func @transform_4(%arg0: i32) -> (i32, i32) {
    %c0_i32 = arith.constant 0 : i32
    %c0_i32_0 = arith.constant 0 : i32
    %c0_i32_1 = arith.constant 0 : i32
    return %c0_i32, %c0_i32_0 : i32, i32
  }
  func.func @transform_5(%arg0: i32) -> (i32, i32) {
    %c0_i32 = arith.constant 0 : i32
    %c0_i32_0 = arith.constant 0 : i32
    %c0_i32_1 = arith.constant 0 : i32
    return %c0_i32, %c0_i32_0 : i32, i32
  }
  func.func @transform_6(%arg0: i32) -> (i32, i32) {
    %c0_i32 = arith.constant 0 : i32
    %c0_i32_0 = arith.constant 0 : i32
    %c0_i32_1 = arith.constant 0 : i32
    return %c0_i32, %c0_i32_0 : i32, i32
  }
  func.func @transform_7(%arg0: i32) -> (i32, i32) {
    %c0_i32 = arith.constant 0 : i32
    %c0_i32_0 = arith.constant 0 : i32
    %c0_i32_1 = arith.constant 0 : i32
    return %c0_i32, %c0_i32_0 : i32, i32
  }
  func.func @transform_8(%arg0: i32) -> (i32, i32) {
    %c0_i32 = arith.constant 0 : i32
    %c0_i32_0 = arith.constant 0 : i32
    %c0_i32_1 = arith.constant 0 : i32
    return %c0_i32, %c0_i32_0 : i32, i32
  }
  func.func @transform_9(%arg0: i32) -> (i32, i32) {
    %c0_i32 = arith.constant 0 : i32
    %c0_i32_0 = arith.constant 0 : i32
    %c0_i32_1 = arith.constant 0 : i32
    return %c0_i32, %c0_i32_0 : i32, i32
  }
  func.func @transform_10(%arg0: i32) -> (i32, i32) {
    %c0_i32 = arith.constant 0 : i32
    %c0_i32_0 = arith.constant 0 : i32
    %c0_i32_1 = arith.constant 0 : i32
    return %c0_i32, %c0_i32_0 : i32, i32
  }
  func.func @transform_11(%arg0: i32) -> (i32, i32) {
    %c0_i32 = arith.constant 0 : i32
    %c0_i32_0 = arith.constant 0 : i32
    %c0_i32_1 = arith.constant 0 : i32
    return %c0_i32, %c0_i32_0 : i32, i32
  }
  func.func @transform_12(%arg0: i32) -> (i32, i32) {
    %c0_i32 = arith.constant 0 : i32
    %c0_i32_0 = arith.constant 0 : i32
    %c0_i32_1 = arith.constant 0 : i32
    return %c0_i32, %c0_i32_0 : i32, i32
  }
  func.func @transform_13(%arg0: i32) -> (i32, i32) {
    %c0_i32 = arith.constant 0 : i32
    %c0_i32_0 = arith.constant 0 : i32
    %c0_i32_1 = arith.constant 0 : i32
    return %c0_i32, %c0_i32_0 : i32, i32
  }
  func.func @transform_14(%arg0: i32) -> (i32, i32) {
    %c0_i32 = arith.constant 0 : i32
    %c0_i32_0 = arith.constant 0 : i32
    %c0_i32_1 = arith.constant 0 : i32
    return %c0_i32, %c0_i32_0 : i32, i32
  }
  func.func @transform_15(%arg0: i32) -> (i32, i32) {
    %c0_i32 = arith.constant 0 : i32
    %c0_i32_0 = arith.constant 0 : i32
    %c0_i32_1 = arith.constant 0 : i32
    return %c0_i32, %c0_i32_0 : i32, i32
  }
  func.func @transform_16(%arg0: i32) -> (i32, i32) {
    %c0_i32 = arith.constant 0 : i32
    %c0_i32_0 = arith.constant 0 : i32
    %c0_i32_1 = arith.constant 0 : i32
    return %c0_i32, %c0_i32_0 : i32, i32
  }
  func.func @transform_17(%arg0: i32) -> (i32, i32) {
    %c0_i32 = arith.constant 0 : i32
    %c0_i32_0 = arith.constant 0 : i32
    %c0_i32_1 = arith.constant 0 : i32
    return %c0_i32, %c0_i32_0 : i32, i32
  }
  func.func @transform_18(%arg0: i32) -> (i32, i32) {
    %c0_i32 = arith.constant 0 : i32
    %c0_i32_0 = arith.constant 0 : i32
    %c0_i32_1 = arith.constant 0 : i32
    return %c0_i32, %c0_i32_0 : i32, i32
  }
  func.func @transform_19(%arg0: i32) -> (i32, i32) {
    %c0_i32 = arith.constant 0 : i32
    %c0_i32_0 = arith.constant 0 : i32
    %c0_i32_1 = arith.constant 0 : i32
    return %c0_i32, %c0_i32_0 : i32, i32
  }
  func.func @transform_20(%arg0: i32) -> (i32, i32) {
    %c0_i32 = arith.constant 0 : i32
    %c0_i32_0 = arith.constant 0 : i32
    %c0_i32_1 = arith.constant 0 : i32
    return %c0_i32, %c0_i32_0 : i32, i32
  }
  func.func @transform_21(%arg0: i32) -> (i32, i32) {
    %c0_i32 = arith.constant 0 : i32
    %c0_i32_0 = arith.constant 0 : i32
    return %arg0, %c0_i32 : i32, i32
  }
  func.func @transform_22(%arg0: i32) -> (i32, i32) {
    %c0_i32 = arith.constant 0 : i32
    %c0_i32_0 = arith.constant 0 : i32
    return %arg0, %c0_i32 : i32, i32
  }
}

module attributes {stable_mosaic.version = 11 : i64} {
  func.func @_single_ae_kernel(%arg0: i32, %arg1: memref<8x256xbf16, #tpu.memory_space<vmem>>, %arg2: memref<256x128xbf16, #tpu.memory_space<vmem>>, %arg3: memref<1x128xf32, #tpu.memory_space<vmem>>, %arg4: memref<128x128xbf16, #tpu.memory_space<vmem>>, %arg5: memref<1x128xf32, #tpu.memory_space<vmem>>, %arg6: memref<128x128xbf16, #tpu.memory_space<vmem>>, %arg7: memref<1x128xf32, #tpu.memory_space<vmem>>, %arg8: memref<128x128xbf16, #tpu.memory_space<vmem>>, %arg9: memref<1x128xf32, #tpu.memory_space<vmem>>, %arg10: memref<128x128xbf16, #tpu.memory_space<vmem>>, %arg11: memref<1x128xf32, #tpu.memory_space<vmem>>, %arg12: memref<128x128xbf16, #tpu.memory_space<vmem>>, %arg13: memref<1x128xf32, #tpu.memory_space<vmem>>, %arg14: memref<128x128xbf16, #tpu.memory_space<vmem>>, %arg15: memref<1x128xf32, #tpu.memory_space<vmem>>, %arg16: memref<128x128xbf16, #tpu.memory_space<vmem>>, %arg17: memref<1x128xf32, #tpu.memory_space<vmem>>, %arg18: memref<128x128xbf16, #tpu.memory_space<vmem>>, %arg19: memref<1x128xf32, #tpu.memory_space<vmem>>, %arg20: memref<128x256xbf16, #tpu.memory_space<vmem>>, %arg21: memref<1x256xf32, #tpu.memory_space<vmem>>, %arg22: memref<8x256xbf16, #tpu.memory_space<vmem>>, %arg23: memref<8x128xf32, #tpu.memory_space<vmem>>) attributes {dimension_semantics = [#tpu.dimension_semantics<parallel>], iteration_bounds = array<i64: 1>, scalar_prefetch = 0 : i64, scratch_operands = 0 : i64, tpu.core_type = #tpu.core_type<tc>, window_params = [{transform_indices = @transform_0, window_bounds = array<i64: 8, 256>}, {pipeline_mode = #tpu.pipeline_mode<synchronous>, transform_indices = @transform_1, window_bounds = array<i64: 256, 128>}, {pipeline_mode = #tpu.pipeline_mode<synchronous>, transform_indices = @transform_2, window_bounds = array<i64: 1, 128>}, {pipeline_mode = #tpu.pipeline_mode<synchronous>, transform_indices = @transform_3, window_bounds = array<i64: 128, 128>}, {pipeline_mode = #tpu.pipeline_mode<synchronous>, transform_indices = @transform_4, window_bounds = array<i64: 1, 128>}, {pipeline_mode = #tpu.pipeline_mode<synchronous>, transform_indices = @transform_5, window_bounds = array<i64: 128, 128>}, {pipeline_mode = #tpu.pipeline_mode<synchronous>, transform_indices = @transform_6, window_bounds = array<i64: 1, 128>}, {pipeline_mode = #tpu.pipeline_mode<synchronous>, transform_indices = @transform_7, window_bounds = array<i64: 128, 128>}, {pipeline_mode = #tpu.pipeline_mode<synchronous>, transform_indices = @transform_8, window_bounds = array<i64: 1, 128>}, {pipeline_mode = #tpu.pipeline_mode<synchronous>, transform_indices = @transform_9, window_bounds = array<i64: 128, 128>}, {pipeline_mode = #tpu.pipeline_mode<synchronous>, transform_indices = @transform_10, window_bounds = array<i64: 1, 128>}, {pipeline_mode = #tpu.pipeline_mode<synchronous>, transform_indices = @transform_11, window_bounds = array<i64: 128, 128>}, {pipeline_mode = #tpu.pipeline_mode<synchronous>, transform_indices = @transform_12, window_bounds = array<i64: 1, 128>}, {pipeline_mode = #tpu.pipeline_mode<synchronous>, transform_indices = @transform_13, window_bounds = array<i64: 128, 128>}, {pipeline_mode = #tpu.pipeline_mode<synchronous>, transform_indices = @transform_14, window_bounds = array<i64: 1, 128>}, {pipeline_mode = #tpu.pipeline_mode<synchronous>, transform_indices = @transform_15, window_bounds = array<i64: 128, 128>}, {pipeline_mode = #tpu.pipeline_mode<synchronous>, transform_indices = @transform_16, window_bounds = array<i64: 1, 128>}, {pipeline_mode = #tpu.pipeline_mode<synchronous>, transform_indices = @transform_17, window_bounds = array<i64: 128, 128>}, {pipeline_mode = #tpu.pipeline_mode<synchronous>, transform_indices = @transform_18, window_bounds = array<i64: 1, 128>}, {pipeline_mode = #tpu.pipeline_mode<synchronous>, transform_indices = @transform_19, window_bounds = array<i64: 128, 256>}, {pipeline_mode = #tpu.pipeline_mode<synchronous>, transform_indices = @transform_20, window_bounds = array<i64: 1, 256>}, {transform_indices = @transform_21, window_bounds = array<i64: 8, 256>}, {transform_indices = @transform_22, window_bounds = array<i64: 8, 128>}]} {
    %c0 = arith.constant 0 : index
    %c0_0 = arith.constant 0 : index
    %0 = vector.load %arg1[%c0, %c0_0] : memref<8x256xbf16, #tpu.memory_space<vmem>>, vector<8x256xbf16>
    %c0_1 = arith.constant 0 : index
    %c0_2 = arith.constant 0 : index
    %1 = vector.load %arg2[%c0_1, %c0_2] : memref<256x128xbf16, #tpu.memory_space<vmem>>, vector<256x128xbf16>
    %cst = arith.constant dense<0.000000e+00> : vector<8x128xf32>
    %2 = tpu.matmul %0, %1, %cst {dimension_numbers = #tpu.dot_dimension_numbers<[1], [0], [0], [1], [0, 0, 1, 1], [], []>} : vector<8x256xbf16>, vector<256x128xbf16>, vector<8x128xf32> -> vector<8x128xf32>
    %c0_3 = arith.constant 0 : index
    %c0_4 = arith.constant 0 : index
    %3 = vector.load %arg3[%c0_3, %c0_4] : memref<1x128xf32, #tpu.memory_space<vmem>>, vector<1x128xf32>
    %4 = vector.broadcast %3 : vector<1x128xf32> to vector<8x128xf32>
    %5 = arith.addf %2, %4 : vector<8x128xf32>
    %cst_5 = arith.constant 0.000000e+00 : f32
    %6 = vector.broadcast %cst_5 : f32 to vector<8x128xf32>
    %7 = arith.maximumf %5, %6 : vector<8x128xf32>
    %8 = arith.truncf %7 : vector<8x128xf32> to vector<8x128xbf16>
    %c0_6 = arith.constant 0 : index
    %c0_7 = arith.constant 0 : index
    %9 = vector.load %arg4[%c0_6, %c0_7] : memref<128x128xbf16, #tpu.memory_space<vmem>>, vector<128x128xbf16>
    %cst_8 = arith.constant dense<0.000000e+00> : vector<8x128xf32>
    %10 = tpu.matmul %8, %9, %cst_8 {dimension_numbers = #tpu.dot_dimension_numbers<[1], [0], [0], [1], [0, 0, 1, 1], [], []>} : vector<8x128xbf16>, vector<128x128xbf16>, vector<8x128xf32> -> vector<8x128xf32>
    %c0_9 = arith.constant 0 : index
    %c0_10 = arith.constant 0 : index
    %11 = vector.load %arg5[%c0_9, %c0_10] : memref<1x128xf32, #tpu.memory_space<vmem>>, vector<1x128xf32>
    %12 = vector.broadcast %11 : vector<1x128xf32> to vector<8x128xf32>
    %13 = arith.addf %10, %12 : vector<8x128xf32>
    %cst_11 = arith.constant 0.000000e+00 : f32
    %14 = vector.broadcast %cst_11 : f32 to vector<8x128xf32>
    %15 = arith.maximumf %13, %14 : vector<8x128xf32>
    %16 = arith.truncf %15 : vector<8x128xf32> to vector<8x128xbf16>
    %c0_12 = arith.constant 0 : index
    %c0_13 = arith.constant 0 : index
    %17 = vector.load %arg6[%c0_12, %c0_13] : memref<128x128xbf16, #tpu.memory_space<vmem>>, vector<128x128xbf16>
    %cst_14 = arith.constant dense<0.000000e+00> : vector<8x128xf32>
    %18 = tpu.matmul %16, %17, %cst_14 {dimension_numbers = #tpu.dot_dimension_numbers<[1], [0], [0], [1], [0, 0, 1, 1], [], []>} : vector<8x128xbf16>, vector<128x128xbf16>, vector<8x128xf32> -> vector<8x128xf32>
    %c0_15 = arith.constant 0 : index
    %c0_16 = arith.constant 0 : index
    %19 = vector.load %arg7[%c0_15, %c0_16] : memref<1x128xf32, #tpu.memory_space<vmem>>, vector<1x128xf32>
    %20 = vector.broadcast %19 : vector<1x128xf32> to vector<8x128xf32>
    %21 = arith.addf %18, %20 : vector<8x128xf32>
    %cst_17 = arith.constant 0.000000e+00 : f32
    %22 = vector.broadcast %cst_17 : f32 to vector<8x128xf32>
    %23 = arith.maximumf %21, %22 : vector<8x128xf32>
    %24 = arith.truncf %23 : vector<8x128xf32> to vector<8x128xbf16>
    %c0_18 = arith.constant 0 : index
    %c0_19 = arith.constant 0 : index
    %25 = vector.load %arg8[%c0_18, %c0_19] : memref<128x128xbf16, #tpu.memory_space<vmem>>, vector<128x128xbf16>
    %cst_20 = arith.constant dense<0.000000e+00> : vector<8x128xf32>
    %26 = tpu.matmul %24, %25, %cst_20 {dimension_numbers = #tpu.dot_dimension_numbers<[1], [0], [0], [1], [0, 0, 1, 1], [], []>} : vector<8x128xbf16>, vector<128x128xbf16>, vector<8x128xf32> -> vector<8x128xf32>
    %c0_21 = arith.constant 0 : index
    %c0_22 = arith.constant 0 : index
    %27 = vector.load %arg9[%c0_21, %c0_22] : memref<1x128xf32, #tpu.memory_space<vmem>>, vector<1x128xf32>
    %28 = vector.broadcast %27 : vector<1x128xf32> to vector<8x128xf32>
    %29 = arith.addf %26, %28 : vector<8x128xf32>
    %cst_23 = arith.constant 0.000000e+00 : f32
    %30 = vector.broadcast %cst_23 : f32 to vector<8x128xf32>
    %31 = arith.maximumf %29, %30 : vector<8x128xf32>
    %32 = arith.truncf %31 : vector<8x128xf32> to vector<8x128xbf16>
    %c0_24 = arith.constant 0 : index
    %c0_25 = arith.constant 0 : index
    %33 = vector.load %arg10[%c0_24, %c0_25] : memref<128x128xbf16, #tpu.memory_space<vmem>>, vector<128x128xbf16>
    %cst_26 = arith.constant dense<0.000000e+00> : vector<8x128xf32>
    %34 = tpu.matmul %32, %33, %cst_26 {dimension_numbers = #tpu.dot_dimension_numbers<[1], [0], [0], [1], [0, 0, 1, 1], [], []>} : vector<8x128xbf16>, vector<128x128xbf16>, vector<8x128xf32> -> vector<8x128xf32>
    %c0_27 = arith.constant 0 : index
    %c0_28 = arith.constant 0 : index
    %35 = vector.load %arg11[%c0_27, %c0_28] : memref<1x128xf32, #tpu.memory_space<vmem>>, vector<1x128xf32>
    %36 = vector.broadcast %35 : vector<1x128xf32> to vector<8x128xf32>
    %37 = arith.addf %34, %36 : vector<8x128xf32>
    %c0_29 = arith.constant 0 : index
    %c0_30 = arith.constant 0 : index
    %38 = vector.load %arg23[%c0_29, %c0_30] : memref<8x128xf32, #tpu.memory_space<vmem>>, vector<8x128xf32>
    tpu.vector_store %arg23[%c0_29, %c0_30], %37 {strides = array<i32>} : memref<8x128xf32, #tpu.memory_space<vmem>>, vector<8x128xf32>,
    %39 = arith.truncf %37 : vector<8x128xf32> to vector<8x128xbf16>
    %c0_31 = arith.constant 0 : index
    %c0_32 = arith.constant 0 : index
    %40 = vector.load %arg12[%c0_31, %c0_32] : memref<128x128xbf16, #tpu.memory_space<vmem>>, vector<128x128xbf16>
    %cst_33 = arith.constant dense<0.000000e+00> : vector<8x128xf32>
    %41 = tpu.matmul %39, %40, %cst_33 {dimension_numbers = #tpu.dot_dimension_numbers<[1], [0], [0], [1], [0, 0, 1, 1], [], []>} : vector<8x128xbf16>, vector<128x128xbf16>, vector<8x128xf32> -> vector<8x128xf32>
    %c0_34 = arith.constant 0 : index
    %c0_35 = arith.constant 0 : index
    %42 = vector.load %arg13[%c0_34, %c0_35] : memref<1x128xf32, #tpu.memory_space<vmem>>, vector<1x128xf32>
    %43 = vector.broadcast %42 : vector<1x128xf32> to vector<8x128xf32>
    %44 = arith.addf %41, %43 : vector<8x128xf32>
    %cst_36 = arith.constant 0.000000e+00 : f32
    %45 = vector.broadcast %cst_36 : f32 to vector<8x128xf32>
    %46 = arith.maximumf %44, %45 : vector<8x128xf32>
    %47 = arith.truncf %46 : vector<8x128xf32> to vector<8x128xbf16>
    %c0_37 = arith.constant 0 : index
    %c0_38 = arith.constant 0 : index
    %48 = vector.load %arg14[%c0_37, %c0_38] : memref<128x128xbf16, #tpu.memory_space<vmem>>, vector<128x128xbf16>
    %cst_39 = arith.constant dense<0.000000e+00> : vector<8x128xf32>
    %49 = tpu.matmul %47, %48, %cst_39 {dimension_numbers = #tpu.dot_dimension_numbers<[1], [0], [0], [1], [0, 0, 1, 1], [], []>} : vector<8x128xbf16>, vector<128x128xbf16>, vector<8x128xf32> -> vector<8x128xf32>
    %c0_40 = arith.constant 0 : index
    %c0_41 = arith.constant 0 : index
    %50 = vector.load %arg15[%c0_40, %c0_41] : memref<1x128xf32, #tpu.memory_space<vmem>>, vector<1x128xf32>
    %51 = vector.broadcast %50 : vector<1x128xf32> to vector<8x128xf32>
    %52 = arith.addf %49, %51 : vector<8x128xf32>
    %cst_42 = arith.constant 0.000000e+00 : f32
    %53 = vector.broadcast %cst_42 : f32 to vector<8x128xf32>
    %54 = arith.maximumf %52, %53 : vector<8x128xf32>
    %55 = arith.truncf %54 : vector<8x128xf32> to vector<8x128xbf16>
    %c0_43 = arith.constant 0 : index
    %c0_44 = arith.constant 0 : index
    %56 = vector.load %arg16[%c0_43, %c0_44] : memref<128x128xbf16, #tpu.memory_space<vmem>>, vector<128x128xbf16>
    %cst_45 = arith.constant dense<0.000000e+00> : vector<8x128xf32>
    %57 = tpu.matmul %55, %56, %cst_45 {dimension_numbers = #tpu.dot_dimension_numbers<[1], [0], [0], [1], [0, 0, 1, 1], [], []>} : vector<8x128xbf16>, vector<128x128xbf16>, vector<8x128xf32> -> vector<8x128xf32>
    %c0_46 = arith.constant 0 : index
    %c0_47 = arith.constant 0 : index
    %58 = vector.load %arg17[%c0_46, %c0_47] : memref<1x128xf32, #tpu.memory_space<vmem>>, vector<1x128xf32>
    %59 = vector.broadcast %58 : vector<1x128xf32> to vector<8x128xf32>
    %60 = arith.addf %57, %59 : vector<8x128xf32>
    %cst_48 = arith.constant 0.000000e+00 : f32
    %61 = vector.broadcast %cst_48 : f32 to vector<8x128xf32>
    %62 = arith.maximumf %60, %61 : vector<8x128xf32>
    %63 = arith.truncf %62 : vector<8x128xf32> to vector<8x128xbf16>
    %c0_49 = arith.constant 0 : index
    %c0_50 = arith.constant 0 : index
    %64 = vector.load %arg18[%c0_49, %c0_50] : memref<128x128xbf16, #tpu.memory_space<vmem>>, vector<128x128xbf16>
    %cst_51 = arith.constant dense<0.000000e+00> : vector<8x128xf32>
    %65 = tpu.matmul %63, %64, %cst_51 {dimension_numbers = #tpu.dot_dimension_numbers<[1], [0], [0], [1], [0, 0, 1, 1], [], []>} : vector<8x128xbf16>, vector<128x128xbf16>, vector<8x128xf32> -> vector<8x128xf32>
    %c0_52 = arith.constant 0 : index
    %c0_53 = arith.constant 0 : index
    %66 = vector.load %arg19[%c0_52, %c0_53] : memref<1x128xf32, #tpu.memory_space<vmem>>, vector<1x128xf32>
    %67 = vector.broadcast %66 : vector<1x128xf32> to vector<8x128xf32>
    %68 = arith.addf %65, %67 : vector<8x128xf32>
    %cst_54 = arith.constant 0.000000e+00 : f32
    %69 = vector.broadcast %cst_54 : f32 to vector<8x128xf32>
    %70 = arith.maximumf %68, %69 : vector<8x128xf32>
    %71 = arith.truncf %70 : vector<8x128xf32> to vector<8x128xbf16>
    %c0_55 = arith.constant 0 : index
    %c0_56 = arith.constant 0 : index
    %72 = vector.load %arg20[%c0_55, %c0_56] : memref<128x256xbf16, #tpu.memory_space<vmem>>, vector<128x256xbf16>
    %cst_57 = arith.constant dense<0.000000e+00> : vector<8x256xf32>
    %73 = tpu.matmul %71, %72, %cst_57 {dimension_numbers = #tpu.dot_dimension_numbers<[1], [0], [0], [1], [0, 0, 1, 1], [], []>} : vector<8x128xbf16>, vector<128x256xbf16>, vector<8x256xf32> -> vector<8x256xf32>
    %c0_58 = arith.constant 0 : index
    %c0_59 = arith.constant 0 : index
    %74 = vector.load %arg21[%c0_58, %c0_59] : memref<1x256xf32, #tpu.memory_space<vmem>>, vector<1x256xf32>
    %75 = vector.broadcast %74 : vector<1x256xf32> to vector<8x256xf32>
    %76 = arith.addf %73, %75 : vector<8x256xf32>
    %cst_60 = arith.constant 0.000000e+00 : f32
    %77 = vector.broadcast %cst_60 : f32 to vector<8x256xf32>
    %78 = arith.maximumf %76, %77 : vector<8x256xf32>
    %79 = arith.truncf %78 : vector<8x256xf32> to vector<8x256xbf16>
    %c0_61 = arith.constant 0 : index
    %c0_62 = arith.constant 0 : index
    %80 = vector.load %arg22[%c0_61, %c0_62] : memref<8x256xbf16, #tpu.memory_space<vmem>>, vector<8x256xbf16>
    tpu.vector_store %arg22[%c0_61, %c0_62], %79 {strides = array<i32>} : memref<8x256xbf16, #tpu.memory_space<vmem>>, vector<8x256xbf16>,
    return
  }
  func.func @transform_0(%arg0: i32) -> (i32, i32) {
    %c0_i32 = arith.constant 0 : i32
    %c0_i32_0 = arith.constant 0 : i32
    return %arg0, %c0_i32 : i32, i32
  }
  func.func @transform_1(%arg0: i32) -> (i32, i32) {
    %c0_i32 = arith.constant 0 : i32
    %c0_i32_0 = arith.constant 0 : i32
    %c0_i32_1 = arith.constant 0 : i32
    return %c0_i32, %c0_i32_0 : i32, i32
  }
  func.func @transform_2(%arg0: i32) -> (i32, i32) {
    %c0_i32 = arith.constant 0 : i32
    %c0_i32_0 = arith.constant 0 : i32
    %c0_i32_1 = arith.constant 0 : i32
    return %c0_i32, %c0_i32_0 : i32, i32
  }
  func.func @transform_3(%arg0: i32) -> (i32, i32) {
    %c0_i32 = arith.constant 0 : i32
    %c0_i32_0 = arith.constant 0 : i32
    %c0_i32_1 = arith.constant 0 : i32
    return %c0_i32, %c0_i32_0 : i32, i32
  }
  func.func @transform_4(%arg0: i32) -> (i32, i32) {
    %c0_i32 = arith.constant 0 : i32
    %c0_i32_0 = arith.constant 0 : i32
    %c0_i32_1 = arith.constant 0 : i32
    return %c0_i32, %c0_i32_0 : i32, i32
  }
  func.func @transform_5(%arg0: i32) -> (i32, i32) {
    %c0_i32 = arith.constant 0 : i32
    %c0_i32_0 = arith.constant 0 : i32
    %c0_i32_1 = arith.constant 0 : i32
    return %c0_i32, %c0_i32_0 : i32, i32
  }
  func.func @transform_6(%arg0: i32) -> (i32, i32) {
    %c0_i32 = arith.constant 0 : i32
    %c0_i32_0 = arith.constant 0 : i32
    %c0_i32_1 = arith.constant 0 : i32
    return %c0_i32, %c0_i32_0 : i32, i32
  }
  func.func @transform_7(%arg0: i32) -> (i32, i32) {
    %c0_i32 = arith.constant 0 : i32
    %c0_i32_0 = arith.constant 0 : i32
    %c0_i32_1 = arith.constant 0 : i32
    return %c0_i32, %c0_i32_0 : i32, i32
  }
  func.func @transform_8(%arg0: i32) -> (i32, i32) {
    %c0_i32 = arith.constant 0 : i32
    %c0_i32_0 = arith.constant 0 : i32
    %c0_i32_1 = arith.constant 0 : i32
    return %c0_i32, %c0_i32_0 : i32, i32
  }
  func.func @transform_9(%arg0: i32) -> (i32, i32) {
    %c0_i32 = arith.constant 0 : i32
    %c0_i32_0 = arith.constant 0 : i32
    %c0_i32_1 = arith.constant 0 : i32
    return %c0_i32, %c0_i32_0 : i32, i32
  }
  func.func @transform_10(%arg0: i32) -> (i32, i32) {
    %c0_i32 = arith.constant 0 : i32
    %c0_i32_0 = arith.constant 0 : i32
    %c0_i32_1 = arith.constant 0 : i32
    return %c0_i32, %c0_i32_0 : i32, i32
  }
  func.func @transform_11(%arg0: i32) -> (i32, i32) {
    %c0_i32 = arith.constant 0 : i32
    %c0_i32_0 = arith.constant 0 : i32
    %c0_i32_1 = arith.constant 0 : i32
    return %c0_i32, %c0_i32_0 : i32, i32
  }
  func.func @transform_12(%arg0: i32) -> (i32, i32) {
    %c0_i32 = arith.constant 0 : i32
    %c0_i32_0 = arith.constant 0 : i32
    %c0_i32_1 = arith.constant 0 : i32
    return %c0_i32, %c0_i32_0 : i32, i32
  }
  func.func @transform_13(%arg0: i32) -> (i32, i32) {
    %c0_i32 = arith.constant 0 : i32
    %c0_i32_0 = arith.constant 0 : i32
    %c0_i32_1 = arith.constant 0 : i32
    return %c0_i32, %c0_i32_0 : i32, i32
  }
  func.func @transform_14(%arg0: i32) -> (i32, i32) {
    %c0_i32 = arith.constant 0 : i32
    %c0_i32_0 = arith.constant 0 : i32
    %c0_i32_1 = arith.constant 0 : i32
    return %c0_i32, %c0_i32_0 : i32, i32
  }
  func.func @transform_15(%arg0: i32) -> (i32, i32) {
    %c0_i32 = arith.constant 0 : i32
    %c0_i32_0 = arith.constant 0 : i32
    %c0_i32_1 = arith.constant 0 : i32
    return %c0_i32, %c0_i32_0 : i32, i32
  }
  func.func @transform_16(%arg0: i32) -> (i32, i32) {
    %c0_i32 = arith.constant 0 : i32
    %c0_i32_0 = arith.constant 0 : i32
    %c0_i32_1 = arith.constant 0 : i32
    return %c0_i32, %c0_i32_0 : i32, i32
  }
  func.func @transform_17(%arg0: i32) -> (i32, i32) {
    %c0_i32 = arith.constant 0 : i32
    %c0_i32_0 = arith.constant 0 : i32
    %c0_i32_1 = arith.constant 0 : i32
    return %c0_i32, %c0_i32_0 : i32, i32
  }
  func.func @transform_18(%arg0: i32) -> (i32, i32) {
    %c0_i32 = arith.constant 0 : i32
    %c0_i32_0 = arith.constant 0 : i32
    %c0_i32_1 = arith.constant 0 : i32
    return %c0_i32, %c0_i32_0 : i32, i32
  }
  func.func @transform_19(%arg0: i32) -> (i32, i32) {
    %c0_i32 = arith.constant 0 : i32
    %c0_i32_0 = arith.constant 0 : i32
    %c0_i32_1 = arith.constant 0 : i32
    return %c0_i32, %c0_i32_0 : i32, i32
  }
  func.func @transform_20(%arg0: i32) -> (i32, i32) {
    %c0_i32 = arith.constant 0 : i32
    %c0_i32_0 = arith.constant 0 : i32
    %c0_i32_1 = arith.constant 0 : i32
    return %c0_i32, %c0_i32_0 : i32, i32
  }
  func.func @transform_21(%arg0: i32) -> (i32, i32) {
    %c0_i32 = arith.constant 0 : i32
    %c0_i32_0 = arith.constant 0 : i32
    return %arg0, %c0_i32 : i32, i32
  }
  func.func @transform_22(%arg0: i32) -> (i32, i32) {
    %c0_i32 = arith.constant 0 : i32
    %c0_i32_0 = arith.constant 0 : i32
    return %arg0, %c0_i32 : i32, i32
  }
}

</mosaic_0001>

<llo_original>
// kernel: tpu_custom_call.1
$region0: #{tpu_custom_call.1}
  #allocation0 [shape = 'u32[]', space=smem, size = 0x4, offset = 0x4, fixed_abs, tag = 'smem constant byte address 0x4 - core index']
  #allocation1 [shape = 'u32[144,128]{1,0:T(1,128)}', space=vmem, size = 0x12000, scoped, tag = 'internal scratch']
  %s0 = inlined_call_operand.hbm [shape: bf16[8,256], index: 0, kind: input, shape index: {}]
  %s1 = inlined_call_operand.hbm [shape: bf16[256,128], index: 1, kind: input, shape index: {}]
  %s2 = inlined_call_operand.hbm [shape: f32[1,128], index: 2, kind: input, shape index: {}]
  %s3 = inlined_call_operand.hbm [shape: bf16[128,128], index: 3, kind: input, shape index: {}]
  %s4 = inlined_call_operand.hbm [shape: f32[1,128], index: 4, kind: input, shape index: {}]
  %s5 = inlined_call_operand.hbm [shape: bf16[128,128], index: 5, kind: input, shape index: {}]
  %s6 = inlined_call_operand.hbm [shape: f32[1,128], index: 6, kind: input, shape index: {}]
  %s7 = inlined_call_operand.hbm [shape: bf16[128,128], index: 7, kind: input, shape index: {}]
  %s8 = inlined_call_operand.hbm [shape: f32[1,128], index: 8, kind: input, shape index: {}]
  %s9 = inlined_call_operand.hbm [shape: bf16[128,128], index: 9, kind: input, shape index: {}]
  %s10 = inlined_call_operand.hbm [shape: f32[1,128], index: 10, kind: input, shape index: {}]
  %s11 = inlined_call_operand.hbm [shape: bf16[128,128], index: 11, kind: input, shape index: {}]
  %s12 = inlined_call_operand.hbm [shape: f32[1,128], index: 12, kind: input, shape index: {}]
  %s13 = inlined_call_operand.hbm [shape: bf16[128,128], index: 13, kind: input, shape index: {}]
  %s14 = inlined_call_operand.hbm [shape: f32[1,128], index: 14, kind: input, shape index: {}]
  %s15 = inlined_call_operand.hbm [shape: bf16[128,128], index: 15, kind: input, shape index: {}]
  %s16 = inlined_call_operand.hbm [shape: f32[1,128], index: 16, kind: input, shape index: {}]
  %s17 = inlined_call_operand.vmem [shape: bf16[128,128], index: 17, kind: input, shape index: {}]
  %s18 = inlined_call_operand.vmem [shape: f32[1,128], index: 18, kind: input, shape index: {}]
  %s19 = inlined_call_operand.hbm [shape: bf16[128,256], index: 19, kind: input, shape index: {}]
  %s20 = inlined_call_operand.vmem [shape: f32[1,256], index: 20, kind: input, shape index: {}]
  %s21 = inlined_call_operand.hbm [shape: bf16[8,256], index: 21, kind: output, shape index: {0}]
  %s22 = inlined_call_operand.hbm [shape: f32[8,128], index: 22, kind: output, shape index: {1}]
  %23 = xla_tuple %s21, %s22
  %s24 = sld [smem:[#allocation0]]
  $region174: #{tpu_custom_call.1} parent=0
    _
  %s26 = ssub.s32 1, %s24
  %s27 = scalar_select 0, %s26, %s24
  $region1: #{tpu_custom_call.1} parent=0
    #allocation2 [shape = 'u8[4096]{0}', space=vmem, size = 0x1000, scoped, tag = 'input window, operand 0, single buffered']
    #allocation3 [shape = 's32[1]{0}', space=sflag, size = 0x4, scoped, tag = 'scoped memory for tpu_custom_call.1']
    #allocation4 [shape = 's32[1]{0}', space=sflag, size = 0x4, scoped, tag = 'scoped memory for tpu_custom_call.1']
    #allocation5 [shape = 'u8[65536]{0}', space=vmem, size = 0x10000, scoped, tag = 'input window, operand 1, single buffered']
    #allocation6 [shape = 's32[1]{0}', space=sflag, size = 0x4, scoped, tag = 'scoped memory for tpu_custom_call.1']
    #allocation7 [shape = 'u8[512]{0}', space=vmem, size = 0x400, scoped, tag = 'input window, operand 2, single buffered']
    #allocation8 [shape = 'u8[32768]{0}', space=vmem, size = 0x8000, scoped, tag = 'input window, operand 3, single buffered']
    #allocation9 [shape = 's32[1]{0}', space=sflag, size = 0x4, scoped, tag = 'scoped memory for tpu_custom_call.1']
    #allocation10 [shape = 'u8[512]{0}', space=vmem, size = 0x400, scoped, tag = 'input window, operand 4, single buffered']
    #allocation11 [shape = 'u8[32768]{0}', space=vmem, size = 0x8000, scoped, tag = 'input window, operand 5, single buffered']
    #allocation12 [shape = 's32[1]{0}', space=sflag, size = 0x4, scoped, tag = 'scoped memory for tpu_custom_call.1']
    #allocation13 [shape = 'u8[512]{0}', space=vmem, size = 0x400, scoped, tag = 'input window, operand 6, single buffered']
    #allocation14 [shape = 'u8[32768]{0}', space=vmem, size = 0x8000, scoped, tag = 'input window, operand 7, single buffered']
    #allocation15 [shape = 's32[1]{0}', space=sflag, size = 0x4, scoped, tag = 'scoped memory for tpu_custom_call.1']
    #allocation16 [shape = 'u8[512]{0}', space=vmem, size = 0x400, scoped, tag = 'input window, operand 8, single buffered']
    #allocation17 [shape = 'u8[32768]{0}', space=vmem, size = 0x8000, scoped, tag = 'input window, operand 9, single buffered']
    #allocation18 [shape = 's32[1]{0}', space=sflag, size = 0x4, scoped, tag = 'scoped memory for tpu_custom_call.1']
    #allocation19 [shape = 'u8[512]{0}', space=vmem, size = 0x400, scoped, tag = 'input window, operand 10, single buffered']
    #allocation20 [shape = 'u8[32768]{0}', space=vmem, size = 0x8000, scoped, tag = 'input window, operand 11, single buffered']
    #allocation21 [shape = 's32[1]{0}', space=sflag, size = 0x4, scoped, tag = 'scoped memory for tpu_custom_call.1']
    #allocation22 [shape = 'u8[512]{0}', space=vmem, size = 0x400, scoped, tag = 'input window, operand 12, single buffered']
    #allocation23 [shape = 'u8[32768]{0}', space=vmem, size = 0x8000, scoped, tag = 'input window, operand 13, single buffered']
    #allocation24 [shape = 's32[1]{0}', space=sflag, size = 0x4, scoped, tag = 'scoped memory for tpu_custom_call.1']
    #allocation25 [shape = 'u8[512]{0}', space=vmem, size = 0x400, scoped, tag = 'input window, operand 14, single buffered']
    #allocation26 [shape = 'u8[32768]{0}', space=vmem, size = 0x8000, scoped, tag = 'input window, operand 15, single buffered']
    #allocation27 [shape = 's32[1]{0}', space=sflag, size = 0x4, scoped, tag = 'scoped memory for tpu_custom_call.1']
    #allocation28 [shape = 'u8[512]{0}', space=vmem, size = 0x400, scoped, tag = 'input window, operand 16, single buffered']
    #allocation29 [shape = 'u8[65536]{0}', space=vmem, size = 0x10000, scoped, tag = 'input window, operand 19, single buffered']
    #allocation30 [shape = 's32[1]{0}', space=sflag, size = 0x4, scoped, tag = 'scoped memory for tpu_custom_call.1']
    #allocation31 [shape = 'u8[4096]{0}', space=vmem, size = 0x1000, scoped, tag = 'output window, operand 0, single buffered']
    #allocation32 [shape = 'u8[4096]{0}', space=vmem, size = 0x1000, scoped, tag = 'output window, operand 1, single buffered']
    #allocation33 [shape = 's32[1]{0}', space=sflag, size = 0x4, scoped, tag = 'scoped memory for tpu_custom_call.1']
    %28 = vsyncpa [#allocation3], 0
    %29 = vsyncpa [#allocation6], 0
    %30 = vsyncpa [#allocation9], 0
    %31 = vsyncpa [#allocation12], 0
    %32 = vsyncpa [#allocation15], 0
    %33 = vsyncpa [#allocation18], 0
    %34 = vsyncpa [#allocation21], 0
    %35 = vsyncpa [#allocation24], 0
    %36 = vsyncpa [#allocation27], 0
    %37 = vsyncpa [#allocation30], 0
    %38 = vsyncpa [#allocation4], 0
    %39 = vsyncpa [#allocation33], 0
    // Predicated region
    $region2: #{tpu_custom_call.1} parent=1 // pred_check
      _
    $region3: #{tpu_custom_call.1} parent=1 // pred_check_branch
      %41 = sbr.rel (0) target = $region5
    $region4: #{tpu_custom_call.1} parent=1 // pred_region
      %s43 = ssub.s32 128, 128
      %44 = vsyncadd [#allocation3], %s43
      %s46 = sshll.u32 [#allocation2], 4
      %s47 = int_to_ptr.vmem [resolvable:$true] %s46
      %49 = dma.hbm_to_vmem [thread:$0]  %s0, 128, %s47, [#allocation3]
    $region5: #{tpu_custom_call.1} parent=1 // pred_fallthru
      _
    // Predicated region
    $region6: #{tpu_custom_call.1} parent=1 // pred_check
      _
    $region7: #{tpu_custom_call.1} parent=1 // pred_check_branch
      %51 = sbr.rel (0) target = $region9
    $region8: #{tpu_custom_call.1} parent=1 // pred_region
      %s53 = ssub.s32 2048, 2048
      %54 = vsyncadd [#allocation6], %s53
      %s55 = sshll.u32 [#allocation5], 4
      %s56 = int_to_ptr.vmem [resolvable:$true] %s55
      %61 = dma.hbm_to_vmem [thread:$0]  %s1, 2048, %s56, [#allocation6], 64, 64, 4
    $region9: #{tpu_custom_call.1} parent=1 // pred_fallthru
      _
    // Predicated region
    $region10: #{tpu_custom_call.1} parent=1 // pred_check
      _
    $region11: #{tpu_custom_call.1} parent=1 // pred_check_branch
      %63 = sbr.rel (0) target = $region13
    $region12: #{tpu_custom_call.1} parent=1 // pred_region
      %s65 = ssub.s32 16, 16
      %66 = vsyncadd [#allocation6], %s65
      %s68 = sshll.u32 [#allocation7], 4
      %s69 = int_to_ptr.vmem [resolvable:$true] %s68
      %71 = dma.hbm_to_vmem [thread:$0]  %s2, 16, %s69, [#allocation6]
    $region13: #{tpu_custom_call.1} parent=1 // pred_fallthru
      _
    // Predicated region
    $region14: #{tpu_custom_call.1} parent=1 // pred_check
      _
    $region15: #{tpu_custom_call.1} parent=1 // pred_check_branch
      %73 = sbr.rel (0) target = $region17
    $region16: #{tpu_custom_call.1} parent=1 // pred_region
      %s75 = ssub.s32 1024, 1024
      %76 = vsyncadd [#allocation9], %s75
      %s77 = sshll.u32 [#allocation8], 4
      %s78 = int_to_ptr.vmem [resolvable:$true] %s77
      %83 = dma.hbm_to_vmem [thread:$0]  %s3, 1024, %s78, [#allocation9], 64, 64, 4
    $region17: #{tpu_custom_call.1} parent=1 // pred_fallthru
      _
    // Predicated region
    $region18: #{tpu_custom_call.1} parent=1 // pred_check
      _
    $region19: #{tpu_custom_call.1} parent=1 // pred_check_branch
      %85 = sbr.rel (0) target = $region21
    $region20: #{tpu_custom_call.1} parent=1 // pred_region
      %s87 = ssub.s32 16, 16
      %88 = vsyncadd [#allocation9], %s87
      %s90 = sshll.u32 [#allocation10], 4
      %s91 = int_to_ptr.vmem [resolvable:$true] %s90
      %93 = dma.hbm_to_vmem [thread:$0]  %s4, 16, %s91, [#allocation9]
    $region21: #{tpu_custom_call.1} parent=1 // pred_fallthru
      _
    // Predicated region
    $region22: #{tpu_custom_call.1} parent=1 // pred_check
      _
    $region23: #{tpu_custom_call.1} parent=1 // pred_check_branch
      %95 = sbr.rel (0) target = $region25
    $region24: #{tpu_custom_call.1} parent=1 // pred_region
      %s97 = ssub.s32 1024, 1024
      %98 = vsyncadd [#allocation12], %s97
      %s99 = sshll.u32 [#allocation11], 4
      %s100 = int_to_ptr.vmem [resolvable:$true] %s99
      %105 = dma.hbm_to_vmem [thread:$0]  %s5, 1024, %s100, [#allocation12], 64, 64, 4
    $region25: #{tpu_custom_call.1} parent=1 // pred_fallthru
      _
    // Predicated region
    $region26: #{tpu_custom_call.1} parent=1 // pred_check
      _
    $region27: #{tpu_custom_call.1} parent=1 // pred_check_branch
      %107 = sbr.rel (0) target = $region29
    $region28: #{tpu_custom_call.1} parent=1 // pred_region
      %s109 = ssub.s32 16, 16
      %110 = vsyncadd [#allocation12], %s109
      %s112 = sshll.u32 [#allocation13], 4
      %s113 = int_to_ptr.vmem [resolvable:$true] %s112
      %115 = dma.hbm_to_vmem [thread:$0]  %s6, 16, %s113, [#allocation12]
    $region29: #{tpu_custom_call.1} parent=1 // pred_fallthru
      _
    // Predicated region
    $region30: #{tpu_custom_call.1} parent=1 // pred_check
      _
    $region31: #{tpu_custom_call.1} parent=1 // pred_check_branch
      %117 = sbr.rel (0) target = $region33
    $region32: #{tpu_custom_call.1} parent=1 // pred_region
      %s119 = ssub.s32 1024, 1024
      %120 = vsyncadd [#allocation15], %s119
      %s121 = sshll.u32 [#allocation14], 4
      %s122 = int_to_ptr.vmem [resolvable:$true] %s121
      %127 = dma.hbm_to_vmem [thread:$0]  %s7, 1024, %s122, [#allocation15], 64, 64, 4
    $region33: #{tpu_custom_call.1} parent=1 // pred_fallthru
      _
    // Predicated region
    $region34: #{tpu_custom_call.1} parent=1 // pred_check
      _
    $region35: #{tpu_custom_call.1} parent=1 // pred_check_branch
      %129 = sbr.rel (0) target = $region37
    $region36: #{tpu_custom_call.1} parent=1 // pred_region
      %s131 = ssub.s32 16, 16
      %132 = vsyncadd [#allocation15], %s131
      %s134 = sshll.u32 [#allocation16], 4
      %s135 = int_to_ptr.vmem [resolvable:$true] %s134
      %137 = dma.hbm_to_vmem [thread:$0]  %s8, 16, %s135, [#allocation15]
    $region37: #{tpu_custom_call.1} parent=1 // pred_fallthru
      _
    // Predicated region
    $region38: #{tpu_custom_call.1} parent=1 // pred_check
      _
    $region39: #{tpu_custom_call.1} parent=1 // pred_check_branch
      %139 = sbr.rel (0) target = $region41
    $region40: #{tpu_custom_call.1} parent=1 // pred_region
      %s141 = ssub.s32 1024, 1024
      %142 = vsyncadd [#allocation18], %s141
      %s143 = sshll.u32 [#allocation17], 4
      %s144 = int_to_ptr.vmem [resolvable:$true] %s143
      %149 = dma.hbm_to_vmem [thread:$0]  %s9, 1024, %s144, [#allocation18], 64, 64, 4
    $region41: #{tpu_custom_call.1} parent=1 // pred_fallthru
      _
    // Predicated region
    $region42: #{tpu_custom_call.1} parent=1 // pred_check
      _
    $region43: #{tpu_custom_call.1} parent=1 // pred_check_branch
      %151 = sbr.rel (0) target = $region45
    $region44: #{tpu_custom_call.1} parent=1 // pred_region
      %s153 = ssub.s32 16, 16
      %154 = vsyncadd [#allocation18], %s153
      %s156 = sshll.u32 [#allocation19], 4
      %s157 = int_to_ptr.vmem [resolvable:$true] %s156
      %159 = dma.hbm_to_vmem [thread:$0]  %s10, 16, %s157, [#allocation18]
    $region45: #{tpu_custom_call.1} parent=1 // pred_fallthru
      _
    // Predicated region
    $region46: #{tpu_custom_call.1} parent=1 // pred_check
      _
    $region47: #{tpu_custom_call.1} parent=1 // pred_check_branch
      %161 = sbr.rel (0) target = $region49
    $region48: #{tpu_custom_call.1} parent=1 // pred_region
      %s163 = ssub.s32 1024, 1024
      %164 = vsyncadd [#allocation21], %s163
      %s165 = sshll.u32 [#allocation20], 4
      %s166 = int_to_ptr.vmem [resolvable:$true] %s165
      %171 = dma.hbm_to_vmem [thread:$0]  %s11, 1024, %s166, [#allocation21], 64, 64, 4
    $region49: #{tpu_custom_call.1} parent=1 // pred_fallthru
      _
    // Predicated region
    $region50: #{tpu_custom_call.1} parent=1 // pred_check
      _
    $region51: #{tpu_custom_call.1} parent=1 // pred_check_branch
      %173 = sbr.rel (0) target = $region53
    $region52: #{tpu_custom_call.1} parent=1 // pred_region
      %s175 = ssub.s32 16, 16
      %176 = vsyncadd [#allocation21], %s175
      %s178 = sshll.u32 [#allocation22], 4
      %s179 = int_to_ptr.vmem [resolvable:$true] %s178
      %181 = dma.hbm_to_vmem [thread:$0]  %s12, 16, %s179, [#allocation21]
    $region53: #{tpu_custom_call.1} parent=1 // pred_fallthru
      _
    // Predicated region
    $region54: #{tpu_custom_call.1} parent=1 // pred_check
      _
    $region55: #{tpu_custom_call.1} parent=1 // pred_check_branch
      %183 = sbr.rel (0) target = $region57
    $region56: #{tpu_custom_call.1} parent=1 // pred_region
      %s185 = ssub.s32 1024, 1024
      %186 = vsyncadd [#allocation24], %s185
      %s187 = sshll.u32 [#allocation23], 4
      %s188 = int_to_ptr.vmem [resolvable:$true] %s187
      %193 = dma.hbm_to_vmem [thread:$0]  %s13, 1024, %s188, [#allocation24], 64, 64, 4
    $region57: #{tpu_custom_call.1} parent=1 // pred_fallthru
      _
    // Predicated region
    $region58: #{tpu_custom_call.1} parent=1 // pred_check
      _
    $region59: #{tpu_custom_call.1} parent=1 // pred_check_branch
      %195 = sbr.rel (0) target = $region61
    $region60: #{tpu_custom_call.1} parent=1 // pred_region
      %s197 = ssub.s32 16, 16
      %198 = vsyncadd [#allocation24], %s197
      %s200 = sshll.u32 [#allocation25], 4
      %s201 = int_to_ptr.vmem [resolvable:$true] %s200
      %203 = dma.hbm_to_vmem [thread:$0]  %s14, 16, %s201, [#allocation24]
    $region61: #{tpu_custom_call.1} parent=1 // pred_fallthru
      _
    // Predicated region
    $region62: #{tpu_custom_call.1} parent=1 // pred_check
      _
    $region63: #{tpu_custom_call.1} parent=1 // pred_check_branch
      %205 = sbr.rel (0) target = $region65
    $region64: #{tpu_custom_call.1} parent=1 // pred_region
      %s207 = ssub.s32 1024, 1024
      %208 = vsyncadd [#allocation27], %s207
      %s209 = sshll.u32 [#allocation26], 4
      %s210 = int_to_ptr.vmem [resolvable:$true] %s209
      %215 = dma.hbm_to_vmem [thread:$0]  %s15, 1024, %s210, [#allocation27], 64, 64, 4
    $region65: #{tpu_custom_call.1} parent=1 // pred_fallthru
      _
    // Predicated region
    $region66: #{tpu_custom_call.1} parent=1 // pred_check
      _
    $region67: #{tpu_custom_call.1} parent=1 // pred_check_branch
      %217 = sbr.rel (0) target = $region69
    $region68: #{tpu_custom_call.1} parent=1 // pred_region
      %s219 = ssub.s32 16, 16
      %220 = vsyncadd [#allocation27], %s219
      %s222 = sshll.u32 [#allocation28], 4
      %s223 = int_to_ptr.vmem [resolvable:$true] %s222
      %225 = dma.hbm_to_vmem [thread:$0]  %s16, 16, %s223, [#allocation27]
    $region69: #{tpu_custom_call.1} parent=1 // pred_fallthru
      _
    // Predicated region
    $region70: #{tpu_custom_call.1} parent=1 // pred_check
      _
    $region71: #{tpu_custom_call.1} parent=1 // pred_check_branch
      %227 = sbr.rel (0) target = $region73
    $region72: #{tpu_custom_call.1} parent=1 // pred_region
      _
    $region73: #{tpu_custom_call.1} parent=1 // pred_fallthru
      _
    // Predicated region
    $region74: #{tpu_custom_call.1} parent=1 // pred_check
      _
    $region75: #{tpu_custom_call.1} parent=1 // pred_check_branch
      %229 = sbr.rel (0) target = $region77
    $region76: #{tpu_custom_call.1} parent=1 // pred_region
      _
    $region77: #{tpu_custom_call.1} parent=1 // pred_fallthru
      _
    // Predicated region
    $region78: #{tpu_custom_call.1} parent=1 // pred_check
      _
    $region79: #{tpu_custom_call.1} parent=1 // pred_check_branch
      %231 = sbr.rel (0) target = $region81
    $region80: #{tpu_custom_call.1} parent=1 // pred_region
      %s233 = ssub.s32 2048, 2048
      %234 = vsyncadd [#allocation30], %s233
      %s235 = sshll.u32 [#allocation29], 4
      %s236 = int_to_ptr.vmem [resolvable:$true] %s235
      %241 = dma.hbm_to_vmem [thread:$0]  %s19, 2048, %s236, [#allocation30], 128, 128, 8
    $region81: #{tpu_custom_call.1} parent=1 // pred_fallthru
      _
    // Predicated region
    $region82: #{tpu_custom_call.1} parent=1 // pred_check
      _
    $region83: #{tpu_custom_call.1} parent=1 // pred_check_branch
      %243 = sbr.rel (0) target = $region85
    $region84: #{tpu_custom_call.1} parent=1 // pred_region
      _
    $region85: #{tpu_custom_call.1} parent=1 // pred_fallthru
      _
    // Predicated region
    $region86: #{tpu_custom_call.1} parent=1 // pred_check
      _
    $region87: #{tpu_custom_call.1} parent=1 // pred_check_branch
      %245 = sbr.rel (0) target = $region89
    $region88: #{tpu_custom_call.1} parent=1 // pred_region
      %246 = dma.done [#allocation3], 128
    $region89: #{tpu_custom_call.1} parent=1 // pred_fallthru
      _
    // Predicated region
    $region90: #{tpu_custom_call.1} parent=1 // pred_check
      _
    $region91: #{tpu_custom_call.1} parent=1 // pred_check_branch
      %248 = sbr.rel (0) target = $region93
    $region92: #{tpu_custom_call.1} parent=1 // pred_region
      %249 = dma.done [#allocation6], 2048
    $region93: #{tpu_custom_call.1} parent=1 // pred_fallthru
      _
    // Predicated region
    $region94: #{tpu_custom_call.1} parent=1 // pred_check
      _
    $region95: #{tpu_custom_call.1} parent=1 // pred_check_branch
      %251 = sbr.rel (0) target = $region97
    $region96: #{tpu_custom_call.1} parent=1 // pred_region
      %252 = dma.done [#allocation6], 16
    $region97: #{tpu_custom_call.1} parent=1 // pred_fallthru
      _
    // Predicated region
    $region98: #{tpu_custom_call.1} parent=1 // pred_check
      _
    $region99: #{tpu_custom_call.1} parent=1 // pred_check_branch
      %254 = sbr.rel (0) target = $region101
    $region100: #{tpu_custom_call.1} parent=1 // pred_region
      %255 = dma.done [#allocation9], 1024
    $region101: #{tpu_custom_call.1} parent=1 // pred_fallthru
      _
    // Predicated region
    $region102: #{tpu_custom_call.1} parent=1 // pred_check
      _
    $region103: #{tpu_custom_call.1} parent=1 // pred_check_branch
      %257 = sbr.rel (0) target = $region105
    $region104: #{tpu_custom_call.1} parent=1 // pred_region
      %258 = dma.done [#allocation9], 16
    $region105: #{tpu_custom_call.1} parent=1 // pred_fallthru
      _
    // Predicated region
    $region106: #{tpu_custom_call.1} parent=1 // pred_check
      _
    $region107: #{tpu_custom_call.1} parent=1 // pred_check_branch
      %260 = sbr.rel (0) target = $region109
    $region108: #{tpu_custom_call.1} parent=1 // pred_region
      %261 = dma.done [#allocation12], 1024
    $region109: #{tpu_custom_call.1} parent=1 // pred_fallthru
      _
    // Predicated region
    $region110: #{tpu_custom_call.1} parent=1 // pred_check
      _
    $region111: #{tpu_custom_call.1} parent=1 // pred_check_branch
      %263 = sbr.rel (0) target = $region113
    $region112: #{tpu_custom_call.1} parent=1 // pred_region
      %264 = dma.done [#allocation12], 16
    $region113: #{tpu_custom_call.1} parent=1 // pred_fallthru
      _
    // Predicated region
    $region114: #{tpu_custom_call.1} parent=1 // pred_check
      _
    $region115: #{tpu_custom_call.1} parent=1 // pred_check_branch
      %266 = sbr.rel (0) target = $region117
    $region116: #{tpu_custom_call.1} parent=1 // pred_region
      %267 = dma.done [#allocation15], 1024
    $region117: #{tpu_custom_call.1} parent=1 // pred_fallthru
      _
    // Predicated region
    $region118: #{tpu_custom_call.1} parent=1 // pred_check
      _
    $region119: #{tpu_custom_call.1} parent=1 // pred_check_branch
      %269 = sbr.rel (0) target = $region121
    $region120: #{tpu_custom_call.1} parent=1 // pred_region
      %270 = dma.done [#allocation15], 16
    $region121: #{tpu_custom_call.1} parent=1 // pred_fallthru
      _
    // Predicated region
    $region122: #{tpu_custom_call.1} parent=1 // pred_check
      _
    $region123: #{tpu_custom_call.1} parent=1 // pred_check_branch
      %272 = sbr.rel (0) target = $region125
    $region124: #{tpu_custom_call.1} parent=1 // pred_region
      %273 = dma.done [#allocation18], 1024
    $region125: #{tpu_custom_call.1} parent=1 // pred_fallthru
      _
    // Predicated region
    $region126: #{tpu_custom_call.1} parent=1 // pred_check
      _
    $region127: #{tpu_custom_call.1} parent=1 // pred_check_branch
      %275 = sbr.rel (0) target = $region129
    $region128: #{tpu_custom_call.1} parent=1 // pred_region
      %276 = dma.done [#allocation18], 16
    $region129: #{tpu_custom_call.1} parent=1 // pred_fallthru
      _
    // Predicated region
    $region130: #{tpu_custom_call.1} parent=1 // pred_check
      _
    $region131: #{tpu_custom_call.1} parent=1 // pred_check_branch
      %278 = sbr.rel (0) target = $region133
    $region132: #{tpu_custom_call.1} parent=1 // pred_region
      %279 = dma.done [#allocation21], 1024
    $region133: #{tpu_custom_call.1} parent=1 // pred_fallthru
      _
    // Predicated region
    $region134: #{tpu_custom_call.1} parent=1 // pred_check
      _
    $region135: #{tpu_custom_call.1} parent=1 // pred_check_branch
      %281 = sbr.rel (0) target = $region137
    $region136: #{tpu_custom_call.1} parent=1 // pred_region
      %282 = dma.done [#allocation21], 16
    $region137: #{tpu_custom_call.1} parent=1 // pred_fallthru
      _
    // Predicated region
    $region138: #{tpu_custom_call.1} parent=1 // pred_check
      _
    $region139: #{tpu_custom_call.1} parent=1 // pred_check_branch
      %284 = sbr.rel (0) target = $region141
    $region140: #{tpu_custom_call.1} parent=1 // pred_region
      %285 = dma.done [#allocation24], 1024
    $region141: #{tpu_custom_call.1} parent=1 // pred_fallthru
      _
    // Predicated region
    $region142: #{tpu_custom_call.1} parent=1 // pred_check
      _
    $region143: #{tpu_custom_call.1} parent=1 // pred_check_branch
      %287 = sbr.rel (0) target = $region145
    $region144: #{tpu_custom_call.1} parent=1 // pred_region
      %288 = dma.done [#allocation24], 16
    $region145: #{tpu_custom_call.1} parent=1 // pred_fallthru
      _
    // Predicated region
    $region146: #{tpu_custom_call.1} parent=1 // pred_check
      _
    $region147: #{tpu_custom_call.1} parent=1 // pred_check_branch
      %290 = sbr.rel (0) target = $region149
    $region148: #{tpu_custom_call.1} parent=1 // pred_region
      %291 = dma.done [#allocation27], 1024
    $region149: #{tpu_custom_call.1} parent=1 // pred_fallthru
      _
    // Predicated region
    $region150: #{tpu_custom_call.1} parent=1 // pred_check
      _
    $region151: #{tpu_custom_call.1} parent=1 // pred_check_branch
      %293 = sbr.rel (0) target = $region153
    $region152: #{tpu_custom_call.1} parent=1 // pred_region
      %294 = dma.done [#allocation27], 16
    $region153: #{tpu_custom_call.1} parent=1 // pred_fallthru
      _
    // Predicated region
    $region154: #{tpu_custom_call.1} parent=1 // pred_check
      _
    $region155: #{tpu_custom_call.1} parent=1 // pred_check_branch
      %296 = sbr.rel (0) target = $region157
    $region156: #{tpu_custom_call.1} parent=1 // pred_region
      %297 = dma.done [#allocation30], 2048
    $region157: #{tpu_custom_call.1} parent=1 // pred_fallthru
      _
    %v299 = vld [vmem:[#allocation2] sm:$0xff]
    %v300 = vld [vmem:[#allocation5] sm:$0xf]
    %v301 = vld [vmem:[#allocation5 + $0x4] sm:$0xf]
    %v302 = vld [vmem:[#allocation5 + $0x8] sm:$0xf]
    %v303 = vld [vmem:[#allocation5 + $0xc] sm:$0xf]
    %v304 = vld [vmem:[#allocation5 + $0x10] sm:$0xf]
    %v305 = vld [vmem:[#allocation5 + $0x14] sm:$0xf]
    %v306 = vld [vmem:[#allocation5 + $0x18] sm:$0xf]
    %v307 = vld [vmem:[#allocation5 + $0x1c] sm:$0xf]
    %v308 = vld [vmem:[#allocation5 + $0x20] sm:$0xf]
    %v309 = vld [vmem:[#allocation5 + $0x24] sm:$0xf]
    %v310 = vld [vmem:[#allocation5 + $0x28] sm:$0xf]
    %v311 = vld [vmem:[#allocation5 + $0x2c] sm:$0xf]
    %v312 = vld [vmem:[#allocation5 + $0x30] sm:$0xf]
    %v313 = vld [vmem:[#allocation5 + $0x34] sm:$0xf]
    %v314 = vld [vmem:[#allocation5 + $0x38] sm:$0xf]
    %v315 = vld [vmem:[#allocation5 + $0x3c] sm:$0xf]
    %v316 = vld [vmem:[#allocation5 + $0x40] sm:$0xf]
    %v317 = vld [vmem:[#allocation5 + $0x44] sm:$0xf]
    %v318 = vld [vmem:[#allocation5 + $0x48] sm:$0xf]
    %v319 = vld [vmem:[#allocation5 + $0x4c] sm:$0xf]
    %v320 = vld [vmem:[#allocation5 + $0x50] sm:$0xf]
    %v321 = vld [vmem:[#allocation5 + $0x54] sm:$0xf]
    %v322 = vld [vmem:[#allocation5 + $0x58] sm:$0xf]
    %v323 = vld [vmem:[#allocation5 + $0x5c] sm:$0xf]
    %v324 = vld [vmem:[#allocation5 + $0x60] sm:$0xf]
    %v325 = vld [vmem:[#allocation5 + $0x64] sm:$0xf]
    %v326 = vld [vmem:[#allocation5 + $0x68] sm:$0xf]
    %v327 = vld [vmem:[#allocation5 + $0x6c] sm:$0xf]
    %v328 = vld [vmem:[#allocation5 + $0x70] sm:$0xf]
    %v329 = vld [vmem:[#allocation5 + $0x74] sm:$0xf]
    %v330 = vld [vmem:[#allocation5 + $0x78] sm:$0xf]
    %v331 = vld [vmem:[#allocation5 + $0x7c] sm:$0xf]
    %v332 = vld [vmem:[#allocation7] sm:$0x1]
    %v334 = vlaneseq
    %v335 = vshrl.u32 %v334, 7
    %v336 = vsub.s32 0, %v335
    %v337 = vrot.slane %v332, %v336
    %v340 = vunpack.c.l.b16 %v299
    %v341 = vunpack.c.h.b16 %v299
    %v342 = vpack.c.b16 %v340, %v340
    %v343 = vpack.c.b16 %v341, %v341
    %v378 = vunpack.c.l.b16 %v300
    %v379 = vunpack.c.l.b16 %v301
    %v380 = vunpack.c.l.b16 %v302
    %v381 = vunpack.c.l.b16 %v303
    %v382 = vunpack.c.l.b16 %v304
    %v383 = vunpack.c.l.b16 %v305
    %v384 = vunpack.c.l.b16 %v306
    %v385 = vunpack.c.l.b16 %v307
    %v386 = vunpack.c.l.b16 %v308
    %v387 = vunpack.c.l.b16 %v309
    %v388 = vunpack.c.l.b16 %v310
    %v389 = vunpack.c.l.b16 %v311
    %v390 = vunpack.c.l.b16 %v312
    %v391 = vunpack.c.l.b16 %v313
    %v392 = vunpack.c.l.b16 %v314
    %v393 = vunpack.c.l.b16 %v315
    %v394 = vunpack.c.l.b16 %v316
    %v395 = vunpack.c.l.b16 %v317
    %v396 = vunpack.c.l.b16 %v318
    %v397 = vunpack.c.l.b16 %v319
    %v398 = vunpack.c.l.b16 %v320
    %v399 = vunpack.c.l.b16 %v321
    %v400 = vunpack.c.l.b16 %v322
    %v401 = vunpack.c.l.b16 %v323
    %v402 = vunpack.c.l.b16 %v324
    %v403 = vunpack.c.l.b16 %v325
    %v404 = vunpack.c.l.b16 %v326
    %v405 = vunpack.c.l.b16 %v327
    %v406 = vunpack.c.l.b16 %v328
    %v407 = vunpack.c.l.b16 %v329
    %v408 = vunpack.c.l.b16 %v330
    %v409 = vunpack.c.l.b16 %v331
    %v410 = vpack.c.b16 %v379, %v378
    %v411 = vpack.c.b16 %v381, %v380
    %v412 = vpack.c.b16 %v383, %v382
    %v413 = vpack.c.b16 %v385, %v384
    %v414 = vpack.c.b16 %v387, %v386
    %v415 = vpack.c.b16 %v389, %v388
    %v416 = vpack.c.b16 %v391, %v390
    %v417 = vpack.c.b16 %v393, %v392
    %v418 = vpack.c.b16 %v395, %v394
    %v419 = vpack.c.b16 %v397, %v396
    %v420 = vpack.c.b16 %v399, %v398
    %v421 = vpack.c.b16 %v401, %v400
    %v422 = vpack.c.b16 %v403, %v402
    %v423 = vpack.c.b16 %v405, %v404
    %v424 = vpack.c.b16 %v407, %v406
    %v425 = vpack.c.b16 %v409, %v408
    %442 = vmatprep.subr.bf16.mxu0 0
    %443 = vmatpush1.bf16.msra.mxu0 %v410
    %444 = vmatprep.subr.bf16.mxu0 0
    %445 = vmatpush1.bf16.msra.mxu0 %v411
    %446 = vmatprep.subr.bf16.mxu0 0
    %447 = vmatpush1.bf16.msra.mxu0 %v412
    %448 = vmatprep.subr.bf16.mxu0 0
    %449 = vmatpush1.bf16.msra.mxu0 %v413
    %450 = vmatprep.subr.bf16.mxu0 0
    %451 = vmatpush1.bf16.msra.mxu0 %v414
    %452 = vmatprep.subr.bf16.mxu0 0
    %453 = vmatpush1.bf16.msra.mxu0 %v415
    %454 = vmatprep.subr.bf16.mxu0 0
    %455 = vmatpush1.bf16.msra.mxu0 %v416
    %456 = vmatprep.subr.bf16.mxu0 0
    %457 = vmatpush1.bf16.msra.mxu0 %v417
    %458 = vmatprep.subr.bf16.mxu0 0
    %459 = vmatpush1.bf16.msra.mxu0 %v418
    %460 = vmatprep.subr.bf16.mxu0 0
    %461 = vmatpush1.bf16.msra.mxu0 %v419
    %462 = vmatprep.subr.bf16.mxu0 0
    %463 = vmatpush1.bf16.msra.mxu0 %v420
    %464 = vmatprep.subr.bf16.mxu0 0
    %465 = vmatpush1.bf16.msra.mxu0 %v421
    %466 = vmatprep.subr.bf16.mxu0 0
    %467 = vmatpush1.bf16.msra.mxu0 %v422
    %468 = vmatprep.subr.bf16.mxu0 0
    %469 = vmatpush1.bf16.msra.mxu0 %v423
    %470 = vmatprep.subr.bf16.mxu0 0
    %471 = vmatpush1.bf16.msra.mxu0 %v424
    %472 = vmatprep.subr.bf16.mxu0 0
    %473 = vmatpush1.bf16.msra.mxu0 %v425
    %474 = vmatprep.mubr.bf16.mxu0 %v343
    %475 = vmatmul.mubr.bf16.gmra.mrb[0].mxu0 %v342
    %v476 = vpop.f32.mrb[0].mxu0
    %v477 = vadd.f32 %v337, %v476
    %v478 = vpop.f32.mrb[0].mxu0
    %v479 = vpop.f32.mrb[0].mxu0
    %v480 = vpop.f32.mrb[0].mxu0
    %481 = vdwg.mxu0
    %v482 = vmax.f32 %v477, 0.0
    %v483 = vpack.c.bf16 %v482, %v482
    %v484 = vld [vmem:[#allocation8] sm:$0xf]
    %v485 = vld [vmem:[#allocation8 + $0x4] sm:$0xf]
    %v486 = vld [vmem:[#allocation8 + $0x8] sm:$0xf]
    %v487 = vld [vmem:[#allocation8 + $0xc] sm:$0xf]
    %v488 = vld [vmem:[#allocation8 + $0x10] sm:$0xf]
    %v489 = vld [vmem:[#allocation8 + $0x14] sm:$0xf]
    %v490 = vld [vmem:[#allocation8 + $0x18] sm:$0xf]
    %v491 = vld [vmem:[#allocation8 + $0x1c] sm:$0xf]
    %v492 = vld [vmem:[#allocation8 + $0x20] sm:$0xf]
    %v493 = vld [vmem:[#allocation8 + $0x24] sm:$0xf]
    %v494 = vld [vmem:[#allocation8 + $0x28] sm:$0xf]
    %v495 = vld [vmem:[#allocation8 + $0x2c] sm:$0xf]
    %v496 = vld [vmem:[#allocation8 + $0x30] sm:$0xf]
    %v497 = vld [vmem:[#allocation8 + $0x34] sm:$0xf]
    %v498 = vld [vmem:[#allocation8 + $0x38] sm:$0xf]
    %v499 = vld [vmem:[#allocation8 + $0x3c] sm:$0xf]
    %v500 = vld [vmem:[#allocation10] sm:$0x1]
    %v502 = vlaneseq
    %v503 = vshrl.u32 %v502, 7
    %v504 = vsub.s32 0, %v503
    %v505 = vrot.slane %v500, %v504
    %v523 = vunpack.c.l.b16 %v484
    %v524 = vunpack.c.l.b16 %v485
    %v525 = vunpack.c.l.b16 %v486
    %v526 = vunpack.c.l.b16 %v487
    %v527 = vunpack.c.l.b16 %v488
    %v528 = vunpack.c.l.b16 %v489
    %v529 = vunpack.c.l.b16 %v490
    %v530 = vunpack.c.l.b16 %v491
    %v531 = vunpack.c.l.b16 %v492
    %v532 = vunpack.c.l.b16 %v493
    %v533 = vunpack.c.l.b16 %v494
    %v534 = vunpack.c.l.b16 %v495
    %v535 = vunpack.c.l.b16 %v496
    %v536 = vunpack.c.l.b16 %v497
    %v537 = vunpack.c.l.b16 %v498
    %v538 = vunpack.c.l.b16 %v499
    %v539 = vpack.c.b16 %v524, %v523
    %v540 = vpack.c.b16 %v526, %v525
    %v541 = vpack.c.b16 %v528, %v527
    %v542 = vpack.c.b16 %v530, %v529
    %v543 = vpack.c.b16 %v532, %v531
    %v544 = vpack.c.b16 %v534, %v533
    %v545 = vpack.c.b16 %v536, %v535
    %v546 = vpack.c.b16 %v538, %v537
    %555 = vmatprep.subr.bf16.mxu0 0
    %556 = vmatpush1.bf16.msra.mxu0 %v539
    %557 = vmatprep.subr.bf16.mxu0 0
    %558 = vmatpush1.bf16.msra.mxu0 %v540
    %559 = vmatprep.subr.bf16.mxu0 0
    %560 = vmatpush1.bf16.msra.mxu0 %v541
    %561 = vmatprep.subr.bf16.mxu0 0
    %562 = vmatpush1.bf16.msra.mxu0 %v542
    %563 = vmatprep.subr.bf16.mxu0 0
    %564 = vmatpush1.bf16.msra.mxu0 %v543
    %565 = vmatprep.subr.bf16.mxu0 0
    %566 = vmatpush1.bf16.msra.mxu0 %v544
    %567 = vmatprep.subr.bf16.mxu0 0
    %568 = vmatpush1.bf16.msra.mxu0 %v545
    %569 = vmatprep.subr.bf16.mxu0 0
    %570 = vmatpush1.bf16.msra.mxu0 %v546
    %571 = vmatprep.subr.bf16.mxu0 0
    %572 = vmatpush1.bf16.msra.mxu0 0
    %573 = vmatprep.subr.bf16.mxu0 0
    %574 = vmatpush1.bf16.msra.mxu0 0
    %575 = vmatprep.subr.bf16.mxu0 0
    %576 = vmatpush1.bf16.msra.mxu0 0
    %577 = vmatprep.subr.bf16.mxu0 0
    %578 = vmatpush1.bf16.msra.mxu0 0
    %579 = vmatprep.subr.bf16.mxu0 0
    %580 = vmatpush1.bf16.msra.mxu0 0
    %581 = vmatprep.subr.bf16.mxu0 0
    %582 = vmatpush1.bf16.msra.mxu0 0
    %583 = vmatprep.subr.bf16.mxu0 0
    %584 = vmatpush1.bf16.msra.mxu0 0
    %585 = vmatprep.subr.bf16.mxu0 0
    %586 = vmatpush1.bf16.msra.mxu0 0
    %587 = vmatprep.mubr.bf16.mxu0 0
    %588 = vmatmul.mubr.bf16.gmra.mrb[0].mxu0 %v483
    %v589 = vpop.f32.mrb[0].mxu0
    %v590 = vadd.f32 %v505, %v589
    %v591 = vpop.f32.mrb[0].mxu0
    %v592 = vpop.f32.mrb[0].mxu0
    %v593 = vpop.f32.mrb[0].mxu0
    %594 = vdwg.mxu0
    %v595 = vmax.f32 %v590, 0.0
    %v596 = vpack.c.bf16 %v595, %v595
    %v597 = vld [vmem:[#allocation11] sm:$0xf]
    %v598 = vld [vmem:[#allocation11 + $0x4] sm:$0xf]
    %v599 = vld [vmem:[#allocation11 + $0x8] sm:$0xf]
    %v600 = vld [vmem:[#allocation11 + $0xc] sm:$0xf]
    %v601 = vld [vmem:[#allocation11 + $0x10] sm:$0xf]
    %v602 = vld [vmem:[#allocation11 + $0x14] sm:$0xf]
    %v603 = vld [vmem:[#allocation11 + $0x18] sm:$0xf]
    %v604 = vld [vmem:[#allocation11 + $0x1c] sm:$0xf]
    %v605 = vld [vmem:[#allocation11 + $0x20] sm:$0xf]
    %v606 = vld [vmem:[#allocation11 + $0x24] sm:$0xf]
    %v607 = vld [vmem:[#allocation11 + $0x28] sm:$0xf]
    %v608 = vld [vmem:[#allocation11 + $0x2c] sm:$0xf]
    %v609 = vld [vmem:[#allocation11 + $0x30] sm:$0xf]
    %v610 = vld [vmem:[#allocation11 + $0x34] sm:$0xf]
    %v611 = vld [vmem:[#allocation11 + $0x38] sm:$0xf]
    %v612 = vld [vmem:[#allocation11 + $0x3c] sm:$0xf]
    %v613 = vld [vmem:[#allocation13] sm:$0x1]
    %v615 = vlaneseq
    %v616 = vshrl.u32 %v615, 7
    %v617 = vsub.s32 0, %v616
    %v618 = vrot.slane %v613, %v617
    %v636 = vunpack.c.l.b16 %v597
    %v637 = vunpack.c.l.b16 %v598
    %v638 = vunpack.c.l.b16 %v599
    %v639 = vunpack.c.l.b16 %v600
    %v640 = vunpack.c.l.b16 %v601
    %v641 = vunpack.c.l.b16 %v602
    %v642 = vunpack.c.l.b16 %v603
    %v643 = vunpack.c.l.b16 %v604
    %v644 = vunpack.c.l.b16 %v605
    %v645 = vunpack.c.l.b16 %v606
    %v646 = vunpack.c.l.b16 %v607
    %v647 = vunpack.c.l.b16 %v608
    %v648 = vunpack.c.l.b16 %v609
    %v649 = vunpack.c.l.b16 %v610
    %v650 = vunpack.c.l.b16 %v611
    %v651 = vunpack.c.l.b16 %v612
    %v652 = vpack.c.b16 %v637, %v636
    %v653 = vpack.c.b16 %v639, %v638
    %v654 = vpack.c.b16 %v641, %v640
    %v655 = vpack.c.b16 %v643, %v642
    %v656 = vpack.c.b16 %v645, %v644
    %v657 = vpack.c.b16 %v647, %v646
    %v658 = vpack.c.b16 %v649, %v648
    %v659 = vpack.c.b16 %v651, %v650
    %668 = vmatprep.subr.bf16.mxu0 0
    %669 = vmatpush1.bf16.msra.mxu0 %v652
    %670 = vmatprep.subr.bf16.mxu0 0
    %671 = vmatpush1.bf16.msra.mxu0 %v653
    %672 = vmatprep.subr.bf16.mxu0 0
    %673 = vmatpush1.bf16.msra.mxu0 %v654
    %674 = vmatprep.subr.bf16.mxu0 0
    %675 = vmatpush1.bf16.msra.mxu0 %v655
    %676 = vmatprep.subr.bf16.mxu0 0
    %677 = vmatpush1.bf16.msra.mxu0 %v656
    %678 = vmatprep.subr.bf16.mxu0 0
    %679 = vmatpush1.bf16.msra.mxu0 %v657
    %680 = vmatprep.subr.bf16.mxu0 0
    %681 = vmatpush1.bf16.msra.mxu0 %v658
    %682 = vmatprep.subr.bf16.mxu0 0
    %683 = vmatpush1.bf16.msra.mxu0 %v659
    %684 = vmatprep.subr.bf16.mxu0 0
    %685 = vmatpush1.bf16.msra.mxu0 0
    %686 = vmatprep.subr.bf16.mxu0 0
    %687 = vmatpush1.bf16.msra.mxu0 0
    %688 = vmatprep.subr.bf16.mxu0 0
    %689 = vmatpush1.bf16.msra.mxu0 0
    %690 = vmatprep.subr.bf16.mxu0 0
    %691 = vmatpush1.bf16.msra.mxu0 0
    %692 = vmatprep.subr.bf16.mxu0 0
    %693 = vmatpush1.bf16.msra.mxu0 0
    %694 = vmatprep.subr.bf16.mxu0 0
    %695 = vmatpush1.bf16.msra.mxu0 0
    %696 = vmatprep.subr.bf16.mxu0 0
    %697 = vmatpush1.bf16.msra.mxu0 0
    %698 = vmatprep.subr.bf16.mxu0 0
    %699 = vmatpush1.bf16.msra.mxu0 0
    %700 = vmatprep.mubr.bf16.mxu0 0
    %701 = vmatmul.mubr.bf16.gmra.mrb[0].mxu0 %v596
    %v702 = vpop.f32.mrb[0].mxu0
    %v703 = vadd.f32 %v618, %v702
    %v704 = vpop.f32.mrb[0].mxu0
    %v705 = vpop.f32.mrb[0].mxu0
    %v706 = vpop.f32.mrb[0].mxu0
    %707 = vdwg.mxu0
    %v708 = vmax.f32 %v703, 0.0
    %v709 = vpack.c.bf16 %v708, %v708
    %v710 = vld [vmem:[#allocation14] sm:$0xf]
    %v711 = vld [vmem:[#allocation14 + $0x4] sm:$0xf]
    %v712 = vld [vmem:[#allocation14 + $0x8] sm:$0xf]
    %v713 = vld [vmem:[#allocation14 + $0xc] sm:$0xf]
    %v714 = vld [vmem:[#allocation14 + $0x10] sm:$0xf]
    %v715 = vld [vmem:[#allocation14 + $0x14] sm:$0xf]
    %v716 = vld [vmem:[#allocation14 + $0x18] sm:$0xf]
    %v717 = vld [vmem:[#allocation14 + $0x1c] sm:$0xf]
    %v718 = vld [vmem:[#allocation14 + $0x20] sm:$0xf]
    %v719 = vld [vmem:[#allocation14 + $0x24] sm:$0xf]
    %v720 = vld [vmem:[#allocation14 + $0x28] sm:$0xf]
    %v721 = vld [vmem:[#allocation14 + $0x2c] sm:$0xf]
    %v722 = vld [vmem:[#allocation14 + $0x30] sm:$0xf]
    %v723 = vld [vmem:[#allocation14 + $0x34] sm:$0xf]
    %v724 = vld [vmem:[#allocation14 + $0x38] sm:$0xf]
    %v725 = vld [vmem:[#allocation14 + $0x3c] sm:$0xf]
    %v726 = vld [vmem:[#allocation16] sm:$0x1]
    %v728 = vlaneseq
    %v729 = vshrl.u32 %v728, 7
    %v730 = vsub.s32 0, %v729
    %v731 = vrot.slane %v726, %v730
    %v749 = vunpack.c.l.b16 %v710
    %v750 = vunpack.c.l.b16 %v711
    %v751 = vunpack.c.l.b16 %v712
    %v752 = vunpack.c.l.b16 %v713
    %v753 = vunpack.c.l.b16 %v714
    %v754 = vunpack.c.l.b16 %v715
    %v755 = vunpack.c.l.b16 %v716
    %v756 = vunpack.c.l.b16 %v717
    %v757 = vunpack.c.l.b16 %v718
    %v758 = vunpack.c.l.b16 %v719
    %v759 = vunpack.c.l.b16 %v720
    %v760 = vunpack.c.l.b16 %v721
    %v761 = vunpack.c.l.b16 %v722
    %v762 = vunpack.c.l.b16 %v723
    %v763 = vunpack.c.l.b16 %v724
    %v764 = vunpack.c.l.b16 %v725
    %v765 = vpack.c.b16 %v750, %v749
    %v766 = vpack.c.b16 %v752, %v751
    %v767 = vpack.c.b16 %v754, %v753
    %v768 = vpack.c.b16 %v756, %v755
    %v769 = vpack.c.b16 %v758, %v757
    %v770 = vpack.c.b16 %v760, %v759
    %v771 = vpack.c.b16 %v762, %v761
    %v772 = vpack.c.b16 %v764, %v763
    %781 = vmatprep.subr.bf16.mxu0 0
    %782 = vmatpush1.bf16.msra.mxu0 %v765
    %783 = vmatprep.subr.bf16.mxu0 0
    %784 = vmatpush1.bf16.msra.mxu0 %v766
    %785 = vmatprep.subr.bf16.mxu0 0
    %786 = vmatpush1.bf16.msra.mxu0 %v767
    %787 = vmatprep.subr.bf16.mxu0 0
    %788 = vmatpush1.bf16.msra.mxu0 %v768
    %789 = vmatprep.subr.bf16.mxu0 0
    %790 = vmatpush1.bf16.msra.mxu0 %v769
    %791 = vmatprep.subr.bf16.mxu0 0
    %792 = vmatpush1.bf16.msra.mxu0 %v770
    %793 = vmatprep.subr.bf16.mxu0 0
    %794 = vmatpush1.bf16.msra.mxu0 %v771
    %795 = vmatprep.subr.bf16.mxu0 0
    %796 = vmatpush1.bf16.msra.mxu0 %v772
    %797 = vmatprep.subr.bf16.mxu0 0
    %798 = vmatpush1.bf16.msra.mxu0 0
    %799 = vmatprep.subr.bf16.mxu0 0
    %800 = vmatpush1.bf16.msra.mxu0 0
    %801 = vmatprep.subr.bf16.mxu0 0
    %802 = vmatpush1.bf16.msra.mxu0 0
    %803 = vmatprep.subr.bf16.mxu0 0
    %804 = vmatpush1.bf16.msra.mxu0 0
    %805 = vmatprep.subr.bf16.mxu0 0
    %806 = vmatpush1.bf16.msra.mxu0 0
    %807 = vmatprep.subr.bf16.mxu0 0
    %808 = vmatpush1.bf16.msra.mxu0 0
    %809 = vmatprep.subr.bf16.mxu0 0
    %810 = vmatpush1.bf16.msra.mxu0 0
    %811 = vmatprep.subr.bf16.mxu0 0
    %812 = vmatpush1.bf16.msra.mxu0 0
    %813 = vmatprep.mubr.bf16.mxu0 0
    %814 = vmatmul.mubr.bf16.gmra.mrb[0].mxu0 %v709
    %v815 = vpop.f32.mrb[0].mxu0
    %v816 = vadd.f32 %v731, %v815
    %v817 = vpop.f32.mrb[0].mxu0
    %v818 = vpop.f32.mrb[0].mxu0
    %v819 = vpop.f32.mrb[0].mxu0
    %820 = vdwg.mxu0
    %v821 = vmax.f32 %v816, 0.0
    %v822 = vpack.c.bf16 %v821, %v821
    %v823 = vld [vmem:[#allocation17] sm:$0xf]
    %v824 = vld [vmem:[#allocation17 + $0x4] sm:$0xf]
    %v825 = vld [vmem:[#allocation17 + $0x8] sm:$0xf]
    %v826 = vld [vmem:[#allocation17 + $0xc] sm:$0xf]
    %v827 = vld [vmem:[#allocation17 + $0x10] sm:$0xf]
    %v828 = vld [vmem:[#allocation17 + $0x14] sm:$0xf]
    %v829 = vld [vmem:[#allocation17 + $0x18] sm:$0xf]
    %v830 = vld [vmem:[#allocation17 + $0x1c] sm:$0xf]
    %v831 = vld [vmem:[#allocation17 + $0x20] sm:$0xf]
    %v832 = vld [vmem:[#allocation17 + $0x24] sm:$0xf]
    %v833 = vld [vmem:[#allocation17 + $0x28] sm:$0xf]
    %v834 = vld [vmem:[#allocation17 + $0x2c] sm:$0xf]
    %v835 = vld [vmem:[#allocation17 + $0x30] sm:$0xf]
    %v836 = vld [vmem:[#allocation17 + $0x34] sm:$0xf]
    %v837 = vld [vmem:[#allocation17 + $0x38] sm:$0xf]
    %v838 = vld [vmem:[#allocation17 + $0x3c] sm:$0xf]
    %v839 = vld [vmem:[#allocation19] sm:$0x1]
    %v841 = vlaneseq
    %v842 = vshrl.u32 %v841, 7
    %v843 = vsub.s32 0, %v842
    %v844 = vrot.slane %v839, %v843
    %v862 = vunpack.c.l.b16 %v823
    %v863 = vunpack.c.l.b16 %v824
    %v864 = vunpack.c.l.b16 %v825
    %v865 = vunpack.c.l.b16 %v826
    %v866 = vunpack.c.l.b16 %v827
    %v867 = vunpack.c.l.b16 %v828
    %v868 = vunpack.c.l.b16 %v829
    %v869 = vunpack.c.l.b16 %v830
    %v870 = vunpack.c.l.b16 %v831
    %v871 = vunpack.c.l.b16 %v832
    %v872 = vunpack.c.l.b16 %v833
    %v873 = vunpack.c.l.b16 %v834
    %v874 = vunpack.c.l.b16 %v835
    %v875 = vunpack.c.l.b16 %v836
    %v876 = vunpack.c.l.b16 %v837
    %v877 = vunpack.c.l.b16 %v838
    %v878 = vpack.c.b16 %v863, %v862
    %v879 = vpack.c.b16 %v865, %v864
    %v880 = vpack.c.b16 %v867, %v866
    %v881 = vpack.c.b16 %v869, %v868
    %v882 = vpack.c.b16 %v871, %v870
    %v883 = vpack.c.b16 %v873, %v872
    %v884 = vpack.c.b16 %v875, %v874
    %v885 = vpack.c.b16 %v877, %v876
    %894 = vmatprep.subr.bf16.mxu0 0
    %895 = vmatpush1.bf16.msra.mxu0 %v878
    %896 = vmatprep.subr.bf16.mxu0 0
    %897 = vmatpush1.bf16.msra.mxu0 %v879
    %898 = vmatprep.subr.bf16.mxu0 0
    %899 = vmatpush1.bf16.msra.mxu0 %v880
    %900 = vmatprep.subr.bf16.mxu0 0
    %901 = vmatpush1.bf16.msra.mxu0 %v881
    %902 = vmatprep.subr.bf16.mxu0 0
    %903 = vmatpush1.bf16.msra.mxu0 %v882
    %904 = vmatprep.subr.bf16.mxu0 0
    %905 = vmatpush1.bf16.msra.mxu0 %v883
    %906 = vmatprep.subr.bf16.mxu0 0
    %907 = vmatpush1.bf16.msra.mxu0 %v884
    %908 = vmatprep.subr.bf16.mxu0 0
    %909 = vmatpush1.bf16.msra.mxu0 %v885
    %910 = vmatprep.subr.bf16.mxu0 0
    %911 = vmatpush1.bf16.msra.mxu0 0
    %912 = vmatprep.subr.bf16.mxu0 0
    %913 = vmatpush1.bf16.msra.mxu0 0
    %914 = vmatprep.subr.bf16.mxu0 0
    %915 = vmatpush1.bf16.msra.mxu0 0
    %916 = vmatprep.subr.bf16.mxu0 0
    %917 = vmatpush1.bf16.msra.mxu0 0
    %918 = vmatprep.subr.bf16.mxu0 0
    %919 = vmatpush1.bf16.msra.mxu0 0
    %920 = vmatprep.subr.bf16.mxu0 0
    %921 = vmatpush1.bf16.msra.mxu0 0
    %922 = vmatprep.subr.bf16.mxu0 0
    %923 = vmatpush1.bf16.msra.mxu0 0
    %924 = vmatprep.subr.bf16.mxu0 0
    %925 = vmatpush1.bf16.msra.mxu0 0
    %926 = vmatprep.mubr.bf16.mxu0 0
    %927 = vmatmul.mubr.bf16.gmra.mrb[0].mxu0 %v822
    %v928 = vpop.f32.mrb[0].mxu0
    %v929 = vadd.f32 %v844, %v928
    %v930 = vpop.f32.mrb[0].mxu0
    %v931 = vpop.f32.mrb[0].mxu0
    %v932 = vpop.f32.mrb[0].mxu0
    %933 = vdwg.mxu0
    %934 = vst [vmem:[#allocation32] sm:$0xff] %v929
    %v935 = vpack.c.bf16 %v929, %v929
    %v936 = vld [vmem:[#allocation20] sm:$0xf]
    %v937 = vld [vmem:[#allocation20 + $0x4] sm:$0xf]
    %v938 = vld [vmem:[#allocation20 + $0x8] sm:$0xf]
    %v939 = vld [vmem:[#allocation20 + $0xc] sm:$0xf]
    %v940 = vld [vmem:[#allocation20 + $0x10] sm:$0xf]
    %v941 = vld [vmem:[#allocation20 + $0x14] sm:$0xf]
    %v942 = vld [vmem:[#allocation20 + $0x18] sm:$0xf]
    %v943 = vld [vmem:[#allocation20 + $0x1c] sm:$0xf]
    %v944 = vld [vmem:[#allocation20 + $0x20] sm:$0xf]
    %v945 = vld [vmem:[#allocation20 + $0x24] sm:$0xf]
    %v946 = vld [vmem:[#allocation20 + $0x28] sm:$0xf]
    %v947 = vld [vmem:[#allocation20 + $0x2c] sm:$0xf]
    %v948 = vld [vmem:[#allocation20 + $0x30] sm:$0xf]
    %v949 = vld [vmem:[#allocation20 + $0x34] sm:$0xf]
    %v950 = vld [vmem:[#allocation20 + $0x38] sm:$0xf]
    %v951 = vld [vmem:[#allocation20 + $0x3c] sm:$0xf]
    %v952 = vld [vmem:[#allocation22] sm:$0x1]
    %v954 = vlaneseq
    %v955 = vshrl.u32 %v954, 7
    %v956 = vsub.s32 0, %v955
    %v957 = vrot.slane %v952, %v956
    %v975 = vunpack.c.l.b16 %v936
    %v976 = vunpack.c.l.b16 %v937
    %v977 = vunpack.c.l.b16 %v938
    %v978 = vunpack.c.l.b16 %v939
    %v979 = vunpack.c.l.b16 %v940
    %v980 = vunpack.c.l.b16 %v941
    %v981 = vunpack.c.l.b16 %v942
    %v982 = vunpack.c.l.b16 %v943
    %v983 = vunpack.c.l.b16 %v944
    %v984 = vunpack.c.l.b16 %v945
    %v985 = vunpack.c.l.b16 %v946
    %v986 = vunpack.c.l.b16 %v947
    %v987 = vunpack.c.l.b16 %v948
    %v988 = vunpack.c.l.b16 %v949
    %v989 = vunpack.c.l.b16 %v950
    %v990 = vunpack.c.l.b16 %v951
    %v991 = vpack.c.b16 %v976, %v975
    %v992 = vpack.c.b16 %v978, %v977
    %v993 = vpack.c.b16 %v980, %v979
    %v994 = vpack.c.b16 %v982, %v981
    %v995 = vpack.c.b16 %v984, %v983
    %v996 = vpack.c.b16 %v986, %v985
    %v997 = vpack.c.b16 %v988, %v987
    %v998 = vpack.c.b16 %v990, %v989
    %1007 = vmatprep.subr.bf16.mxu0 0
    %1008 = vmatpush1.bf16.msra.mxu0 %v991
    %1009 = vmatprep.subr.bf16.mxu0 0
    %1010 = vmatpush1.bf16.msra.mxu0 %v992
    %1011 = vmatprep.subr.bf16.mxu0 0
    %1012 = vmatpush1.bf16.msra.mxu0 %v993
    %1013 = vmatprep.subr.bf16.mxu0 0
    %1014 = vmatpush1.bf16.msra.mxu0 %v994
    %1015 = vmatprep.subr.bf16.mxu0 0
    %1016 = vmatpush1.bf16.msra.mxu0 %v995
    %1017 = vmatprep.subr.bf16.mxu0 0
    %1018 = vmatpush1.bf16.msra.mxu0 %v996
    %1019 = vmatprep.subr.bf16.mxu0 0
    %1020 = vmatpush1.bf16.msra.mxu0 %v997
    %1021 = vmatprep.subr.bf16.mxu0 0
    %1022 = vmatpush1.bf16.msra.mxu0 %v998
    %1023 = vmatprep.subr.bf16.mxu0 0
    %1024 = vmatpush1.bf16.msra.mxu0 0
    %1025 = vmatprep.subr.bf16.mxu0 0
    %1026 = vmatpush1.bf16.msra.mxu0 0
    %1027 = vmatprep.subr.bf16.mxu0 0
    %1028 = vmatpush1.bf16.msra.mxu0 0
    %1029 = vmatprep.subr.bf16.mxu0 0
    %1030 = vmatpush1.bf16.msra.mxu0 0
    %1031 = vmatprep.subr.bf16.mxu0 0
    %1032 = vmatpush1.bf16.msra.mxu0 0
    %1033 = vmatprep.subr.bf16.mxu0 0
    %1034 = vmatpush1.bf16.msra.mxu0 0
    %1035 = vmatprep.subr.bf16.mxu0 0
    %1036 = vmatpush1.bf16.msra.mxu0 0
    %1037 = vmatprep.subr.bf16.mxu0 0
    %1038 = vmatpush1.bf16.msra.mxu0 0
    %1039 = vmatprep.mubr.bf16.mxu0 0
    %1040 = vmatmul.mubr.bf16.gmra.mrb[0].mxu0 %v935
    %v1041 = vpop.f32.mrb[0].mxu0
    %v1042 = vadd.f32 %v957, %v1041
    %v1043 = vpop.f32.mrb[0].mxu0
    %v1044 = vpop.f32.mrb[0].mxu0
    %v1045 = vpop.f32.mrb[0].mxu0
    %1046 = vdwg.mxu0
    %v1047 = vmax.f32 %v1042, 0.0
    %v1048 = vpack.c.bf16 %v1047, %v1047
    %v1049 = vld [vmem:[#allocation23] sm:$0xf]
    %v1050 = vld [vmem:[#allocation23 + $0x4] sm:$0xf]
    %v1051 = vld [vmem:[#allocation23 + $0x8] sm:$0xf]
    %v1052 = vld [vmem:[#allocation23 + $0xc] sm:$0xf]
    %v1053 = vld [vmem:[#allocation23 + $0x10] sm:$0xf]
    %v1054 = vld [vmem:[#allocation23 + $0x14] sm:$0xf]
    %v1055 = vld [vmem:[#allocation23 + $0x18] sm:$0xf]
    %v1056 = vld [vmem:[#allocation23 + $0x1c] sm:$0xf]
    %v1057 = vld [vmem:[#allocation23 + $0x20] sm:$0xf]
    %v1058 = vld [vmem:[#allocation23 + $0x24] sm:$0xf]
    %v1059 = vld [vmem:[#allocation23 + $0x28] sm:$0xf]
    %v1060 = vld [vmem:[#allocation23 + $0x2c] sm:$0xf]
    %v1061 = vld [vmem:[#allocation23 + $0x30] sm:$0xf]
    %v1062 = vld [vmem:[#allocation23 + $0x34] sm:$0xf]
    %v1063 = vld [vmem:[#allocation23 + $0x38] sm:$0xf]
    %v1064 = vld [vmem:[#allocation23 + $0x3c] sm:$0xf]
    %v1065 = vld [vmem:[#allocation25] sm:$0x1]
    %v1067 = vlaneseq
    %v1068 = vshrl.u32 %v1067, 7
    %v1069 = vsub.s32 0, %v1068
    %v1070 = vrot.slane %v1065, %v1069
    %v1088 = vunpack.c.l.b16 %v1049
    %v1089 = vunpack.c.l.b16 %v1050
    %v1090 = vunpack.c.l.b16 %v1051
    %v1091 = vunpack.c.l.b16 %v1052
    %v1092 = vunpack.c.l.b16 %v1053
    %v1093 = vunpack.c.l.b16 %v1054
    %v1094 = vunpack.c.l.b16 %v1055
    %v1095 = vunpack.c.l.b16 %v1056
    %v1096 = vunpack.c.l.b16 %v1057
    %v1097 = vunpack.c.l.b16 %v1058
    %v1098 = vunpack.c.l.b16 %v1059
    %v1099 = vunpack.c.l.b16 %v1060
    %v1100 = vunpack.c.l.b16 %v1061
    %v1101 = vunpack.c.l.b16 %v1062
    %v1102 = vunpack.c.l.b16 %v1063
    %v1103 = vunpack.c.l.b16 %v1064
    %v1104 = vpack.c.b16 %v1089, %v1088
    %v1105 = vpack.c.b16 %v1091, %v1090
    %v1106 = vpack.c.b16 %v1093, %v1092
    %v1107 = vpack.c.b16 %v1095, %v1094
    %v1108 = vpack.c.b16 %v1097, %v1096
    %v1109 = vpack.c.b16 %v1099, %v1098
    %v1110 = vpack.c.b16 %v1101, %v1100
    %v1111 = vpack.c.b16 %v1103, %v1102
    %1120 = vmatprep.subr.bf16.mxu0 0
    %1121 = vmatpush1.bf16.msra.mxu0 %v1104
    %1122 = vmatprep.subr.bf16.mxu0 0
    %1123 = vmatpush1.bf16.msra.mxu0 %v1105
    %1124 = vmatprep.subr.bf16.mxu0 0
    %1125 = vmatpush1.bf16.msra.mxu0 %v1106
    %1126 = vmatprep.subr.bf16.mxu0 0
    %1127 = vmatpush1.bf16.msra.mxu0 %v1107
    %1128 = vmatprep.subr.bf16.mxu0 0
    %1129 = vmatpush1.bf16.msra.mxu0 %v1108
    %1130 = vmatprep.subr.bf16.mxu0 0
    %1131 = vmatpush1.bf16.msra.mxu0 %v1109
    %1132 = vmatprep.subr.bf16.mxu0 0
    %1133 = vmatpush1.bf16.msra.mxu0 %v1110
    %1134 = vmatprep.subr.bf16.mxu0 0
    %1135 = vmatpush1.bf16.msra.mxu0 %v1111
    %1136 = vmatprep.subr.bf16.mxu0 0
    %1137 = vmatpush1.bf16.msra.mxu0 0
    %1138 = vmatprep.subr.bf16.mxu0 0
    %1139 = vmatpush1.bf16.msra.mxu0 0
    %1140 = vmatprep.subr.bf16.mxu0 0
    %1141 = vmatpush1.bf16.msra.mxu0 0
    %1142 = vmatprep.subr.bf16.mxu0 0
    %1143 = vmatpush1.bf16.msra.mxu0 0
    %1144 = vmatprep.subr.bf16.mxu0 0
    %1145 = vmatpush1.bf16.msra.mxu0 0
    %1146 = vmatprep.subr.bf16.mxu0 0
    %1147 = vmatpush1.bf16.msra.mxu0 0
    %1148 = vmatprep.subr.bf16.mxu0 0
    %1149 = vmatpush1.bf16.msra.mxu0 0
    %1150 = vmatprep.subr.bf16.mxu0 0
    %1151 = vmatpush1.bf16.msra.mxu0 0
    %1152 = vmatprep.mubr.bf16.mxu0 0
    %1153 = vmatmul.mubr.bf16.gmra.mrb[0].mxu0 %v1048
    %v1154 = vpop.f32.mrb[0].mxu0
    %v1155 = vadd.f32 %v1070, %v1154
    %v1156 = vpop.f32.mrb[0].mxu0
    %v1157 = vpop.f32.mrb[0].mxu0
    %v1158 = vpop.f32.mrb[0].mxu0
    %1159 = vdwg.mxu0
    %v1160 = vmax.f32 %v1155, 0.0
    %v1161 = vpack.c.bf16 %v1160, %v1160
    %v1162 = vld [vmem:[#allocation26] sm:$0xf]
    %v1163 = vld [vmem:[#allocation26 + $0x4] sm:$0xf]
    %v1164 = vld [vmem:[#allocation26 + $0x8] sm:$0xf]
    %v1165 = vld [vmem:[#allocation26 + $0xc] sm:$0xf]
    %v1166 = vld [vmem:[#allocation26 + $0x10] sm:$0xf]
    %v1167 = vld [vmem:[#allocation26 + $0x14] sm:$0xf]
    %v1168 = vld [vmem:[#allocation26 + $0x18] sm:$0xf]
    %v1169 = vld [vmem:[#allocation26 + $0x1c] sm:$0xf]
    %v1170 = vld [vmem:[#allocation26 + $0x20] sm:$0xf]
    %v1171 = vld [vmem:[#allocation26 + $0x24] sm:$0xf]
    %v1172 = vld [vmem:[#allocation26 + $0x28] sm:$0xf]
    %v1173 = vld [vmem:[#allocation26 + $0x2c] sm:$0xf]
    %v1174 = vld [vmem:[#allocation26 + $0x30] sm:$0xf]
    %v1175 = vld [vmem:[#allocation26 + $0x34] sm:$0xf]
    %v1176 = vld [vmem:[#allocation26 + $0x38] sm:$0xf]
    %v1177 = vld [vmem:[#allocation26 + $0x3c] sm:$0xf]
    %v1178 = vld [vmem:[#allocation28] sm:$0x1]
    %v1180 = vlaneseq
    %v1181 = vshrl.u32 %v1180, 7
    %v1182 = vsub.s32 0, %v1181
    %v1183 = vrot.slane %v1178, %v1182
    %v1201 = vunpack.c.l.b16 %v1162
    %v1202 = vunpack.c.l.b16 %v1163
    %v1203 = vunpack.c.l.b16 %v1164
    %v1204 = vunpack.c.l.b16 %v1165
    %v1205 = vunpack.c.l.b16 %v1166
    %v1206 = vunpack.c.l.b16 %v1167
    %v1207 = vunpack.c.l.b16 %v1168
    %v1208 = vunpack.c.l.b16 %v1169
    %v1209 = vunpack.c.l.b16 %v1170
    %v1210 = vunpack.c.l.b16 %v1171
    %v1211 = vunpack.c.l.b16 %v1172
    %v1212 = vunpack.c.l.b16 %v1173
    %v1213 = vunpack.c.l.b16 %v1174
    %v1214 = vunpack.c.l.b16 %v1175
    %v1215 = vunpack.c.l.b16 %v1176
    %v1216 = vunpack.c.l.b16 %v1177
    %v1217 = vpack.c.b16 %v1202, %v1201
    %v1218 = vpack.c.b16 %v1204, %v1203
    %v1219 = vpack.c.b16 %v1206, %v1205
    %v1220 = vpack.c.b16 %v1208, %v1207
    %v1221 = vpack.c.b16 %v1210, %v1209
    %v1222 = vpack.c.b16 %v1212, %v1211
    %v1223 = vpack.c.b16 %v1214, %v1213
    %v1224 = vpack.c.b16 %v1216, %v1215
    %1233 = vmatprep.subr.bf16.mxu0 0
    %1234 = vmatpush1.bf16.msra.mxu0 %v1217
    %1235 = vmatprep.subr.bf16.mxu0 0
    %1236 = vmatpush1.bf16.msra.mxu0 %v1218
    %1237 = vmatprep.subr.bf16.mxu0 0
    %1238 = vmatpush1.bf16.msra.mxu0 %v1219
    %1239 = vmatprep.subr.bf16.mxu0 0
    %1240 = vmatpush1.bf16.msra.mxu0 %v1220
    %1241 = vmatprep.subr.bf16.mxu0 0
    %1242 = vmatpush1.bf16.msra.mxu0 %v1221
    %1243 = vmatprep.subr.bf16.mxu0 0
    %1244 = vmatpush1.bf16.msra.mxu0 %v1222
    %1245 = vmatprep.subr.bf16.mxu0 0
    %1246 = vmatpush1.bf16.msra.mxu0 %v1223
    %1247 = vmatprep.subr.bf16.mxu0 0
    %1248 = vmatpush1.bf16.msra.mxu0 %v1224
    %1249 = vmatprep.subr.bf16.mxu0 0
    %1250 = vmatpush1.bf16.msra.mxu0 0
    %1251 = vmatprep.subr.bf16.mxu0 0
    %1252 = vmatpush1.bf16.msra.mxu0 0
    %1253 = vmatprep.subr.bf16.mxu0 0
    %1254 = vmatpush1.bf16.msra.mxu0 0
    %1255 = vmatprep.subr.bf16.mxu0 0
    %1256 = vmatpush1.bf16.msra.mxu0 0
    %1257 = vmatprep.subr.bf16.mxu0 0
    %1258 = vmatpush1.bf16.msra.mxu0 0
    %1259 = vmatprep.subr.bf16.mxu0 0
    %1260 = vmatpush1.bf16.msra.mxu0 0
    %1261 = vmatprep.subr.bf16.mxu0 0
    %1262 = vmatpush1.bf16.msra.mxu0 0
    %1263 = vmatprep.subr.bf16.mxu0 0
    %1264 = vmatpush1.bf16.msra.mxu0 0
    %1265 = vmatprep.mubr.bf16.mxu0 0
    %1266 = vmatmul.mubr.bf16.gmra.mrb[0].mxu0 %v1161
    %v1267 = vpop.f32.mrb[0].mxu0
    %v1268 = vadd.f32 %v1183, %v1267
    %v1269 = vpop.f32.mrb[0].mxu0
    %v1270 = vpop.f32.mrb[0].mxu0
    %v1271 = vpop.f32.mrb[0].mxu0
    %1272 = vdwg.mxu0
    %v1273 = vmax.f32 %v1268, 0.0
    %v1274 = vpack.c.bf16 %v1273, %v1273
    %v1275 = vld [vmem:[%s17] sm:$0xf]
    %v1276 = vld [vmem:[%s17 + $0x4] sm:$0xf]
    %v1277 = vld [vmem:[%s17 + $0x8] sm:$0xf]
    %v1278 = vld [vmem:[%s17 + $0xc] sm:$0xf]
    %v1279 = vld [vmem:[%s17 + $0x10] sm:$0xf]
    %v1280 = vld [vmem:[%s17 + $0x14] sm:$0xf]
    %v1281 = vld [vmem:[%s17 + $0x18] sm:$0xf]
    %v1282 = vld [vmem:[%s17 + $0x1c] sm:$0xf]
    %v1283 = vld [vmem:[%s17 + $0x20] sm:$0xf]
    %v1284 = vld [vmem:[%s17 + $0x24] sm:$0xf]
    %v1285 = vld [vmem:[%s17 + $0x28] sm:$0xf]
    %v1286 = vld [vmem:[%s17 + $0x2c] sm:$0xf]
    %v1287 = vld [vmem:[%s17 + $0x30] sm:$0xf]
    %v1288 = vld [vmem:[%s17 + $0x34] sm:$0xf]
    %v1289 = vld [vmem:[%s17 + $0x38] sm:$0xf]
    %v1290 = vld [vmem:[%s17 + $0x3c] sm:$0xf]
    %v1291 = vld [vmem:[%s18] sm:$0x1]
    %v1293 = vlaneseq
    %v1294 = vshrl.u32 %v1293, 7
    %v1295 = vsub.s32 0, %v1294
    %v1296 = vrot.slane %v1291, %v1295
    %v1314 = vunpack.c.l.b16 %v1275
    %v1315 = vunpack.c.l.b16 %v1276
    %v1316 = vunpack.c.l.b16 %v1277
    %v1317 = vunpack.c.l.b16 %v1278
    %v1318 = vunpack.c.l.b16 %v1279
    %v1319 = vunpack.c.l.b16 %v1280
    %v1320 = vunpack.c.l.b16 %v1281
    %v1321 = vunpack.c.l.b16 %v1282
    %v1322 = vunpack.c.l.b16 %v1283
    %v1323 = vunpack.c.l.b16 %v1284
    %v1324 = vunpack.c.l.b16 %v1285
    %v1325 = vunpack.c.l.b16 %v1286
    %v1326 = vunpack.c.l.b16 %v1287
    %v1327 = vunpack.c.l.b16 %v1288
    %v1328 = vunpack.c.l.b16 %v1289
    %v1329 = vunpack.c.l.b16 %v1290
    %v1330 = vpack.c.b16 %v1315, %v1314
    %v1331 = vpack.c.b16 %v1317, %v1316
    %v1332 = vpack.c.b16 %v1319, %v1318
    %v1333 = vpack.c.b16 %v1321, %v1320
    %v1334 = vpack.c.b16 %v1323, %v1322
    %v1335 = vpack.c.b16 %v1325, %v1324
    %v1336 = vpack.c.b16 %v1327, %v1326
    %v1337 = vpack.c.b16 %v1329, %v1328
    %1346 = vmatprep.subr.bf16.mxu0 0
    %1347 = vmatpush1.bf16.msra.mxu0 %v1330
    %1348 = vmatprep.subr.bf16.mxu0 0
    %1349 = vmatpush1.bf16.msra.mxu0 %v1331
    %1350 = vmatprep.subr.bf16.mxu0 0
    %1351 = vmatpush1.bf16.msra.mxu0 %v1332
    %1352 = vmatprep.subr.bf16.mxu0 0
    %1353 = vmatpush1.bf16.msra.mxu0 %v1333
    %1354 = vmatprep.subr.bf16.mxu0 0
    %1355 = vmatpush1.bf16.msra.mxu0 %v1334
    %1356 = vmatprep.subr.bf16.mxu0 0
    %1357 = vmatpush1.bf16.msra.mxu0 %v1335
    %1358 = vmatprep.subr.bf16.mxu0 0
    %1359 = vmatpush1.bf16.msra.mxu0 %v1336
    %1360 = vmatprep.subr.bf16.mxu0 0
    %1361 = vmatpush1.bf16.msra.mxu0 %v1337
    %1362 = vmatprep.subr.bf16.mxu0 0
    %1363 = vmatpush1.bf16.msra.mxu0 0
    %1364 = vmatprep.subr.bf16.mxu0 0
    %1365 = vmatpush1.bf16.msra.mxu0 0
    %1366 = vmatprep.subr.bf16.mxu0 0
    %1367 = vmatpush1.bf16.msra.mxu0 0
    %1368 = vmatprep.subr.bf16.mxu0 0
    %1369 = vmatpush1.bf16.msra.mxu0 0
    %1370 = vmatprep.subr.bf16.mxu0 0
    %1371 = vmatpush1.bf16.msra.mxu0 0
    %1372 = vmatprep.subr.bf16.mxu0 0
    %1373 = vmatpush1.bf16.msra.mxu0 0
    %1374 = vmatprep.subr.bf16.mxu0 0
    %1375 = vmatpush1.bf16.msra.mxu0 0
    %1376 = vmatprep.subr.bf16.mxu0 0
    %1377 = vmatpush1.bf16.msra.mxu0 0
    %1378 = vmatprep.mubr.bf16.mxu0 0
    %1379 = vmatmul.mubr.bf16.gmra.mrb[0].mxu0 %v1274
    %v1380 = vpop.f32.mrb[0].mxu0
    %v1381 = vadd.f32 %v1296, %v1380
    %v1382 = vpop.f32.mrb[0].mxu0
    %v1383 = vpop.f32.mrb[0].mxu0
    %v1384 = vpop.f32.mrb[0].mxu0
    %1385 = vdwg.mxu0
    %v1386 = vmax.f32 %v1381, 0.0
    %v1387 = vpack.c.bf16 %v1386, %v1386
    %v1388 = vld [vmem:[#allocation29] sm:$0xff]
    %v1389 = vld [vmem:[#allocation29 + $0x8] sm:$0xff]
    %v1390 = vld [vmem:[#allocation29 + $0x10] sm:$0xff]
    %v1391 = vld [vmem:[#allocation29 + $0x18] sm:$0xff]
    %v1392 = vld [vmem:[#allocation29 + $0x20] sm:$0xff]
    %v1393 = vld [vmem:[#allocation29 + $0x28] sm:$0xff]
    %v1394 = vld [vmem:[#allocation29 + $0x30] sm:$0xff]
    %v1395 = vld [vmem:[#allocation29 + $0x38] sm:$0xff]
    %v1396 = vld [vmem:[#allocation29 + $0x40] sm:$0xff]
    %v1397 = vld [vmem:[#allocation29 + $0x48] sm:$0xff]
    %v1398 = vld [vmem:[#allocation29 + $0x50] sm:$0xff]
    %v1399 = vld [vmem:[#allocation29 + $0x58] sm:$0xff]
    %v1400 = vld [vmem:[#allocation29 + $0x60] sm:$0xff]
    %v1401 = vld [vmem:[#allocation29 + $0x68] sm:$0xff]
    %v1402 = vld [vmem:[#allocation29 + $0x70] sm:$0xff]
    %v1403 = vld [vmem:[#allocation29 + $0x78] sm:$0xff]
    %v1404 = vld [vmem:[%s20] sm:$0x3]
    %v1406 = vlaneseq
    %v1407 = vshrl.u32 %v1406, 7
    %v1408 = vsub.s32 0, %v1407
    %v1409 = vrot.slane %v1404, %v1408
    %v1410 = vlaneseq
    %v1411 = vshrl.u32 %v1410, 7
    %v1412 = vsub.s32 1, %v1411
    %v1413 = vrot.slane %v1404, %v1412
    %v1432 = vunpack.c.l.b16 %v1388
    %v1433 = vunpack.c.h.b16 %v1388
    %v1434 = vunpack.c.l.b16 %v1389
    %v1435 = vunpack.c.h.b16 %v1389
    %v1436 = vunpack.c.l.b16 %v1390
    %v1437 = vunpack.c.h.b16 %v1390
    %v1438 = vunpack.c.l.b16 %v1391
    %v1439 = vunpack.c.h.b16 %v1391
    %v1440 = vunpack.c.l.b16 %v1392
    %v1441 = vunpack.c.h.b16 %v1392
    %v1442 = vunpack.c.l.b16 %v1393
    %v1443 = vunpack.c.h.b16 %v1393
    %v1444 = vunpack.c.l.b16 %v1394
    %v1445 = vunpack.c.h.b16 %v1394
    %v1446 = vunpack.c.l.b16 %v1395
    %v1447 = vunpack.c.h.b16 %v1395
    %v1448 = vunpack.c.l.b16 %v1396
    %v1449 = vunpack.c.h.b16 %v1396
    %v1450 = vunpack.c.l.b16 %v1397
    %v1451 = vunpack.c.h.b16 %v1397
    %v1452 = vunpack.c.l.b16 %v1398
    %v1453 = vunpack.c.h.b16 %v1398
    %v1454 = vunpack.c.l.b16 %v1399
    %v1455 = vunpack.c.h.b16 %v1399
    %v1456 = vunpack.c.l.b16 %v1400
    %v1457 = vunpack.c.h.b16 %v1400
    %v1458 = vunpack.c.l.b16 %v1401
    %v1459 = vunpack.c.h.b16 %v1401
    %v1460 = vunpack.c.l.b16 %v1402
    %v1461 = vunpack.c.h.b16 %v1402
    %v1462 = vunpack.c.l.b16 %v1403
    %v1463 = vunpack.c.h.b16 %v1403
    %v1464 = vpack.c.b16 %v1434, %v1432
    %v1465 = vpack.c.b16 %v1435, %v1433
    %v1466 = vpack.c.b16 %v1438, %v1436
    %v1467 = vpack.c.b16 %v1439, %v1437
    %v1468 = vpack.c.b16 %v1442, %v1440
    %v1469 = vpack.c.b16 %v1443, %v1441
    %v1470 = vpack.c.b16 %v1446, %v1444
    %v1471 = vpack.c.b16 %v1447, %v1445
    %v1472 = vpack.c.b16 %v1450, %v1448
    %v1473 = vpack.c.b16 %v1451, %v1449
    %v1474 = vpack.c.b16 %v1454, %v1452
    %v1475 = vpack.c.b16 %v1455, %v1453
    %v1476 = vpack.c.b16 %v1458, %v1456
    %v1477 = vpack.c.b16 %v1459, %v1457
    %v1478 = vpack.c.b16 %v1462, %v1460
    %v1479 = vpack.c.b16 %v1463, %v1461
    %1496 = vmatprep.subr.bf16.mxu0 %v1465
    %1497 = vmatpush1.bf16.msra.mxu0 %v1464
    %1498 = vmatprep.subr.bf16.mxu0 %v1467
    %1499 = vmatpush1.bf16.msra.mxu0 %v1466
    %1500 = vmatprep.subr.bf16.mxu0 %v1469
    %1501 = vmatpush1.bf16.msra.mxu0 %v1468
    %1502 = vmatprep.subr.bf16.mxu0 %v1471
    %1503 = vmatpush1.bf16.msra.mxu0 %v1470
    %1504 = vmatprep.subr.bf16.mxu0 %v1473
    %1505 = vmatpush1.bf16.msra.mxu0 %v1472
    %1506 = vmatprep.subr.bf16.mxu0 %v1475
    %1507 = vmatpush1.bf16.msra.mxu0 %v1474
    %1508 = vmatprep.subr.bf16.mxu0 %v1477
    %1509 = vmatpush1.bf16.msra.mxu0 %v1476
    %1510 = vmatprep.subr.bf16.mxu0 %v1479
    %1511 = vmatpush1.bf16.msra.mxu0 %v1478
    %1512 = vmatprep.subr.bf16.mxu0 0
    %1513 = vmatpush1.bf16.msra.mxu0 0
    %1514 = vmatprep.subr.bf16.mxu0 0
    %1515 = vmatpush1.bf16.msra.mxu0 0
    %1516 = vmatprep.subr.bf16.mxu0 0
    %1517 = vmatpush1.bf16.msra.mxu0 0
    %1518 = vmatprep.subr.bf16.mxu0 0
    %1519 = vmatpush1.bf16.msra.mxu0 0
    %1520 = vmatprep.subr.bf16.mxu0 0
    %1521 = vmatpush1.bf16.msra.mxu0 0
    %1522 = vmatprep.subr.bf16.mxu0 0
    %1523 = vmatpush1.bf16.msra.mxu0 0
    %1524 = vmatprep.subr.bf16.mxu0 0
    %1525 = vmatpush1.bf16.msra.mxu0 0
    %1526 = vmatprep.subr.bf16.mxu0 0
    %1527 = vmatpush1.bf16.msra.mxu0 0
    %1528 = vmatprep.mubr.bf16.mxu0 0
    %1529 = vmatmul.mubr.bf16.gmra.mrb[0].mxu0 %v1387
    %v1530 = vpop.f32.mrb[0].mxu0
    %v1531 = vadd.f32 %v1409, %v1530
    %v1532 = vpop.f32.mrb[0].mxu0
    %v1533 = vadd.f32 %v1413, %v1532
    %v1534 = vpop.f32.mrb[0].mxu0
    %v1535 = vpop.f32.mrb[0].mxu0
    %1536 = vdwg.mxu0
    %v1537 = vmax.f32 %v1531, 0.0
    %v1538 = vmax.f32 %v1533, 0.0
    %v1539 = vpack.c.bf16 %v1537, %v1537
    %v1540 = vpack.c.bf16 %v1538, %v1538
    %v1543 = vunpack.c.l.b16 %v1539
    %v1544 = vunpack.c.l.b16 %v1540
    %v1545 = vpack.c.b16 %v1544, %v1543
    %1547 = vst [vmem:[#allocation31] sm:$0xff] %v1545
    // Predicated region
    $region158: #{tpu_custom_call.1} parent=1 // pred_check
      _
    $region159: #{tpu_custom_call.1} parent=1 // pred_check_branch
      %1549 = sbr.rel (0) target = $region161
    $region160: #{tpu_custom_call.1} parent=1 // pred_region
      %s1551 = ssub.s32 128, 128
      %1552 = vsyncadd [#allocation4], %s1551
      %s1554 = sshll.u32 [#allocation31], 4
      %s1555 = int_to_ptr.vmem [resolvable:$true] %s1554
      %1557 = dma.vmem_to_hbm [thread:$0]  %s1555, 128, %s21, [#allocation4]
    $region161: #{tpu_custom_call.1} parent=1 // pred_fallthru
      _
    // Predicated region
    $region162: #{tpu_custom_call.1} parent=1 // pred_check
      _
    $region163: #{tpu_custom_call.1} parent=1 // pred_check_branch
      %1559 = sbr.rel (0) target = $region165
    $region164: #{tpu_custom_call.1} parent=1 // pred_region
      %s1561 = ssub.s32 128, 128
      %1562 = vsyncadd [#allocation33], %s1561
      %s1564 = sshll.u32 [#allocation32], 4
      %s1565 = int_to_ptr.vmem [resolvable:$true] %s1564
      %1567 = dma.vmem_to_hbm [thread:$0]  %s1565, 128, %s22, [#allocation33]
    $region165: #{tpu_custom_call.1} parent=1 // pred_fallthru
      _
    // Predicated region
    $region166: #{tpu_custom_call.1} parent=1 // pred_check
      _
    $region167: #{tpu_custom_call.1} parent=1 // pred_check_branch
      %1569 = sbr.rel (0) target = $region169
    $region168: #{tpu_custom_call.1} parent=1 // pred_region
      %1570 = dma.done [#allocation4], 128
    $region169: #{tpu_custom_call.1} parent=1 // pred_fallthru
      _
    // Predicated region
    $region170: #{tpu_custom_call.1} parent=1 // pred_check
      _
    $region171: #{tpu_custom_call.1} parent=1 // pred_check_branch
      %1572 = sbr.rel (0) target = $region173
    $region172: #{tpu_custom_call.1} parent=1 // pred_region
      %1573 = dma.done [#allocation33], 128
    $region173: #{tpu_custom_call.1} parent=1 // pred_fallthru
      _
    %1574 = vsyncpa [#allocation3], 1
    %1575 = vsyncpa [#allocation6], 1
    %1576 = vsyncpa [#allocation9], 1
    %1577 = vsyncpa [#allocation12], 1
    %1578 = vsyncpa [#allocation15], 1
    %1579 = vsyncpa [#allocation18], 1
    %1580 = vsyncpa [#allocation21], 1
    %1581 = vsyncpa [#allocation24], 1
    %1582 = vsyncpa [#allocation27], 1
    %1583 = vsyncpa [#allocation30], 1
    %1584 = vsyncpa [#allocation4], 1
    %1585 = vsyncpa [#allocation33], 1

// kernel: tpu_custom_call.1
$region0: #{tpu_custom_call.1}
  #allocation0 [shape = 'u32[]', space=smem, size = 0x4, offset = 0x4, fixed_abs, tag = 'smem constant byte address 0x4 - core index']
  #allocation1 [shape = 'u32[144,128]{1,0:T(1,128)}', space=vmem, size = 0x12000, scoped, tag = 'internal scratch']
  %s0 = inlined_call_operand.hbm [shape: bf16[8,256], index: 0, kind: input, shape index: {}]
  %s1 = inlined_call_operand.hbm [shape: bf16[256,128], index: 1, kind: input, shape index: {}]
  %s2 = inlined_call_operand.hbm [shape: f32[1,128], index: 2, kind: input, shape index: {}]
  %s3 = inlined_call_operand.hbm [shape: bf16[128,128], index: 3, kind: input, shape index: {}]
  %s4 = inlined_call_operand.hbm [shape: f32[1,128], index: 4, kind: input, shape index: {}]
  %s5 = inlined_call_operand.hbm [shape: bf16[128,128], index: 5, kind: input, shape index: {}]
  %s6 = inlined_call_operand.hbm [shape: f32[1,128], index: 6, kind: input, shape index: {}]
  %s7 = inlined_call_operand.hbm [shape: bf16[128,128], index: 7, kind: input, shape index: {}]
  %s8 = inlined_call_operand.hbm [shape: f32[1,128], index: 8, kind: input, shape index: {}]
  %s9 = inlined_call_operand.hbm [shape: bf16[128,128], index: 9, kind: input, shape index: {}]
  %s10 = inlined_call_operand.hbm [shape: f32[1,128], index: 10, kind: input, shape index: {}]
  %s11 = inlined_call_operand.hbm [shape: bf16[128,128], index: 11, kind: input, shape index: {}]
  %s12 = inlined_call_operand.hbm [shape: f32[1,128], index: 12, kind: input, shape index: {}]
  %s13 = inlined_call_operand.hbm [shape: bf16[128,128], index: 13, kind: input, shape index: {}]
  %s14 = inlined_call_operand.hbm [shape: f32[1,128], index: 14, kind: input, shape index: {}]
  %s15 = inlined_call_operand.hbm [shape: bf16[128,128], index: 15, kind: input, shape index: {}]
  %s16 = inlined_call_operand.hbm [shape: f32[1,128], index: 16, kind: input, shape index: {}]
  %s17 = inlined_call_operand.vmem [shape: bf16[128,128], index: 17, kind: input, shape index: {}]
  %s18 = inlined_call_operand.vmem [shape: f32[1,128], index: 18, kind: input, shape index: {}]
  %s19 = inlined_call_operand.hbm [shape: bf16[128,256], index: 19, kind: input, shape index: {}]
  %s20 = inlined_call_operand.vmem [shape: f32[1,256], index: 20, kind: input, shape index: {}]
  %s21 = inlined_call_operand.hbm [shape: bf16[8,256], index: 21, kind: output, shape index: {0}]
  %s22 = inlined_call_operand.hbm [shape: f32[8,128], index: 22, kind: output, shape index: {1}]
  %23 = xla_tuple %s21, %s22
  %s24 = sld [smem:[#allocation0]]
  $region174: #{tpu_custom_call.1} parent=0
    _
  %s26 = ssub.s32 1, %s24
  %s27 = scalar_select 0, %s26, %s24
  $region1: #{tpu_custom_call.1} parent=0
    #allocation2 [shape = 'u8[4096]{0}', space=vmem, size = 0x1000, scoped, tag = 'input window, operand 0, single buffered']
    #allocation3 [shape = 's32[1]{0}', space=sflag, size = 0x4, scoped, tag = 'scoped memory for tpu_custom_call.1']
    #allocation4 [shape = 's32[1]{0}', space=sflag, size = 0x4, scoped, tag = 'scoped memory for tpu_custom_call.1']
    #allocation5 [shape = 'u8[65536]{0}', space=vmem, size = 0x10000, scoped, tag = 'input window, operand 1, single buffered']
    #allocation6 [shape = 's32[1]{0}', space=sflag, size = 0x4, scoped, tag = 'scoped memory for tpu_custom_call.1']
    #allocation7 [shape = 'u8[512]{0}', space=vmem, size = 0x400, scoped, tag = 'input window, operand 2, single buffered']
    #allocation8 [shape = 'u8[32768]{0}', space=vmem, size = 0x8000, scoped, tag = 'input window, operand 3, single buffered']
    #allocation9 [shape = 's32[1]{0}', space=sflag, size = 0x4, scoped, tag = 'scoped memory for tpu_custom_call.1']
    #allocation10 [shape = 'u8[512]{0}', space=vmem, size = 0x400, scoped, tag = 'input window, operand 4, single buffered']
    #allocation11 [shape = 'u8[32768]{0}', space=vmem, size = 0x8000, scoped, tag = 'input window, operand 5, single buffered']
    #allocation12 [shape = 's32[1]{0}', space=sflag, size = 0x4, scoped, tag = 'scoped memory for tpu_custom_call.1']
    #allocation13 [shape = 'u8[512]{0}', space=vmem, size = 0x400, scoped, tag = 'input window, operand 6, single buffered']
    #allocation14 [shape = 'u8[32768]{0}', space=vmem, size = 0x8000, scoped, tag = 'input window, operand 7, single buffered']
    #allocation15 [shape = 's32[1]{0}', space=sflag, size = 0x4, scoped, tag = 'scoped memory for tpu_custom_call.1']
    #allocation16 [shape = 'u8[512]{0}', space=vmem, size = 0x400, scoped, tag = 'input window, operand 8, single buffered']
    #allocation17 [shape = 'u8[32768]{0}', space=vmem, size = 0x8000, scoped, tag = 'input window, operand 9, single buffered']
    #allocation18 [shape = 's32[1]{0}', space=sflag, size = 0x4, scoped, tag = 'scoped memory for tpu_custom_call.1']
    #allocation19 [shape = 'u8[512]{0}', space=vmem, size = 0x400, scoped, tag = 'input window, operand 10, single buffered']
    #allocation20 [shape = 'u8[32768]{0}', space=vmem, size = 0x8000, scoped, tag = 'input window, operand 11, single buffered']
    #allocation21 [shape = 's32[1]{0}', space=sflag, size = 0x4, scoped, tag = 'scoped memory for tpu_custom_call.1']
    #allocation22 [shape = 'u8[512]{0}', space=vmem, size = 0x400, scoped, tag = 'input window, operand 12, single buffered']
    #allocation23 [shape = 'u8[32768]{0}', space=vmem, size = 0x8000, scoped, tag = 'input window, operand 13, single buffered']
    #allocation24 [shape = 's32[1]{0}', space=sflag, size = 0x4, scoped, tag = 'scoped memory for tpu_custom_call.1']
    #allocation25 [shape = 'u8[512]{0}', space=vmem, size = 0x400, scoped, tag = 'input window, operand 14, single buffered']
    #allocation26 [shape = 'u8[32768]{0}', space=vmem, size = 0x8000, scoped, tag = 'input window, operand 15, single buffered']
    #allocation27 [shape = 's32[1]{0}', space=sflag, size = 0x4, scoped, tag = 'scoped memory for tpu_custom_call.1']
    #allocation28 [shape = 'u8[512]{0}', space=vmem, size = 0x400, scoped, tag = 'input window, operand 16, single buffered']
    #allocation29 [shape = 'u8[65536]{0}', space=vmem, size = 0x10000, scoped, tag = 'input window, operand 19, single buffered']
    #allocation30 [shape = 's32[1]{0}', space=sflag, size = 0x4, scoped, tag = 'scoped memory for tpu_custom_call.1']
    #allocation31 [shape = 'u8[4096]{0}', space=vmem, size = 0x1000, scoped, tag = 'output window, operand 0, single buffered']
    #allocation32 [shape = 'u8[4096]{0}', space=vmem, size = 0x1000, scoped, tag = 'output window, operand 1, single buffered']
    #allocation33 [shape = 's32[1]{0}', space=sflag, size = 0x4, scoped, tag = 'scoped memory for tpu_custom_call.1']
    %28 = vsyncpa [#allocation3], 0
    %29 = vsyncpa [#allocation6], 0
    %30 = vsyncpa [#allocation9], 0
    %31 = vsyncpa [#allocation12], 0
    %32 = vsyncpa [#allocation15], 0
    %33 = vsyncpa [#allocation18], 0
    %34 = vsyncpa [#allocation21], 0
    %35 = vsyncpa [#allocation24], 0
    %36 = vsyncpa [#allocation27], 0
    %37 = vsyncpa [#allocation30], 0
    %38 = vsyncpa [#allocation4], 0
    %39 = vsyncpa [#allocation33], 0
    // Predicated region
    $region2: #{tpu_custom_call.1} parent=1 // pred_check
      _
    $region3: #{tpu_custom_call.1} parent=1 // pred_check_branch
      %41 = sbr.rel (0) target = $region5
    $region4: #{tpu_custom_call.1} parent=1 // pred_region
      %s43 = ssub.s32 128, 128
      %44 = vsyncadd [#allocation3], %s43
      %s46 = sshll.u32 [#allocation2], 4
      %s47 = int_to_ptr.vmem [resolvable:$true] %s46
      %49 = dma.hbm_to_vmem [thread:$0]  %s0, 128, %s47, [#allocation3]
    $region5: #{tpu_custom_call.1} parent=1 // pred_fallthru
      _
    // Predicated region
    $region6: #{tpu_custom_call.1} parent=1 // pred_check
      _
    $region7: #{tpu_custom_call.1} parent=1 // pred_check_branch
      %51 = sbr.rel (0) target = $region9
    $region8: #{tpu_custom_call.1} parent=1 // pred_region
      %s53 = ssub.s32 2048, 2048
      %54 = vsyncadd [#allocation6], %s53
      %s55 = sshll.u32 [#allocation5], 4
      %s56 = int_to_ptr.vmem [resolvable:$true] %s55
      %61 = dma.hbm_to_vmem [thread:$0]  %s1, 2048, %s56, [#allocation6], 64, 64, 4
    $region9: #{tpu_custom_call.1} parent=1 // pred_fallthru
      _
    // Predicated region
    $region10: #{tpu_custom_call.1} parent=1 // pred_check
      _
    $region11: #{tpu_custom_call.1} parent=1 // pred_check_branch
      %63 = sbr.rel (0) target = $region13
    $region12: #{tpu_custom_call.1} parent=1 // pred_region
      %s65 = ssub.s32 16, 16
      %66 = vsyncadd [#allocation6], %s65
      %s68 = sshll.u32 [#allocation7], 4
      %s69 = int_to_ptr.vmem [resolvable:$true] %s68
      %71 = dma.hbm_to_vmem [thread:$0]  %s2, 16, %s69, [#allocation6]
    $region13: #{tpu_custom_call.1} parent=1 // pred_fallthru
      _
    // Predicated region
    $region14: #{tpu_custom_call.1} parent=1 // pred_check
      _
    $region15: #{tpu_custom_call.1} parent=1 // pred_check_branch
      %73 = sbr.rel (0) target = $region17
    $region16: #{tpu_custom_call.1} parent=1 // pred_region
      %s75 = ssub.s32 1024, 1024
      %76 = vsyncadd [#allocation9], %s75
      %s77 = sshll.u32 [#allocation8], 4
      %s78 = int_to_ptr.vmem [resolvable:$true] %s77
      %83 = dma.hbm_to_vmem [thread:$0]  %s3, 1024, %s78, [#allocation9], 64, 64, 4
    $region17: #{tpu_custom_call.1} parent=1 // pred_fallthru
      _
    // Predicated region
    $region18: #{tpu_custom_call.1} parent=1 // pred_check
      _
    $region19: #{tpu_custom_call.1} parent=1 // pred_check_branch
      %85 = sbr.rel (0) target = $region21
    $region20: #{tpu_custom_call.1} parent=1 // pred_region
      %s87 = ssub.s32 16, 16
      %88 = vsyncadd [#allocation9], %s87
      %s90 = sshll.u32 [#allocation10], 4
      %s91 = int_to_ptr.vmem [resolvable:$true] %s90
      %93 = dma.hbm_to_vmem [thread:$0]  %s4, 16, %s91, [#allocation9]
    $region21: #{tpu_custom_call.1} parent=1 // pred_fallthru
      _
    // Predicated region
    $region22: #{tpu_custom_call.1} parent=1 // pred_check
      _
    $region23: #{tpu_custom_call.1} parent=1 // pred_check_branch
      %95 = sbr.rel (0) target = $region25
    $region24: #{tpu_custom_call.1} parent=1 // pred_region
      %s97 = ssub.s32 1024, 1024
      %98 = vsyncadd [#allocation12], %s97
      %s99 = sshll.u32 [#allocation11], 4
      %s100 = int_to_ptr.vmem [resolvable:$true] %s99
      %105 = dma.hbm_to_vmem [thread:$0]  %s5, 1024, %s100, [#allocation12], 64, 64, 4
    $region25: #{tpu_custom_call.1} parent=1 // pred_fallthru
      _
    // Predicated region
    $region26: #{tpu_custom_call.1} parent=1 // pred_check
      _
    $region27: #{tpu_custom_call.1} parent=1 // pred_check_branch
      %107 = sbr.rel (0) target = $region29
    $region28: #{tpu_custom_call.1} parent=1 // pred_region
      %s109 = ssub.s32 16, 16
      %110 = vsyncadd [#allocation12], %s109
      %s112 = sshll.u32 [#allocation13], 4
      %s113 = int_to_ptr.vmem [resolvable:$true] %s112
      %115 = dma.hbm_to_vmem [thread:$0]  %s6, 16, %s113, [#allocation12]
    $region29: #{tpu_custom_call.1} parent=1 // pred_fallthru
      _
    // Predicated region
    $region30: #{tpu_custom_call.1} parent=1 // pred_check
      _
    $region31: #{tpu_custom_call.1} parent=1 // pred_check_branch
      %117 = sbr.rel (0) target = $region33
    $region32: #{tpu_custom_call.1} parent=1 // pred_region
      %s119 = ssub.s32 1024, 1024
      %120 = vsyncadd [#allocation15], %s119
      %s121 = sshll.u32 [#allocation14], 4
      %s122 = int_to_ptr.vmem [resolvable:$true] %s121
      %127 = dma.hbm_to_vmem [thread:$0]  %s7, 1024, %s122, [#allocation15], 64, 64, 4
    $region33: #{tpu_custom_call.1} parent=1 // pred_fallthru
      _
    // Predicated region
    $region34: #{tpu_custom_call.1} parent=1 // pred_check
      _
    $region35: #{tpu_custom_call.1} parent=1 // pred_check_branch
      %129 = sbr.rel (0) target = $region37
    $region36: #{tpu_custom_call.1} parent=1 // pred_region
      %s131 = ssub.s32 16, 16
      %132 = vsyncadd [#allocation15], %s131
      %s134 = sshll.u32 [#allocation16], 4
      %s135 = int_to_ptr.vmem [resolvable:$true] %s134
      %137 = dma.hbm_to_vmem [thread:$0]  %s8, 16, %s135, [#allocation15]
    $region37: #{tpu_custom_call.1} parent=1 // pred_fallthru
      _
    // Predicated region
    $region38: #{tpu_custom_call.1} parent=1 // pred_check
      _
    $region39: #{tpu_custom_call.1} parent=1 // pred_check_branch
      %139 = sbr.rel (0) target = $region41
    $region40: #{tpu_custom_call.1} parent=1 // pred_region
      %s141 = ssub.s32 1024, 1024
      %142 = vsyncadd [#allocation18], %s141
      %s143 = sshll.u32 [#allocation17], 4
      %s144 = int_to_ptr.vmem [resolvable:$true] %s143
      %149 = dma.hbm_to_vmem [thread:$0]  %s9, 1024, %s144, [#allocation18], 64, 64, 4
    $region41: #{tpu_custom_call.1} parent=1 // pred_fallthru
      _
    // Predicated region
    $region42: #{tpu_custom_call.1} parent=1 // pred_check
      _
    $region43: #{tpu_custom_call.1} parent=1 // pred_check_branch
      %151 = sbr.rel (0) target = $region45
    $region44: #{tpu_custom_call.1} parent=1 // pred_region
      %s153 = ssub.s32 16, 16
      %154 = vsyncadd [#allocation18], %s153
      %s156 = sshll.u32 [#allocation19], 4
      %s157 = int_to_ptr.vmem [resolvable:$true] %s156
      %159 = dma.hbm_to_vmem [thread:$0]  %s10, 16, %s157, [#allocation18]
    $region45: #{tpu_custom_call.1} parent=1 // pred_fallthru
      _
    // Predicated region
    $region46: #{tpu_custom_call.1} parent=1 // pred_check
      _
    $region47: #{tpu_custom_call.1} parent=1 // pred_check_branch
      %161 = sbr.rel (0) target = $region49
    $region48: #{tpu_custom_call.1} parent=1 // pred_region
      %s163 = ssub.s32 1024, 1024
      %164 = vsyncadd [#allocation21], %s163
      %s165 = sshll.u32 [#allocation20], 4
      %s166 = int_to_ptr.vmem [resolvable:$true] %s165
      %171 = dma.hbm_to_vmem [thread:$0]  %s11, 1024, %s166, [#allocation21], 64, 64, 4
    $region49: #{tpu_custom_call.1} parent=1 // pred_fallthru
      _
    // Predicated region
    $region50: #{tpu_custom_call.1} parent=1 // pred_check
      _
    $region51: #{tpu_custom_call.1} parent=1 // pred_check_branch
      %173 = sbr.rel (0) target = $region53
    $region52: #{tpu_custom_call.1} parent=1 // pred_region
      %s175 = ssub.s32 16, 16
      %176 = vsyncadd [#allocation21], %s175
      %s178 = sshll.u32 [#allocation22], 4
      %s179 = int_to_ptr.vmem [resolvable:$true] %s178
      %181 = dma.hbm_to_vmem [thread:$0]  %s12, 16, %s179, [#allocation21]
    $region53: #{tpu_custom_call.1} parent=1 // pred_fallthru
      _
    // Predicated region
    $region54: #{tpu_custom_call.1} parent=1 // pred_check
      _
    $region55: #{tpu_custom_call.1} parent=1 // pred_check_branch
      %183 = sbr.rel (0) target = $region57
    $region56: #{tpu_custom_call.1} parent=1 // pred_region
      %s185 = ssub.s32 1024, 1024
      %186 = vsyncadd [#allocation24], %s185
      %s187 = sshll.u32 [#allocation23], 4
      %s188 = int_to_ptr.vmem [resolvable:$true] %s187
      %193 = dma.hbm_to_vmem [thread:$0]  %s13, 1024, %s188, [#allocation24], 64, 64, 4
    $region57: #{tpu_custom_call.1} parent=1 // pred_fallthru
      _
    // Predicated region
    $region58: #{tpu_custom_call.1} parent=1 // pred_check
      _
    $region59: #{tpu_custom_call.1} parent=1 // pred_check_branch
      %195 = sbr.rel (0) target = $region61
    $region60: #{tpu_custom_call.1} parent=1 // pred_region
      %s197 = ssub.s32 16, 16
      %198 = vsyncadd [#allocation24], %s197
      %s200 = sshll.u32 [#allocation25], 4
      %s201 = int_to_ptr.vmem [resolvable:$true] %s200
      %203 = dma.hbm_to_vmem [thread:$0]  %s14, 16, %s201, [#allocation24]
    $region61: #{tpu_custom_call.1} parent=1 // pred_fallthru
      _
    // Predicated region
    $region62: #{tpu_custom_call.1} parent=1 // pred_check
      _
    $region63: #{tpu_custom_call.1} parent=1 // pred_check_branch
      %205 = sbr.rel (0) target = $region65
    $region64: #{tpu_custom_call.1} parent=1 // pred_region
      %s207 = ssub.s32 1024, 1024
      %208 = vsyncadd [#allocation27], %s207
      %s209 = sshll.u32 [#allocation26], 4
      %s210 = int_to_ptr.vmem [resolvable:$true] %s209
      %215 = dma.hbm_to_vmem [thread:$0]  %s15, 1024, %s210, [#allocation27], 64, 64, 4
    $region65: #{tpu_custom_call.1} parent=1 // pred_fallthru
      _
    // Predicated region
    $region66: #{tpu_custom_call.1} parent=1 // pred_check
      _
    $region67: #{tpu_custom_call.1} parent=1 // pred_check_branch
      %217 = sbr.rel (0) target = $region69
    $region68: #{tpu_custom_call.1} parent=1 // pred_region
      %s219 = ssub.s32 16, 16
      %220 = vsyncadd [#allocation27], %s219
      %s222 = sshll.u32 [#allocation28], 4
      %s223 = int_to_ptr.vmem [resolvable:$true] %s222
      %225 = dma.hbm_to_vmem [thread:$0]  %s16, 16, %s223, [#allocation27]
    $region69: #{tpu_custom_call.1} parent=1 // pred_fallthru
      _
    // Predicated region
    $region70: #{tpu_custom_call.1} parent=1 // pred_check
      _
    $region71: #{tpu_custom_call.1} parent=1 // pred_check_branch
      %227 = sbr.rel (0) target = $region73
    $region72: #{tpu_custom_call.1} parent=1 // pred_region
      _
    $region73: #{tpu_custom_call.1} parent=1 // pred_fallthru
      _
    // Predicated region
    $region74: #{tpu_custom_call.1} parent=1 // pred_check
      _
    $region75: #{tpu_custom_call.1} parent=1 // pred_check_branch
      %229 = sbr.rel (0) target = $region77
    $region76: #{tpu_custom_call.1} parent=1 // pred_region
      _
    $region77: #{tpu_custom_call.1} parent=1 // pred_fallthru
      _
    // Predicated region
    $region78: #{tpu_custom_call.1} parent=1 // pred_check
      _
    $region79: #{tpu_custom_call.1} parent=1 // pred_check_branch
      %231 = sbr.rel (0) target = $region81
    $region80: #{tpu_custom_call.1} parent=1 // pred_region
      %s233 = ssub.s32 2048, 2048
      %234 = vsyncadd [#allocation30], %s233
      %s235 = sshll.u32 [#allocation29], 4
      %s236 = int_to_ptr.vmem [resolvable:$true] %s235
      %241 = dma.hbm_to_vmem [thread:$0]  %s19, 2048, %s236, [#allocation30], 128, 128, 8
    $region81: #{tpu_custom_call.1} parent=1 // pred_fallthru
      _
    // Predicated region
    $region82: #{tpu_custom_call.1} parent=1 // pred_check
      _
    $region83: #{tpu_custom_call.1} parent=1 // pred_check_branch
      %243 = sbr.rel (0) target = $region85
    $region84: #{tpu_custom_call.1} parent=1 // pred_region
      _
    $region85: #{tpu_custom_call.1} parent=1 // pred_fallthru
      _
    // Predicated region
    $region86: #{tpu_custom_call.1} parent=1 // pred_check
      _
    $region87: #{tpu_custom_call.1} parent=1 // pred_check_branch
      %245 = sbr.rel (0) target = $region89
    $region88: #{tpu_custom_call.1} parent=1 // pred_region
      %246 = dma.done [#allocation3], 128
    $region89: #{tpu_custom_call.1} parent=1 // pred_fallthru
      _
    // Predicated region
    $region90: #{tpu_custom_call.1} parent=1 // pred_check
      _
    $region91: #{tpu_custom_call.1} parent=1 // pred_check_branch
      %248 = sbr.rel (0) target = $region93
    $region92: #{tpu_custom_call.1} parent=1 // pred_region
      %249 = dma.done [#allocation6], 2048
    $region93: #{tpu_custom_call.1} parent=1 // pred_fallthru
      _
    // Predicated region
    $region94: #{tpu_custom_call.1} parent=1 // pred_check
      _
    $region95: #{tpu_custom_call.1} parent=1 // pred_check_branch
      %251 = sbr.rel (0) target = $region97
    $region96: #{tpu_custom_call.1} parent=1 // pred_region
      %252 = dma.done [#allocation6], 16
    $region97: #{tpu_custom_call.1} parent=1 // pred_fallthru
      _
    // Predicated region
    $region98: #{tpu_custom_call.1} parent=1 // pred_check
      _
    $region99: #{tpu_custom_call.1} parent=1 // pred_check_branch
      %254 = sbr.rel (0) target = $region101
    $region100: #{tpu_custom_call.1} parent=1 // pred_region
      %255 = dma.done [#allocation9], 1024
    $region101: #{tpu_custom_call.1} parent=1 // pred_fallthru
      _
    // Predicated region
    $region102: #{tpu_custom_call.1} parent=1 // pred_check
      _
    $region103: #{tpu_custom_call.1} parent=1 // pred_check_branch
      %257 = sbr.rel (0) target = $region105
    $region104: #{tpu_custom_call.1} parent=1 // pred_region
      %258 = dma.done [#allocation9], 16
    $region105: #{tpu_custom_call.1} parent=1 // pred_fallthru
      _
    // Predicated region
    $region106: #{tpu_custom_call.1} parent=1 // pred_check
      _
    $region107: #{tpu_custom_call.1} parent=1 // pred_check_branch
      %260 = sbr.rel (0) target = $region109
    $region108: #{tpu_custom_call.1} parent=1 // pred_region
      %261 = dma.done [#allocation12], 1024
    $region109: #{tpu_custom_call.1} parent=1 // pred_fallthru
      _
    // Predicated region
    $region110: #{tpu_custom_call.1} parent=1 // pred_check
      _
    $region111: #{tpu_custom_call.1} parent=1 // pred_check_branch
      %263 = sbr.rel (0) target = $region113
    $region112: #{tpu_custom_call.1} parent=1 // pred_region
      %264 = dma.done [#allocation12], 16
    $region113: #{tpu_custom_call.1} parent=1 // pred_fallthru
      _
    // Predicated region
    $region114: #{tpu_custom_call.1} parent=1 // pred_check
      _
    $region115: #{tpu_custom_call.1} parent=1 // pred_check_branch
      %266 = sbr.rel (0) target = $region117
    $region116: #{tpu_custom_call.1} parent=1 // pred_region
      %267 = dma.done [#allocation15], 1024
    $region117: #{tpu_custom_call.1} parent=1 // pred_fallthru
      _
    // Predicated region
    $region118: #{tpu_custom_call.1} parent=1 // pred_check
      _
    $region119: #{tpu_custom_call.1} parent=1 // pred_check_branch
      %269 = sbr.rel (0) target = $region121
    $region120: #{tpu_custom_call.1} parent=1 // pred_region
      %270 = dma.done [#allocation15], 16
    $region121: #{tpu_custom_call.1} parent=1 // pred_fallthru
      _
    // Predicated region
    $region122: #{tpu_custom_call.1} parent=1 // pred_check
      _
    $region123: #{tpu_custom_call.1} parent=1 // pred_check_branch
      %272 = sbr.rel (0) target = $region125
    $region124: #{tpu_custom_call.1} parent=1 // pred_region
      %273 = dma.done [#allocation18], 1024
    $region125: #{tpu_custom_call.1} parent=1 // pred_fallthru
      _
    // Predicated region
    $region126: #{tpu_custom_call.1} parent=1 // pred_check
      _
    $region127: #{tpu_custom_call.1} parent=1 // pred_check_branch
      %275 = sbr.rel (0) target = $region129
    $region128: #{tpu_custom_call.1} parent=1 // pred_region
      %276 = dma.done [#allocation18], 16
    $region129: #{tpu_custom_call.1} parent=1 // pred_fallthru
      _
    // Predicated region
    $region130: #{tpu_custom_call.1} parent=1 // pred_check
      _
    $region131: #{tpu_custom_call.1} parent=1 // pred_check_branch
      %278 = sbr.rel (0) target = $region133
    $region132: #{tpu_custom_call.1} parent=1 // pred_region
      %279 = dma.done [#allocation21], 1024
    $region133: #{tpu_custom_call.1} parent=1 // pred_fallthru
      _
    // Predicated region
    $region134: #{tpu_custom_call.1} parent=1 // pred_check
      _
    $region135: #{tpu_custom_call.1} parent=1 // pred_check_branch
      %281 = sbr.rel (0) target = $region137
    $region136: #{tpu_custom_call.1} parent=1 // pred_region
      %282 = dma.done [#allocation21], 16
    $region137: #{tpu_custom_call.1} parent=1 // pred_fallthru
      _
    // Predicated region
    $region138: #{tpu_custom_call.1} parent=1 // pred_check
      _
    $region139: #{tpu_custom_call.1} parent=1 // pred_check_branch
      %284 = sbr.rel (0) target = $region141
    $region140: #{tpu_custom_call.1} parent=1 // pred_region
      %285 = dma.done [#allocation24], 1024
    $region141: #{tpu_custom_call.1} parent=1 // pred_fallthru
      _
    // Predicated region
    $region142: #{tpu_custom_call.1} parent=1 // pred_check
      _
    $region143: #{tpu_custom_call.1} parent=1 // pred_check_branch
      %287 = sbr.rel (0) target = $region145
    $region144: #{tpu_custom_call.1} parent=1 // pred_region
      %288 = dma.done [#allocation24], 16
    $region145: #{tpu_custom_call.1} parent=1 // pred_fallthru
      _
    // Predicated region
    $region146: #{tpu_custom_call.1} parent=1 // pred_check
      _
    $region147: #{tpu_custom_call.1} parent=1 // pred_check_branch
      %290 = sbr.rel (0) target = $region149
    $region148: #{tpu_custom_call.1} parent=1 // pred_region
      %291 = dma.done [#allocation27], 1024
    $region149: #{tpu_custom_call.1} parent=1 // pred_fallthru
      _
    // Predicated region
    $region150: #{tpu_custom_call.1} parent=1 // pred_check
      _
    $region151: #{tpu_custom_call.1} parent=1 // pred_check_branch
      %293 = sbr.rel (0) target = $region153
    $region152: #{tpu_custom_call.1} parent=1 // pred_region
      %294 = dma.done [#allocation27], 16
    $region153: #{tpu_custom_call.1} parent=1 // pred_fallthru
      _
    // Predicated region
    $region154: #{tpu_custom_call.1} parent=1 // pred_check
      _
    $region155: #{tpu_custom_call.1} parent=1 // pred_check_branch
      %296 = sbr.rel (0) target = $region157
    $region156: #{tpu_custom_call.1} parent=1 // pred_region
      %297 = dma.done [#allocation30], 2048
    $region157: #{tpu_custom_call.1} parent=1 // pred_fallthru
      _
    %v299 = vld [vmem:[#allocation2] sm:$0xff]
    %v300 = vld [vmem:[#allocation5] sm:$0xf]
    %v301 = vld [vmem:[#allocation5 + $0x4] sm:$0xf]
    %v302 = vld [vmem:[#allocation5 + $0x8] sm:$0xf]
    %v303 = vld [vmem:[#allocation5 + $0xc] sm:$0xf]
    %v304 = vld [vmem:[#allocation5 + $0x10] sm:$0xf]
    %v305 = vld [vmem:[#allocation5 + $0x14] sm:$0xf]
    %v306 = vld [vmem:[#allocation5 + $0x18] sm:$0xf]
    %v307 = vld [vmem:[#allocation5 + $0x1c] sm:$0xf]
    %v308 = vld [vmem:[#allocation5 + $0x20] sm:$0xf]
    %v309 = vld [vmem:[#allocation5 + $0x24] sm:$0xf]
    %v310 = vld [vmem:[#allocation5 + $0x28] sm:$0xf]
    %v311 = vld [vmem:[#allocation5 + $0x2c] sm:$0xf]
    %v312 = vld [vmem:[#allocation5 + $0x30] sm:$0xf]
    %v313 = vld [vmem:[#allocation5 + $0x34] sm:$0xf]
    %v314 = vld [vmem:[#allocation5 + $0x38] sm:$0xf]
    %v315 = vld [vmem:[#allocation5 + $0x3c] sm:$0xf]
    %v316 = vld [vmem:[#allocation5 + $0x40] sm:$0xf]
    %v317 = vld [vmem:[#allocation5 + $0x44] sm:$0xf]
    %v318 = vld [vmem:[#allocation5 + $0x48] sm:$0xf]
    %v319 = vld [vmem:[#allocation5 + $0x4c] sm:$0xf]
    %v320 = vld [vmem:[#allocation5 + $0x50] sm:$0xf]
    %v321 = vld [vmem:[#allocation5 + $0x54] sm:$0xf]
    %v322 = vld [vmem:[#allocation5 + $0x58] sm:$0xf]
    %v323 = vld [vmem:[#allocation5 + $0x5c] sm:$0xf]
    %v324 = vld [vmem:[#allocation5 + $0x60] sm:$0xf]
    %v325 = vld [vmem:[#allocation5 + $0x64] sm:$0xf]
    %v326 = vld [vmem:[#allocation5 + $0x68] sm:$0xf]
    %v327 = vld [vmem:[#allocation5 + $0x6c] sm:$0xf]
    %v328 = vld [vmem:[#allocation5 + $0x70] sm:$0xf]
    %v329 = vld [vmem:[#allocation5 + $0x74] sm:$0xf]
    %v330 = vld [vmem:[#allocation5 + $0x78] sm:$0xf]
    %v331 = vld [vmem:[#allocation5 + $0x7c] sm:$0xf]
    %v332 = vld [vmem:[#allocation7] sm:$0x1]
    %v334 = vlaneseq
    %v335 = vshrl.u32 %v334, 7
    %v336 = vsub.s32 0, %v335
    %v337 = vrot.slane %v332, %v336
    %v340 = vunpack.c.l.b16 %v299
    %v341 = vunpack.c.h.b16 %v299
    %v342 = vpack.c.b16 %v340, %v340
    %v343 = vpack.c.b16 %v341, %v341
    %v378 = vunpack.c.l.b16 %v300
    %v379 = vunpack.c.l.b16 %v301
    %v380 = vunpack.c.l.b16 %v302
    %v381 = vunpack.c.l.b16 %v303
    %v382 = vunpack.c.l.b16 %v304
    %v383 = vunpack.c.l.b16 %v305
    %v384 = vunpack.c.l.b16 %v306
    %v385 = vunpack.c.l.b16 %v307
    %v386 = vunpack.c.l.b16 %v308
    %v387 = vunpack.c.l.b16 %v309
    %v388 = vunpack.c.l.b16 %v310
    %v389 = vunpack.c.l.b16 %v311
    %v390 = vunpack.c.l.b16 %v312
    %v391 = vunpack.c.l.b16 %v313
    %v392 = vunpack.c.l.b16 %v314
    %v393 = vunpack.c.l.b16 %v315
    %v394 = vunpack.c.l.b16 %v316
    %v395 = vunpack.c.l.b16 %v317
    %v396 = vunpack.c.l.b16 %v318
    %v397 = vunpack.c.l.b16 %v319
    %v398 = vunpack.c.l.b16 %v320
    %v399 = vunpack.c.l.b16 %v321
    %v400 = vunpack.c.l.b16 %v322
    %v401 = vunpack.c.l.b16 %v323
    %v402 = vunpack.c.l.b16 %v324
    %v403 = vunpack.c.l.b16 %v325
    %v404 = vunpack.c.l.b16 %v326
    %v405 = vunpack.c.l.b16 %v327
    %v406 = vunpack.c.l.b16 %v328
    %v407 = vunpack.c.l.b16 %v329
    %v408 = vunpack.c.l.b16 %v330
    %v409 = vunpack.c.l.b16 %v331
    %v410 = vpack.c.b16 %v379, %v378
    %v411 = vpack.c.b16 %v381, %v380
    %v412 = vpack.c.b16 %v383, %v382
    %v413 = vpack.c.b16 %v385, %v384
    %v414 = vpack.c.b16 %v387, %v386
    %v415 = vpack.c.b16 %v389, %v388
    %v416 = vpack.c.b16 %v391, %v390
    %v417 = vpack.c.b16 %v393, %v392
    %v418 = vpack.c.b16 %v395, %v394
    %v419 = vpack.c.b16 %v397, %v396
    %v420 = vpack.c.b16 %v399, %v398
    %v421 = vpack.c.b16 %v401, %v400
    %v422 = vpack.c.b16 %v403, %v402
    %v423 = vpack.c.b16 %v405, %v404
    %v424 = vpack.c.b16 %v407, %v406
    %v425 = vpack.c.b16 %v409, %v408
    %442 = vmatprep.subr.bf16.mxu0 0
    %443 = vmatpush1.bf16.msra.mxu0 %v410
    %444 = vmatprep.subr.bf16.mxu0 0
    %445 = vmatpush1.bf16.msra.mxu0 %v411
    %446 = vmatprep.subr.bf16.mxu0 0
    %447 = vmatpush1.bf16.msra.mxu0 %v412
    %448 = vmatprep.subr.bf16.mxu0 0
    %449 = vmatpush1.bf16.msra.mxu0 %v413
    %450 = vmatprep.subr.bf16.mxu0 0
    %451 = vmatpush1.bf16.msra.mxu0 %v414
    %452 = vmatprep.subr.bf16.mxu0 0
    %453 = vmatpush1.bf16.msra.mxu0 %v415
    %454 = vmatprep.subr.bf16.mxu0 0
    %455 = vmatpush1.bf16.msra.mxu0 %v416
    %456 = vmatprep.subr.bf16.mxu0 0
    %457 = vmatpush1.bf16.msra.mxu0 %v417
    %458 = vmatprep.subr.bf16.mxu0 0
    %459 = vmatpush1.bf16.msra.mxu0 %v418
    %460 = vmatprep.subr.bf16.mxu0 0
    %461 = vmatpush1.bf16.msra.mxu0 %v419
    %462 = vmatprep.subr.bf16.mxu0 0
    %463 = vmatpush1.bf16.msra.mxu0 %v420
    %464 = vmatprep.subr.bf16.mxu0 0
    %465 = vmatpush1.bf16.msra.mxu0 %v421
    %466 = vmatprep.subr.bf16.mxu0 0
    %467 = vmatpush1.bf16.msra.mxu0 %v422
    %468 = vmatprep.subr.bf16.mxu0 0
    %469 = vmatpush1.bf16.msra.mxu0 %v423
    %470 = vmatprep.subr.bf16.mxu0 0
    %471 = vmatpush1.bf16.msra.mxu0 %v424
    %472 = vmatprep.subr.bf16.mxu0 0
    %473 = vmatpush1.bf16.msra.mxu0 %v425
    %474 = vmatprep.mubr.bf16.mxu0 %v343
    %475 = vmatmul.mubr.bf16.gmra.mrb[0].mxu0 %v342
    %v476 = vpop.f32.mrb[0].mxu0
    %v477 = vadd.f32 %v337, %v476
    %v478 = vpop.f32.mrb[0].mxu0
    %v479 = vpop.f32.mrb[0].mxu0
    %v480 = vpop.f32.mrb[0].mxu0
    %481 = vdwg.mxu0
    %v482 = vmax.f32 %v477, 0.0
    %v483 = vpack.c.bf16 %v482, %v482
    %v484 = vld [vmem:[#allocation8] sm:$0xf]
    %v485 = vld [vmem:[#allocation8 + $0x4] sm:$0xf]
    %v486 = vld [vmem:[#allocation8 + $0x8] sm:$0xf]
    %v487 = vld [vmem:[#allocation8 + $0xc] sm:$0xf]
    %v488 = vld [vmem:[#allocation8 + $0x10] sm:$0xf]
    %v489 = vld [vmem:[#allocation8 + $0x14] sm:$0xf]
    %v490 = vld [vmem:[#allocation8 + $0x18] sm:$0xf]
    %v491 = vld [vmem:[#allocation8 + $0x1c] sm:$0xf]
    %v492 = vld [vmem:[#allocation8 + $0x20] sm:$0xf]
    %v493 = vld [vmem:[#allocation8 + $0x24] sm:$0xf]
    %v494 = vld [vmem:[#allocation8 + $0x28] sm:$0xf]
    %v495 = vld [vmem:[#allocation8 + $0x2c] sm:$0xf]
    %v496 = vld [vmem:[#allocation8 + $0x30] sm:$0xf]
    %v497 = vld [vmem:[#allocation8 + $0x34] sm:$0xf]
    %v498 = vld [vmem:[#allocation8 + $0x38] sm:$0xf]
    %v499 = vld [vmem:[#allocation8 + $0x3c] sm:$0xf]
    %v500 = vld [vmem:[#allocation10] sm:$0x1]
    %v502 = vlaneseq
    %v503 = vshrl.u32 %v502, 7
    %v504 = vsub.s32 0, %v503
    %v505 = vrot.slane %v500, %v504
    %v523 = vunpack.c.l.b16 %v484
    %v524 = vunpack.c.l.b16 %v485
    %v525 = vunpack.c.l.b16 %v486
    %v526 = vunpack.c.l.b16 %v487
    %v527 = vunpack.c.l.b16 %v488
    %v528 = vunpack.c.l.b16 %v489
    %v529 = vunpack.c.l.b16 %v490
    %v530 = vunpack.c.l.b16 %v491
    %v531 = vunpack.c.l.b16 %v492
    %v532 = vunpack.c.l.b16 %v493
    %v533 = vunpack.c.l.b16 %v494
    %v534 = vunpack.c.l.b16 %v495
    %v535 = vunpack.c.l.b16 %v496
    %v536 = vunpack.c.l.b16 %v497
    %v537 = vunpack.c.l.b16 %v498
    %v538 = vunpack.c.l.b16 %v499
    %v539 = vpack.c.b16 %v524, %v523
    %v540 = vpack.c.b16 %v526, %v525
    %v541 = vpack.c.b16 %v528, %v527
    %v542 = vpack.c.b16 %v530, %v529
    %v543 = vpack.c.b16 %v532, %v531
    %v544 = vpack.c.b16 %v534, %v533
    %v545 = vpack.c.b16 %v536, %v535
    %v546 = vpack.c.b16 %v538, %v537
    %555 = vmatprep.subr.bf16.mxu0 0
    %556 = vmatpush1.bf16.msra.mxu0 %v539
    %557 = vmatprep.subr.bf16.mxu0 0
    %558 = vmatpush1.bf16.msra.mxu0 %v540
    %559 = vmatprep.subr.bf16.mxu0 0
    %560 = vmatpush1.bf16.msra.mxu0 %v541
    %561 = vmatprep.subr.bf16.mxu0 0
    %562 = vmatpush1.bf16.msra.mxu0 %v542
    %563 = vmatprep.subr.bf16.mxu0 0
    %564 = vmatpush1.bf16.msra.mxu0 %v543
    %565 = vmatprep.subr.bf16.mxu0 0
    %566 = vmatpush1.bf16.msra.mxu0 %v544
    %567 = vmatprep.subr.bf16.mxu0 0
    %568 = vmatpush1.bf16.msra.mxu0 %v545
    %569 = vmatprep.subr.bf16.mxu0 0
    %570 = vmatpush1.bf16.msra.mxu0 %v546
    %571 = vmatprep.subr.bf16.mxu0 0
    %572 = vmatpush1.bf16.msra.mxu0 0
    %573 = vmatprep.subr.bf16.mxu0 0
    %574 = vmatpush1.bf16.msra.mxu0 0
    %575 = vmatprep.subr.bf16.mxu0 0
    %576 = vmatpush1.bf16.msra.mxu0 0
    %577 = vmatprep.subr.bf16.mxu0 0
    %578 = vmatpush1.bf16.msra.mxu0 0
    %579 = vmatprep.subr.bf16.mxu0 0
    %580 = vmatpush1.bf16.msra.mxu0 0
    %581 = vmatprep.subr.bf16.mxu0 0
    %582 = vmatpush1.bf16.msra.mxu0 0
    %583 = vmatprep.subr.bf16.mxu0 0
    %584 = vmatpush1.bf16.msra.mxu0 0
    %585 = vmatprep.subr.bf16.mxu0 0
    %586 = vmatpush1.bf16.msra.mxu0 0
    %587 = vmatprep.mubr.bf16.mxu0 0
    %588 = vmatmul.mubr.bf16.gmra.mrb[0].mxu0 %v483
    %v589 = vpop.f32.mrb[0].mxu0
    %v590 = vadd.f32 %v505, %v589
    %v591 = vpop.f32.mrb[0].mxu0
    %v592 = vpop.f32.mrb[0].mxu0
    %v593 = vpop.f32.mrb[0].mxu0
    %594 = vdwg.mxu0
    %v595 = vmax.f32 %v590, 0.0
    %v596 = vpack.c.bf16 %v595, %v595
    %v597 = vld [vmem:[#allocation11] sm:$0xf]
    %v598 = vld [vmem:[#allocation11 + $0x4] sm:$0xf]
    %v599 = vld [vmem:[#allocation11 + $0x8] sm:$0xf]
    %v600 = vld [vmem:[#allocation11 + $0xc] sm:$0xf]
    %v601 = vld [vmem:[#allocation11 + $0x10] sm:$0xf]
    %v602 = vld [vmem:[#allocation11 + $0x14] sm:$0xf]
    %v603 = vld [vmem:[#allocation11 + $0x18] sm:$0xf]
    %v604 = vld [vmem:[#allocation11 + $0x1c] sm:$0xf]
    %v605 = vld [vmem:[#allocation11 + $0x20] sm:$0xf]
    %v606 = vld [vmem:[#allocation11 + $0x24] sm:$0xf]
    %v607 = vld [vmem:[#allocation11 + $0x28] sm:$0xf]
    %v608 = vld [vmem:[#allocation11 + $0x2c] sm:$0xf]
    %v609 = vld [vmem:[#allocation11 + $0x30] sm:$0xf]
    %v610 = vld [vmem:[#allocation11 + $0x34] sm:$0xf]
    %v611 = vld [vmem:[#allocation11 + $0x38] sm:$0xf]
    %v612 = vld [vmem:[#allocation11 + $0x3c] sm:$0xf]
    %v613 = vld [vmem:[#allocation13] sm:$0x1]
    %v615 = vlaneseq
    %v616 = vshrl.u32 %v615, 7
    %v617 = vsub.s32 0, %v616
    %v618 = vrot.slane %v613, %v617
    %v636 = vunpack.c.l.b16 %v597
    %v637 = vunpack.c.l.b16 %v598
    %v638 = vunpack.c.l.b16 %v599
    %v639 = vunpack.c.l.b16 %v600
    %v640 = vunpack.c.l.b16 %v601
    %v641 = vunpack.c.l.b16 %v602
    %v642 = vunpack.c.l.b16 %v603
    %v643 = vunpack.c.l.b16 %v604
    %v644 = vunpack.c.l.b16 %v605
    %v645 = vunpack.c.l.b16 %v606
    %v646 = vunpack.c.l.b16 %v607
    %v647 = vunpack.c.l.b16 %v608
    %v648 = vunpack.c.l.b16 %v609
    %v649 = vunpack.c.l.b16 %v610
    %v650 = vunpack.c.l.b16 %v611
    %v651 = vunpack.c.l.b16 %v612
    %v652 = vpack.c.b16 %v637, %v636
    %v653 = vpack.c.b16 %v639, %v638
    %v654 = vpack.c.b16 %v641, %v640
    %v655 = vpack.c.b16 %v643, %v642
    %v656 = vpack.c.b16 %v645, %v644
    %v657 = vpack.c.b16 %v647, %v646
    %v658 = vpack.c.b16 %v649, %v648
    %v659 = vpack.c.b16 %v651, %v650
    %668 = vmatprep.subr.bf16.mxu0 0
    %669 = vmatpush1.bf16.msra.mxu0 %v652
    %670 = vmatprep.subr.bf16.mxu0 0
    %671 = vmatpush1.bf16.msra.mxu0 %v653
    %672 = vmatprep.subr.bf16.mxu0 0
    %673 = vmatpush1.bf16.msra.mxu0 %v654
    %674 = vmatprep.subr.bf16.mxu0 0
    %675 = vmatpush1.bf16.msra.mxu0 %v655
    %676 = vmatprep.subr.bf16.mxu0 0
    %677 = vmatpush1.bf16.msra.mxu0 %v656
    %678 = vmatprep.subr.bf16.mxu0 0
    %679 = vmatpush1.bf16.msra.mxu0 %v657
    %680 = vmatprep.subr.bf16.mxu0 0
    %681 = vmatpush1.bf16.msra.mxu0 %v658
    %682 = vmatprep.subr.bf16.mxu0 0
    %683 = vmatpush1.bf16.msra.mxu0 %v659
    %684 = vmatprep.subr.bf16.mxu0 0
    %685 = vmatpush1.bf16.msra.mxu0 0
    %686 = vmatprep.subr.bf16.mxu0 0
    %687 = vmatpush1.bf16.msra.mxu0 0
    %688 = vmatprep.subr.bf16.mxu0 0
    %689 = vmatpush1.bf16.msra.mxu0 0
    %690 = vmatprep.subr.bf16.mxu0 0
    %691 = vmatpush1.bf16.msra.mxu0 0
    %692 = vmatprep.subr.bf16.mxu0 0
    %693 = vmatpush1.bf16.msra.mxu0 0
    %694 = vmatprep.subr.bf16.mxu0 0
    %695 = vmatpush1.bf16.msra.mxu0 0
    %696 = vmatprep.subr.bf16.mxu0 0
    %697 = vmatpush1.bf16.msra.mxu0 0
    %698 = vmatprep.subr.bf16.mxu0 0
    %699 = vmatpush1.bf16.msra.mxu0 0
    %700 = vmatprep.mubr.bf16.mxu0 0
    %701 = vmatmul.mubr.bf16.gmra.mrb[0].mxu0 %v596
    %v702 = vpop.f32.mrb[0].mxu0
    %v703 = vadd.f32 %v618, %v702
    %v704 = vpop.f32.mrb[0].mxu0
    %v705 = vpop.f32.mrb[0].mxu0
    %v706 = vpop.f32.mrb[0].mxu0
    %707 = vdwg.mxu0
    %v708 = vmax.f32 %v703, 0.0
    %v709 = vpack.c.bf16 %v708, %v708
    %v710 = vld [vmem:[#allocation14] sm:$0xf]
    %v711 = vld [vmem:[#allocation14 + $0x4] sm:$0xf]
    %v712 = vld [vmem:[#allocation14 + $0x8] sm:$0xf]
    %v713 = vld [vmem:[#allocation14 + $0xc] sm:$0xf]
    %v714 = vld [vmem:[#allocation14 + $0x10] sm:$0xf]
    %v715 = vld [vmem:[#allocation14 + $0x14] sm:$0xf]
    %v716 = vld [vmem:[#allocation14 + $0x18] sm:$0xf]
    %v717 = vld [vmem:[#allocation14 + $0x1c] sm:$0xf]
    %v718 = vld [vmem:[#allocation14 + $0x20] sm:$0xf]
    %v719 = vld [vmem:[#allocation14 + $0x24] sm:$0xf]
    %v720 = vld [vmem:[#allocation14 + $0x28] sm:$0xf]
    %v721 = vld [vmem:[#allocation14 + $0x2c] sm:$0xf]
    %v722 = vld [vmem:[#allocation14 + $0x30] sm:$0xf]
    %v723 = vld [vmem:[#allocation14 + $0x34] sm:$0xf]
    %v724 = vld [vmem:[#allocation14 + $0x38] sm:$0xf]
    %v725 = vld [vmem:[#allocation14 + $0x3c] sm:$0xf]
    %v726 = vld [vmem:[#allocation16] sm:$0x1]
    %v728 = vlaneseq
    %v729 = vshrl.u32 %v728, 7
    %v730 = vsub.s32 0, %v729
    %v731 = vrot.slane %v726, %v730
    %v749 = vunpack.c.l.b16 %v710
    %v750 = vunpack.c.l.b16 %v711
    %v751 = vunpack.c.l.b16 %v712
    %v752 = vunpack.c.l.b16 %v713
    %v753 = vunpack.c.l.b16 %v714
    %v754 = vunpack.c.l.b16 %v715
    %v755 = vunpack.c.l.b16 %v716
    %v756 = vunpack.c.l.b16 %v717
    %v757 = vunpack.c.l.b16 %v718
    %v758 = vunpack.c.l.b16 %v719
    %v759 = vunpack.c.l.b16 %v720
    %v760 = vunpack.c.l.b16 %v721
    %v761 = vunpack.c.l.b16 %v722
    %v762 = vunpack.c.l.b16 %v723
    %v763 = vunpack.c.l.b16 %v724
    %v764 = vunpack.c.l.b16 %v725
    %v765 = vpack.c.b16 %v750, %v749
    %v766 = vpack.c.b16 %v752, %v751
    %v767 = vpack.c.b16 %v754, %v753
    %v768 = vpack.c.b16 %v756, %v755
    %v769 = vpack.c.b16 %v758, %v757
    %v770 = vpack.c.b16 %v760, %v759
    %v771 = vpack.c.b16 %v762, %v761
    %v772 = vpack.c.b16 %v764, %v763
    %781 = vmatprep.subr.bf16.mxu0 0
    %782 = vmatpush1.bf16.msra.mxu0 %v765
    %783 = vmatprep.subr.bf16.mxu0 0
    %784 = vmatpush1.bf16.msra.mxu0 %v766
    %785 = vmatprep.subr.bf16.mxu0 0
    %786 = vmatpush1.bf16.msra.mxu0 %v767
    %787 = vmatprep.subr.bf16.mxu0 0
    %788 = vmatpush1.bf16.msra.mxu0 %v768
    %789 = vmatprep.subr.bf16.mxu0 0
    %790 = vmatpush1.bf16.msra.mxu0 %v769
    %791 = vmatprep.subr.bf16.mxu0 0
    %792 = vmatpush1.bf16.msra.mxu0 %v770
    %793 = vmatprep.subr.bf16.mxu0 0
    %794 = vmatpush1.bf16.msra.mxu0 %v771
    %795 = vmatprep.subr.bf16.mxu0 0
    %796 = vmatpush1.bf16.msra.mxu0 %v772
    %797 = vmatprep.subr.bf16.mxu0 0
    %798 = vmatpush1.bf16.msra.mxu0 0
    %799 = vmatprep.subr.bf16.mxu0 0
    %800 = vmatpush1.bf16.msra.mxu0 0
    %801 = vmatprep.subr.bf16.mxu0 0
    %802 = vmatpush1.bf16.msra.mxu0 0
    %803 = vmatprep.subr.bf16.mxu0 0
    %804 = vmatpush1.bf16.msra.mxu0 0
    %805 = vmatprep.subr.bf16.mxu0 0
    %806 = vmatpush1.bf16.msra.mxu0 0
    %807 = vmatprep.subr.bf16.mxu0 0
    %808 = vmatpush1.bf16.msra.mxu0 0
    %809 = vmatprep.subr.bf16.mxu0 0
    %810 = vmatpush1.bf16.msra.mxu0 0
    %811 = vmatprep.subr.bf16.mxu0 0
    %812 = vmatpush1.bf16.msra.mxu0 0
    %813 = vmatprep.mubr.bf16.mxu0 0
    %814 = vmatmul.mubr.bf16.gmra.mrb[0].mxu0 %v709
    %v815 = vpop.f32.mrb[0].mxu0
    %v816 = vadd.f32 %v731, %v815
    %v817 = vpop.f32.mrb[0].mxu0
    %v818 = vpop.f32.mrb[0].mxu0
    %v819 = vpop.f32.mrb[0].mxu0
    %820 = vdwg.mxu0
    %v821 = vmax.f32 %v816, 0.0
    %v822 = vpack.c.bf16 %v821, %v821
    %v823 = vld [vmem:[#allocation17] sm:$0xf]
    %v824 = vld [vmem:[#allocation17 + $0x4] sm:$0xf]
    %v825 = vld [vmem:[#allocation17 + $0x8] sm:$0xf]
    %v826 = vld [vmem:[#allocation17 + $0xc] sm:$0xf]
    %v827 = vld [vmem:[#allocation17 + $0x10] sm:$0xf]
    %v828 = vld [vmem:[#allocation17 + $0x14] sm:$0xf]
    %v829 = vld [vmem:[#allocation17 + $0x18] sm:$0xf]
    %v830 = vld [vmem:[#allocation17 + $0x1c] sm:$0xf]
    %v831 = vld [vmem:[#allocation17 + $0x20] sm:$0xf]
    %v832 = vld [vmem:[#allocation17 + $0x24] sm:$0xf]
    %v833 = vld [vmem:[#allocation17 + $0x28] sm:$0xf]
    %v834 = vld [vmem:[#allocation17 + $0x2c] sm:$0xf]
    %v835 = vld [vmem:[#allocation17 + $0x30] sm:$0xf]
    %v836 = vld [vmem:[#allocation17 + $0x34] sm:$0xf]
    %v837 = vld [vmem:[#allocation17 + $0x38] sm:$0xf]
    %v838 = vld [vmem:[#allocation17 + $0x3c] sm:$0xf]
    %v839 = vld [vmem:[#allocation19] sm:$0x1]
    %v841 = vlaneseq
    %v842 = vshrl.u32 %v841, 7
    %v843 = vsub.s32 0, %v842
    %v844 = vrot.slane %v839, %v843
    %v862 = vunpack.c.l.b16 %v823
    %v863 = vunpack.c.l.b16 %v824
    %v864 = vunpack.c.l.b16 %v825
    %v865 = vunpack.c.l.b16 %v826
    %v866 = vunpack.c.l.b16 %v827
    %v867 = vunpack.c.l.b16 %v828
    %v868 = vunpack.c.l.b16 %v829
    %v869 = vunpack.c.l.b16 %v830
    %v870 = vunpack.c.l.b16 %v831
    %v871 = vunpack.c.l.b16 %v832
    %v872 = vunpack.c.l.b16 %v833
    %v873 = vunpack.c.l.b16 %v834
    %v874 = vunpack.c.l.b16 %v835
    %v875 = vunpack.c.l.b16 %v836
    %v876 = vunpack.c.l.b16 %v837
    %v877 = vunpack.c.l.b16 %v838
    %v878 = vpack.c.b16 %v863, %v862
    %v879 = vpack.c.b16 %v865, %v864
    %v880 = vpack.c.b16 %v867, %v866
    %v881 = vpack.c.b16 %v869, %v868
    %v882 = vpack.c.b16 %v871, %v870
    %v883 = vpack.c.b16 %v873, %v872
    %v884 = vpack.c.b16 %v875, %v874
    %v885 = vpack.c.b16 %v877, %v876
    %894 = vmatprep.subr.bf16.mxu0 0
    %895 = vmatpush1.bf16.msra.mxu0 %v878
    %896 = vmatprep.subr.bf16.mxu0 0
    %897 = vmatpush1.bf16.msra.mxu0 %v879
    %898 = vmatprep.subr.bf16.mxu0 0
    %899 = vmatpush1.bf16.msra.mxu0 %v880
    %900 = vmatprep.subr.bf16.mxu0 0
    %901 = vmatpush1.bf16.msra.mxu0 %v881
    %902 = vmatprep.subr.bf16.mxu0 0
    %903 = vmatpush1.bf16.msra.mxu0 %v882
    %904 = vmatprep.subr.bf16.mxu0 0
    %905 = vmatpush1.bf16.msra.mxu0 %v883
    %906 = vmatprep.subr.bf16.mxu0 0
    %907 = vmatpush1.bf16.msra.mxu0 %v884
    %908 = vmatprep.subr.bf16.mxu0 0
    %909 = vmatpush1.bf16.msra.mxu0 %v885
    %910 = vmatprep.subr.bf16.mxu0 0
    %911 = vmatpush1.bf16.msra.mxu0 0
    %912 = vmatprep.subr.bf16.mxu0 0
    %913 = vmatpush1.bf16.msra.mxu0 0
    %914 = vmatprep.subr.bf16.mxu0 0
    %915 = vmatpush1.bf16.msra.mxu0 0
    %916 = vmatprep.subr.bf16.mxu0 0
    %917 = vmatpush1.bf16.msra.mxu0 0
    %918 = vmatprep.subr.bf16.mxu0 0
    %919 = vmatpush1.bf16.msra.mxu0 0
    %920 = vmatprep.subr.bf16.mxu0 0
    %921 = vmatpush1.bf16.msra.mxu0 0
    %922 = vmatprep.subr.bf16.mxu0 0
    %923 = vmatpush1.bf16.msra.mxu0 0
    %924 = vmatprep.subr.bf16.mxu0 0
    %925 = vmatpush1.bf16.msra.mxu0 0
    %926 = vmatprep.mubr.bf16.mxu0 0
    %927 = vmatmul.mubr.bf16.gmra.mrb[0].mxu0 %v822
    %v928 = vpop.f32.mrb[0].mxu0
    %v929 = vadd.f32 %v844, %v928
    %v930 = vpop.f32.mrb[0].mxu0
    %v931 = vpop.f32.mrb[0].mxu0
    %v932 = vpop.f32.mrb[0].mxu0
    %933 = vdwg.mxu0
    %934 = vst [vmem:[#allocation32] sm:$0xff] %v929
    %v935 = vpack.c.bf16 %v929, %v929
    %v936 = vld [vmem:[#allocation20] sm:$0xf]
    %v937 = vld [vmem:[#allocation20 + $0x4] sm:$0xf]
    %v938 = vld [vmem:[#allocation20 + $0x8] sm:$0xf]
    %v939 = vld [vmem:[#allocation20 + $0xc] sm:$0xf]
    %v940 = vld [vmem:[#allocation20 + $0x10] sm:$0xf]
    %v941 = vld [vmem:[#allocation20 + $0x14] sm:$0xf]
    %v942 = vld [vmem:[#allocation20 + $0x18] sm:$0xf]
    %v943 = vld [vmem:[#allocation20 + $0x1c] sm:$0xf]
    %v944 = vld [vmem:[#allocation20 + $0x20] sm:$0xf]
    %v945 = vld [vmem:[#allocation20 + $0x24] sm:$0xf]
    %v946 = vld [vmem:[#allocation20 + $0x28] sm:$0xf]
    %v947 = vld [vmem:[#allocation20 + $0x2c] sm:$0xf]
    %v948 = vld [vmem:[#allocation20 + $0x30] sm:$0xf]
    %v949 = vld [vmem:[#allocation20 + $0x34] sm:$0xf]
    %v950 = vld [vmem:[#allocation20 + $0x38] sm:$0xf]
    %v951 = vld [vmem:[#allocation20 + $0x3c] sm:$0xf]
    %v952 = vld [vmem:[#allocation22] sm:$0x1]
    %v954 = vlaneseq
    %v955 = vshrl.u32 %v954, 7
    %v956 = vsub.s32 0, %v955
    %v957 = vrot.slane %v952, %v956
    %v975 = vunpack.c.l.b16 %v936
    %v976 = vunpack.c.l.b16 %v937
    %v977 = vunpack.c.l.b16 %v938
    %v978 = vunpack.c.l.b16 %v939
    %v979 = vunpack.c.l.b16 %v940
    %v980 = vunpack.c.l.b16 %v941
    %v981 = vunpack.c.l.b16 %v942
    %v982 = vunpack.c.l.b16 %v943
    %v983 = vunpack.c.l.b16 %v944
    %v984 = vunpack.c.l.b16 %v945
    %v985 = vunpack.c.l.b16 %v946
    %v986 = vunpack.c.l.b16 %v947
    %v987 = vunpack.c.l.b16 %v948
    %v988 = vunpack.c.l.b16 %v949
    %v989 = vunpack.c.l.b16 %v950
    %v990 = vunpack.c.l.b16 %v951
    %v991 = vpack.c.b16 %v976, %v975
    %v992 = vpack.c.b16 %v978, %v977
    %v993 = vpack.c.b16 %v980, %v979
    %v994 = vpack.c.b16 %v982, %v981
    %v995 = vpack.c.b16 %v984, %v983
    %v996 = vpack.c.b16 %v986, %v985
    %v997 = vpack.c.b16 %v988, %v987
    %v998 = vpack.c.b16 %v990, %v989
    %1007 = vmatprep.subr.bf16.mxu0 0
    %1008 = vmatpush1.bf16.msra.mxu0 %v991
    %1009 = vmatprep.subr.bf16.mxu0 0
    %1010 = vmatpush1.bf16.msra.mxu0 %v992
    %1011 = vmatprep.subr.bf16.mxu0 0
    %1012 = vmatpush1.bf16.msra.mxu0 %v993
    %1013 = vmatprep.subr.bf16.mxu0 0
    %1014 = vmatpush1.bf16.msra.mxu0 %v994
    %1015 = vmatprep.subr.bf16.mxu0 0
    %1016 = vmatpush1.bf16.msra.mxu0 %v995
    %1017 = vmatprep.subr.bf16.mxu0 0
    %1018 = vmatpush1.bf16.msra.mxu0 %v996
    %1019 = vmatprep.subr.bf16.mxu0 0
    %1020 = vmatpush1.bf16.msra.mxu0 %v997
    %1021 = vmatprep.subr.bf16.mxu0 0
    %1022 = vmatpush1.bf16.msra.mxu0 %v998
    %1023 = vmatprep.subr.bf16.mxu0 0
    %1024 = vmatpush1.bf16.msra.mxu0 0
    %1025 = vmatprep.subr.bf16.mxu0 0
    %1026 = vmatpush1.bf16.msra.mxu0 0
    %1027 = vmatprep.subr.bf16.mxu0 0
    %1028 = vmatpush1.bf16.msra.mxu0 0
    %1029 = vmatprep.subr.bf16.mxu0 0
    %1030 = vmatpush1.bf16.msra.mxu0 0
    %1031 = vmatprep.subr.bf16.mxu0 0
    %1032 = vmatpush1.bf16.msra.mxu0 0
    %1033 = vmatprep.subr.bf16.mxu0 0
    %1034 = vmatpush1.bf16.msra.mxu0 0
    %1035 = vmatprep.subr.bf16.mxu0 0
    %1036 = vmatpush1.bf16.msra.mxu0 0
    %1037 = vmatprep.subr.bf16.mxu0 0
    %1038 = vmatpush1.bf16.msra.mxu0 0
    %1039 = vmatprep.mubr.bf16.mxu0 0
    %1040 = vmatmul.mubr.bf16.gmra.mrb[0].mxu0 %v935
    %v1041 = vpop.f32.mrb[0].mxu0
    %v1042 = vadd.f32 %v957, %v1041
    %v1043 = vpop.f32.mrb[0].mxu0
    %v1044 = vpop.f32.mrb[0].mxu0
    %v1045 = vpop.f32.mrb[0].mxu0
    %1046 = vdwg.mxu0
    %v1047 = vmax.f32 %v1042, 0.0
    %v1048 = vpack.c.bf16 %v1047, %v1047
    %v1049 = vld [vmem:[#allocation23] sm:$0xf]
    %v1050 = vld [vmem:[#allocation23 + $0x4] sm:$0xf]
    %v1051 = vld [vmem:[#allocation23 + $0x8] sm:$0xf]
    %v1052 = vld [vmem:[#allocation23 + $0xc] sm:$0xf]
    %v1053 = vld [vmem:[#allocation23 + $0x10] sm:$0xf]
    %v1054 = vld [vmem:[#allocation23 + $0x14] sm:$0xf]
    %v1055 = vld [vmem:[#allocation23 + $0x18] sm:$0xf]
    %v1056 = vld [vmem:[#allocation23 + $0x1c] sm:$0xf]
    %v1057 = vld [vmem:[#allocation23 + $0x20] sm:$0xf]
    %v1058 = vld [vmem:[#allocation23 + $0x24] sm:$0xf]
    %v1059 = vld [vmem:[#allocation23 + $0x28] sm:$0xf]
    %v1060 = vld [vmem:[#allocation23 + $0x2c] sm:$0xf]
    %v1061 = vld [vmem:[#allocation23 + $0x30] sm:$0xf]
    %v1062 = vld [vmem:[#allocation23 + $0x34] sm:$0xf]
    %v1063 = vld [vmem:[#allocation23 + $0x38] sm:$0xf]
    %v1064 = vld [vmem:[#allocation23 + $0x3c] sm:$0xf]
    %v1065 = vld [vmem:[#allocation25] sm:$0x1]
    %v1067 = vlaneseq
    %v1068 = vshrl.u32 %v1067, 7
    %v1069 = vsub.s32 0, %v1068
    %v1070 = vrot.slane %v1065, %v1069
    %v1088 = vunpack.c.l.b16 %v1049
    %v1089 = vunpack.c.l.b16 %v1050
    %v1090 = vunpack.c.l.b16 %v1051
    %v1091 = vunpack.c.l.b16 %v1052
    %v1092 = vunpack.c.l.b16 %v1053
    %v1093 = vunpack.c.l.b16 %v1054
    %v1094 = vunpack.c.l.b16 %v1055
    %v1095 = vunpack.c.l.b16 %v1056
    %v1096 = vunpack.c.l.b16 %v1057
    %v1097 = vunpack.c.l.b16 %v1058
    %v1098 = vunpack.c.l.b16 %v1059
    %v1099 = vunpack.c.l.b16 %v1060
    %v1100 = vunpack.c.l.b16 %v1061
    %v1101 = vunpack.c.l.b16 %v1062
    %v1102 = vunpack.c.l.b16 %v1063
    %v1103 = vunpack.c.l.b16 %v1064
    %v1104 = vpack.c.b16 %v1089, %v1088
    %v1105 = vpack.c.b16 %v1091, %v1090
    %v1106 = vpack.c.b16 %v1093, %v1092
    %v1107 = vpack.c.b16 %v1095, %v1094
    %v1108 = vpack.c.b16 %v1097, %v1096
    %v1109 = vpack.c.b16 %v1099, %v1098
    %v1110 = vpack.c.b16 %v1101, %v1100
    %v1111 = vpack.c.b16 %v1103, %v1102
    %1120 = vmatprep.subr.bf16.mxu0 0
    %1121 = vmatpush1.bf16.msra.mxu0 %v1104
    %1122 = vmatprep.subr.bf16.mxu0 0
    %1123 = vmatpush1.bf16.msra.mxu0 %v1105
    %1124 = vmatprep.subr.bf16.mxu0 0
    %1125 = vmatpush1.bf16.msra.mxu0 %v1106
    %1126 = vmatprep.subr.bf16.mxu0 0
    %1127 = vmatpush1.bf16.msra.mxu0 %v1107
    %1128 = vmatprep.subr.bf16.mxu0 0
    %1129 = vmatpush1.bf16.msra.mxu0 %v1108
    %1130 = vmatprep.subr.bf16.mxu0 0
    %1131 = vmatpush1.bf16.msra.mxu0 %v1109
    %1132 = vmatprep.subr.bf16.mxu0 0
    %1133 = vmatpush1.bf16.msra.mxu0 %v1110
    %1134 = vmatprep.subr.bf16.mxu0 0
    %1135 = vmatpush1.bf16.msra.mxu0 %v1111
    %1136 = vmatprep.subr.bf16.mxu0 0
    %1137 = vmatpush1.bf16.msra.mxu0 0
    %1138 = vmatprep.subr.bf16.mxu0 0
    %1139 = vmatpush1.bf16.msra.mxu0 0
    %1140 = vmatprep.subr.bf16.mxu0 0
    %1141 = vmatpush1.bf16.msra.mxu0 0
    %1142 = vmatprep.subr.bf16.mxu0 0
    %1143 = vmatpush1.bf16.msra.mxu0 0
    %1144 = vmatprep.subr.bf16.mxu0 0
    %1145 = vmatpush1.bf16.msra.mxu0 0
    %1146 = vmatprep.subr.bf16.mxu0 0
    %1147 = vmatpush1.bf16.msra.mxu0 0
    %1148 = vmatprep.subr.bf16.mxu0 0
    %1149 = vmatpush1.bf16.msra.mxu0 0
    %1150 = vmatprep.subr.bf16.mxu0 0
    %1151 = vmatpush1.bf16.msra.mxu0 0
    %1152 = vmatprep.mubr.bf16.mxu0 0
    %1153 = vmatmul.mubr.bf16.gmra.mrb[0].mxu0 %v1048
    %v1154 = vpop.f32.mrb[0].mxu0
    %v1155 = vadd.f32 %v1070, %v1154
    %v1156 = vpop.f32.mrb[0].mxu0
    %v1157 = vpop.f32.mrb[0].mxu0
    %v1158 = vpop.f32.mrb[0].mxu0
    %1159 = vdwg.mxu0
    %v1160 = vmax.f32 %v1155, 0.0
    %v1161 = vpack.c.bf16 %v1160, %v1160
    %v1162 = vld [vmem:[#allocation26] sm:$0xf]
    %v1163 = vld [vmem:[#allocation26 + $0x4] sm:$0xf]
    %v1164 = vld [vmem:[#allocation26 + $0x8] sm:$0xf]
    %v1165 = vld [vmem:[#allocation26 + $0xc] sm:$0xf]
    %v1166 = vld [vmem:[#allocation26 + $0x10] sm:$0xf]
    %v1167 = vld [vmem:[#allocation26 + $0x14] sm:$0xf]
    %v1168 = vld [vmem:[#allocation26 + $0x18] sm:$0xf]
    %v1169 = vld [vmem:[#allocation26 + $0x1c] sm:$0xf]
    %v1170 = vld [vmem:[#allocation26 + $0x20] sm:$0xf]
    %v1171 = vld [vmem:[#allocation26 + $0x24] sm:$0xf]
    %v1172 = vld [vmem:[#allocation26 + $0x28] sm:$0xf]
    %v1173 = vld [vmem:[#allocation26 + $0x2c] sm:$0xf]
    %v1174 = vld [vmem:[#allocation26 + $0x30] sm:$0xf]
    %v1175 = vld [vmem:[#allocation26 + $0x34] sm:$0xf]
    %v1176 = vld [vmem:[#allocation26 + $0x38] sm:$0xf]
    %v1177 = vld [vmem:[#allocation26 + $0x3c] sm:$0xf]
    %v1178 = vld [vmem:[#allocation28] sm:$0x1]
    %v1180 = vlaneseq
    %v1181 = vshrl.u32 %v1180, 7
    %v1182 = vsub.s32 0, %v1181
    %v1183 = vrot.slane %v1178, %v1182
    %v1201 = vunpack.c.l.b16 %v1162
    %v1202 = vunpack.c.l.b16 %v1163
    %v1203 = vunpack.c.l.b16 %v1164
    %v1204 = vunpack.c.l.b16 %v1165
    %v1205 = vunpack.c.l.b16 %v1166
    %v1206 = vunpack.c.l.b16 %v1167
    %v1207 = vunpack.c.l.b16 %v1168
    %v1208 = vunpack.c.l.b16 %v1169
    %v1209 = vunpack.c.l.b16 %v1170
    %v1210 = vunpack.c.l.b16 %v1171
    %v1211 = vunpack.c.l.b16 %v1172
    %v1212 = vunpack.c.l.b16 %v1173
    %v1213 = vunpack.c.l.b16 %v1174
    %v1214 = vunpack.c.l.b16 %v1175
    %v1215 = vunpack.c.l.b16 %v1176
    %v1216 = vunpack.c.l.b16 %v1177
    %v1217 = vpack.c.b16 %v1202, %v1201
    %v1218 = vpack.c.b16 %v1204, %v1203
    %v1219 = vpack.c.b16 %v1206, %v1205
    %v1220 = vpack.c.b16 %v1208, %v1207
    %v1221 = vpack.c.b16 %v1210, %v1209
    %v1222 = vpack.c.b16 %v1212, %v1211
    %v1223 = vpack.c.b16 %v1214, %v1213
    %v1224 = vpack.c.b16 %v1216, %v1215
    %1233 = vmatprep.subr.bf16.mxu0 0
    %1234 = vmatpush1.bf16.msra.mxu0 %v1217
    %1235 = vmatprep.subr.bf16.mxu0 0
    %1236 = vmatpush1.bf16.msra.mxu0 %v1218
    %1237 = vmatprep.subr.bf16.mxu0 0
    %1238 = vmatpush1.bf16.msra.mxu0 %v1219
    %1239 = vmatprep.subr.bf16.mxu0 0
    %1240 = vmatpush1.bf16.msra.mxu0 %v1220
    %1241 = vmatprep.subr.bf16.mxu0 0
    %1242 = vmatpush1.bf16.msra.mxu0 %v1221
    %1243 = vmatprep.subr.bf16.mxu0 0
    %1244 = vmatpush1.bf16.msra.mxu0 %v1222
    %1245 = vmatprep.subr.bf16.mxu0 0
    %1246 = vmatpush1.bf16.msra.mxu0 %v1223
    %1247 = vmatprep.subr.bf16.mxu0 0
    %1248 = vmatpush1.bf16.msra.mxu0 %v1224
    %1249 = vmatprep.subr.bf16.mxu0 0
    %1250 = vmatpush1.bf16.msra.mxu0 0
    %1251 = vmatprep.subr.bf16.mxu0 0
    %1252 = vmatpush1.bf16.msra.mxu0 0
    %1253 = vmatprep.subr.bf16.mxu0 0
    %1254 = vmatpush1.bf16.msra.mxu0 0
    %1255 = vmatprep.subr.bf16.mxu0 0
    %1256 = vmatpush1.bf16.msra.mxu0 0
    %1257 = vmatprep.subr.bf16.mxu0 0
    %1258 = vmatpush1.bf16.msra.mxu0 0
    %1259 = vmatprep.subr.bf16.mxu0 0
    %1260 = vmatpush1.bf16.msra.mxu0 0
    %1261 = vmatprep.subr.bf16.mxu0 0
    %1262 = vmatpush1.bf16.msra.mxu0 0
    %1263 = vmatprep.subr.bf16.mxu0 0
    %1264 = vmatpush1.bf16.msra.mxu0 0
    %1265 = vmatprep.mubr.bf16.mxu0 0
    %1266 = vmatmul.mubr.bf16.gmra.mrb[0].mxu0 %v1161
    %v1267 = vpop.f32.mrb[0].mxu0
    %v1268 = vadd.f32 %v1183, %v1267
    %v1269 = vpop.f32.mrb[0].mxu0
    %v1270 = vpop.f32.mrb[0].mxu0
    %v1271 = vpop.f32.mrb[0].mxu0
    %1272 = vdwg.mxu0
    %v1273 = vmax.f32 %v1268, 0.0
    %v1274 = vpack.c.bf16 %v1273, %v1273
    %v1275 = vld [vmem:[%s17] sm:$0xf]
    %v1276 = vld [vmem:[%s17 + $0x4] sm:$0xf]
    %v1277 = vld [vmem:[%s17 + $0x8] sm:$0xf]
    %v1278 = vld [vmem:[%s17 + $0xc] sm:$0xf]
    %v1279 = vld [vmem:[%s17 + $0x10] sm:$0xf]
    %v1280 = vld [vmem:[%s17 + $0x14] sm:$0xf]
    %v1281 = vld [vmem:[%s17 + $0x18] sm:$0xf]
    %v1282 = vld [vmem:[%s17 + $0x1c] sm:$0xf]
    %v1283 = vld [vmem:[%s17 + $0x20] sm:$0xf]
    %v1284 = vld [vmem:[%s17 + $0x24] sm:$0xf]
    %v1285 = vld [vmem:[%s17 + $0x28] sm:$0xf]
    %v1286 = vld [vmem:[%s17 + $0x2c] sm:$0xf]
    %v1287 = vld [vmem:[%s17 + $0x30] sm:$0xf]
    %v1288 = vld [vmem:[%s17 + $0x34] sm:$0xf]
    %v1289 = vld [vmem:[%s17 + $0x38] sm:$0xf]
    %v1290 = vld [vmem:[%s17 + $0x3c] sm:$0xf]
    %v1291 = vld [vmem:[%s18] sm:$0x1]
    %v1293 = vlaneseq
    %v1294 = vshrl.u32 %v1293, 7
    %v1295 = vsub.s32 0, %v1294
    %v1296 = vrot.slane %v1291, %v1295
    %v1314 = vunpack.c.l.b16 %v1275
    %v1315 = vunpack.c.l.b16 %v1276
    %v1316 = vunpack.c.l.b16 %v1277
    %v1317 = vunpack.c.l.b16 %v1278
    %v1318 = vunpack.c.l.b16 %v1279
    %v1319 = vunpack.c.l.b16 %v1280
    %v1320 = vunpack.c.l.b16 %v1281
    %v1321 = vunpack.c.l.b16 %v1282
    %v1322 = vunpack.c.l.b16 %v1283
    %v1323 = vunpack.c.l.b16 %v1284
    %v1324 = vunpack.c.l.b16 %v1285
    %v1325 = vunpack.c.l.b16 %v1286
    %v1326 = vunpack.c.l.b16 %v1287
    %v1327 = vunpack.c.l.b16 %v1288
    %v1328 = vunpack.c.l.b16 %v1289
    %v1329 = vunpack.c.l.b16 %v1290
    %v1330 = vpack.c.b16 %v1315, %v1314
    %v1331 = vpack.c.b16 %v1317, %v1316
    %v1332 = vpack.c.b16 %v1319, %v1318
    %v1333 = vpack.c.b16 %v1321, %v1320
    %v1334 = vpack.c.b16 %v1323, %v1322
    %v1335 = vpack.c.b16 %v1325, %v1324
    %v1336 = vpack.c.b16 %v1327, %v1326
    %v1337 = vpack.c.b16 %v1329, %v1328
    %1346 = vmatprep.subr.bf16.mxu0 0
    %1347 = vmatpush1.bf16.msra.mxu0 %v1330
    %1348 = vmatprep.subr.bf16.mxu0 0
    %1349 = vmatpush1.bf16.msra.mxu0 %v1331
    %1350 = vmatprep.subr.bf16.mxu0 0
    %1351 = vmatpush1.bf16.msra.mxu0 %v1332
    %1352 = vmatprep.subr.bf16.mxu0 0
    %1353 = vmatpush1.bf16.msra.mxu0 %v1333
    %1354 = vmatprep.subr.bf16.mxu0 0
    %1355 = vmatpush1.bf16.msra.mxu0 %v1334
    %1356 = vmatprep.subr.bf16.mxu0 0
    %1357 = vmatpush1.bf16.msra.mxu0 %v1335
    %1358 = vmatprep.subr.bf16.mxu0 0
    %1359 = vmatpush1.bf16.msra.mxu0 %v1336
    %1360 = vmatprep.subr.bf16.mxu0 0
    %1361 = vmatpush1.bf16.msra.mxu0 %v1337
    %1362 = vmatprep.subr.bf16.mxu0 0
    %1363 = vmatpush1.bf16.msra.mxu0 0
    %1364 = vmatprep.subr.bf16.mxu0 0
    %1365 = vmatpush1.bf16.msra.mxu0 0
    %1366 = vmatprep.subr.bf16.mxu0 0
    %1367 = vmatpush1.bf16.msra.mxu0 0
    %1368 = vmatprep.subr.bf16.mxu0 0
    %1369 = vmatpush1.bf16.msra.mxu0 0
    %1370 = vmatprep.subr.bf16.mxu0 0
    %1371 = vmatpush1.bf16.msra.mxu0 0
    %1372 = vmatprep.subr.bf16.mxu0 0
    %1373 = vmatpush1.bf16.msra.mxu0 0
    %1374 = vmatprep.subr.bf16.mxu0 0
    %1375 = vmatpush1.bf16.msra.mxu0 0
    %1376 = vmatprep.subr.bf16.mxu0 0
    %1377 = vmatpush1.bf16.msra.mxu0 0
    %1378 = vmatprep.mubr.bf16.mxu0 0
    %1379 = vmatmul.mubr.bf16.gmra.mrb[0].mxu0 %v1274
    %v1380 = vpop.f32.mrb[0].mxu0
    %v1381 = vadd.f32 %v1296, %v1380
    %v1382 = vpop.f32.mrb[0].mxu0
    %v1383 = vpop.f32.mrb[0].mxu0
    %v1384 = vpop.f32.mrb[0].mxu0
    %1385 = vdwg.mxu0
    %v1386 = vmax.f32 %v1381, 0.0
    %v1387 = vpack.c.bf16 %v1386, %v1386
    %v1388 = vld [vmem:[#allocation29] sm:$0xff]
    %v1389 = vld [vmem:[#allocation29 + $0x8] sm:$0xff]
    %v1390 = vld [vmem:[#allocation29 + $0x10] sm:$0xff]
    %v1391 = vld [vmem:[#allocation29 + $0x18] sm:$0xff]
    %v1392 = vld [vmem:[#allocation29 + $0x20] sm:$0xff]
    %v1393 = vld [vmem:[#allocation29 + $0x28] sm:$0xff]
    %v1394 = vld [vmem:[#allocation29 + $0x30] sm:$0xff]
    %v1395 = vld [vmem:[#allocation29 + $0x38] sm:$0xff]
    %v1396 = vld [vmem:[#allocation29 + $0x40] sm:$0xff]
    %v1397 = vld [vmem:[#allocation29 + $0x48] sm:$0xff]
    %v1398 = vld [vmem:[#allocation29 + $0x50] sm:$0xff]
    %v1399 = vld [vmem:[#allocation29 + $0x58] sm:$0xff]
    %v1400 = vld [vmem:[#allocation29 + $0x60] sm:$0xff]
    %v1401 = vld [vmem:[#allocation29 + $0x68] sm:$0xff]
    %v1402 = vld [vmem:[#allocation29 + $0x70] sm:$0xff]
    %v1403 = vld [vmem:[#allocation29 + $0x78] sm:$0xff]
    %v1404 = vld [vmem:[%s20] sm:$0x3]
    %v1406 = vlaneseq
    %v1407 = vshrl.u32 %v1406, 7
    %v1408 = vsub.s32 0, %v1407
    %v1409 = vrot.slane %v1404, %v1408
    %v1410 = vlaneseq
    %v1411 = vshrl.u32 %v1410, 7
    %v1412 = vsub.s32 1, %v1411
    %v1413 = vrot.slane %v1404, %v1412
    %v1432 = vunpack.c.l.b16 %v1388
    %v1433 = vunpack.c.h.b16 %v1388
    %v1434 = vunpack.c.l.b16 %v1389
    %v1435 = vunpack.c.h.b16 %v1389
    %v1436 = vunpack.c.l.b16 %v1390
    %v1437 = vunpack.c.h.b16 %v1390
    %v1438 = vunpack.c.l.b16 %v1391
    %v1439 = vunpack.c.h.b16 %v1391
    %v1440 = vunpack.c.l.b16 %v1392
    %v1441 = vunpack.c.h.b16 %v1392
    %v1442 = vunpack.c.l.b16 %v1393
    %v1443 = vunpack.c.h.b16 %v1393
    %v1444 = vunpack.c.l.b16 %v1394
    %v1445 = vunpack.c.h.b16 %v1394
    %v1446 = vunpack.c.l.b16 %v1395
    %v1447 = vunpack.c.h.b16 %v1395
    %v1448 = vunpack.c.l.b16 %v1396
    %v1449 = vunpack.c.h.b16 %v1396
    %v1450 = vunpack.c.l.b16 %v1397
    %v1451 = vunpack.c.h.b16 %v1397
    %v1452 = vunpack.c.l.b16 %v1398
    %v1453 = vunpack.c.h.b16 %v1398
    %v1454 = vunpack.c.l.b16 %v1399
    %v1455 = vunpack.c.h.b16 %v1399
    %v1456 = vunpack.c.l.b16 %v1400
    %v1457 = vunpack.c.h.b16 %v1400
    %v1458 = vunpack.c.l.b16 %v1401
    %v1459 = vunpack.c.h.b16 %v1401
    %v1460 = vunpack.c.l.b16 %v1402
    %v1461 = vunpack.c.h.b16 %v1402
    %v1462 = vunpack.c.l.b16 %v1403
    %v1463 = vunpack.c.h.b16 %v1403
    %v1464 = vpack.c.b16 %v1434, %v1432
    %v1465 = vpack.c.b16 %v1435, %v1433
    %v1466 = vpack.c.b16 %v1438, %v1436
    %v1467 = vpack.c.b16 %v1439, %v1437
    %v1468 = vpack.c.b16 %v1442, %v1440
    %v1469 = vpack.c.b16 %v1443, %v1441
    %v1470 = vpack.c.b16 %v1446, %v1444
    %v1471 = vpack.c.b16 %v1447, %v1445
    %v1472 = vpack.c.b16 %v1450, %v1448
    %v1473 = vpack.c.b16 %v1451, %v1449
    %v1474 = vpack.c.b16 %v1454, %v1452
    %v1475 = vpack.c.b16 %v1455, %v1453
    %v1476 = vpack.c.b16 %v1458, %v1456
    %v1477 = vpack.c.b16 %v1459, %v1457
    %v1478 = vpack.c.b16 %v1462, %v1460
    %v1479 = vpack.c.b16 %v1463, %v1461
    %1496 = vmatprep.subr.bf16.mxu0 %v1465
    %1497 = vmatpush1.bf16.msra.mxu0 %v1464
    %1498 = vmatprep.subr.bf16.mxu0 %v1467
    %1499 = vmatpush1.bf16.msra.mxu0 %v1466
    %1500 = vmatprep.subr.bf16.mxu0 %v1469
    %1501 = vmatpush1.bf16.msra.mxu0 %v1468
    %1502 = vmatprep.subr.bf16.mxu0 %v1471
    %1503 = vmatpush1.bf16.msra.mxu0 %v1470
    %1504 = vmatprep.subr.bf16.mxu0 %v1473
    %1505 = vmatpush1.bf16.msra.mxu0 %v1472
    %1506 = vmatprep.subr.bf16.mxu0 %v1475
    %1507 = vmatpush1.bf16.msra.mxu0 %v1474
    %1508 = vmatprep.subr.bf16.mxu0 %v1477
    %1509 = vmatpush1.bf16.msra.mxu0 %v1476
    %1510 = vmatprep.subr.bf16.mxu0 %v1479
    %1511 = vmatpush1.bf16.msra.mxu0 %v1478
    %1512 = vmatprep.subr.bf16.mxu0 0
    %1513 = vmatpush1.bf16.msra.mxu0 0
    %1514 = vmatprep.subr.bf16.mxu0 0
    %1515 = vmatpush1.bf16.msra.mxu0 0
    %1516 = vmatprep.subr.bf16.mxu0 0
    %1517 = vmatpush1.bf16.msra.mxu0 0
    %1518 = vmatprep.subr.bf16.mxu0 0
    %1519 = vmatpush1.bf16.msra.mxu0 0
    %1520 = vmatprep.subr.bf16.mxu0 0
    %1521 = vmatpush1.bf16.msra.mxu0 0
    %1522 = vmatprep.subr.bf16.mxu0 0
    %1523 = vmatpush1.bf16.msra.mxu0 0
    %1524 = vmatprep.subr.bf16.mxu0 0
    %1525 = vmatpush1.bf16.msra.mxu0 0
    %1526 = vmatprep.subr.bf16.mxu0 0
    %1527 = vmatpush1.bf16.msra.mxu0 0
    %1528 = vmatprep.mubr.bf16.mxu0 0
    %1529 = vmatmul.mubr.bf16.gmra.mrb[0].mxu0 %v1387
    %v1530 = vpop.f32.mrb[0].mxu0
    %v1531 = vadd.f32 %v1409, %v1530
    %v1532 = vpop.f32.mrb[0].mxu0
    %v1533 = vadd.f32 %v1413, %v1532
    %v1534 = vpop.f32.mrb[0].mxu0
    %v1535 = vpop.f32.mrb[0].mxu0
    %1536 = vdwg.mxu0
    %v1537 = vmax.f32 %v1531, 0.0
    %v1538 = vmax.f32 %v1533, 0.0
    %v1539 = vpack.c.bf16 %v1537, %v1537
    %v1540 = vpack.c.bf16 %v1538, %v1538
    %v1543 = vunpack.c.l.b16 %v1539
    %v1544 = vunpack.c.l.b16 %v1540
    %v1545 = vpack.c.b16 %v1544, %v1543
    %1547 = vst [vmem:[#allocation31] sm:$0xff] %v1545
    // Predicated region
    $region158: #{tpu_custom_call.1} parent=1 // pred_check
      _
    $region159: #{tpu_custom_call.1} parent=1 // pred_check_branch
      %1549 = sbr.rel (0) target = $region161
    $region160: #{tpu_custom_call.1} parent=1 // pred_region
      %s1551 = ssub.s32 128, 128
      %1552 = vsyncadd [#allocation4], %s1551
      %s1554 = sshll.u32 [#allocation31], 4
      %s1555 = int_to_ptr.vmem [resolvable:$true] %s1554
      %1557 = dma.vmem_to_hbm [thread:$0]  %s1555, 128, %s21, [#allocation4]
    $region161: #{tpu_custom_call.1} parent=1 // pred_fallthru
      _
    // Predicated region
    $region162: #{tpu_custom_call.1} parent=1 // pred_check
      _
    $region163: #{tpu_custom_call.1} parent=1 // pred_check_branch
      %1559 = sbr.rel (0) target = $region165
    $region164: #{tpu_custom_call.1} parent=1 // pred_region
      %s1561 = ssub.s32 128, 128
      %1562 = vsyncadd [#allocation33], %s1561
      %s1564 = sshll.u32 [#allocation32], 4
      %s1565 = int_to_ptr.vmem [resolvable:$true] %s1564
      %1567 = dma.vmem_to_hbm [thread:$0]  %s1565, 128, %s22, [#allocation33]
    $region165: #{tpu_custom_call.1} parent=1 // pred_fallthru
      _
    // Predicated region
    $region166: #{tpu_custom_call.1} parent=1 // pred_check
      _
    $region167: #{tpu_custom_call.1} parent=1 // pred_check_branch
      %1569 = sbr.rel (0) target = $region169
    $region168: #{tpu_custom_call.1} parent=1 // pred_region
      %1570 = dma.done [#allocation4], 128
    $region169: #{tpu_custom_call.1} parent=1 // pred_fallthru
      _
    // Predicated region
    $region170: #{tpu_custom_call.1} parent=1 // pred_check
      _
    $region171: #{tpu_custom_call.1} parent=1 // pred_check_branch
      %1572 = sbr.rel (0) target = $region173
    $region172: #{tpu_custom_call.1} parent=1 // pred_region
      %1573 = dma.done [#allocation33], 128
    $region173: #{tpu_custom_call.1} parent=1 // pred_fallthru
      _
    %1574 = vsyncpa [#allocation3], 1
    %1575 = vsyncpa [#allocation6], 1
    %1576 = vsyncpa [#allocation9], 1
    %1577 = vsyncpa [#allocation12], 1
    %1578 = vsyncpa [#allocation15], 1
    %1579 = vsyncpa [#allocation18], 1
    %1580 = vsyncpa [#allocation21], 1
    %1581 = vsyncpa [#allocation24], 1
    %1582 = vsyncpa [#allocation27], 1
    %1583 = vsyncpa [#allocation30], 1
    %1584 = vsyncpa [#allocation4], 1
    %1585 = vsyncpa [#allocation33], 1

</llo_original>
